<compile_context>
chip_gen: v7x
topology: tpu7x:2x2x1
jax: 0.10.0
libtpu: 0.0.40
codegen_flags: <defaults>
</compile_context>

<pallas_src>
import numpy as np
import jax
import jax.numpy as jnp
from jax import lax
from jax.experimental import pallas as pl
from jax.experimental.pallas import tpu as pltpu

K1, C1 = 3, 32   # conv1: 3 -> 32, kernel 3x3
K2, C2 = 5, 64   # conv2: 32 -> 64, kernel 5x5


def _conv1_rhs(w1, W, W1):
    """Block-Toeplitz RHS for conv1: folds (kw, cin) into the contraction.

    Row index: kh*(W*Cin) + w_in*Cin + ci ; column index: w*C1 + co.
    """
    k1, _, cin, c1 = w1.shape
    w1n = np.asarray(jax.device_get(w1), np.float32)
    R = np.zeros((k1 * W * cin, W1 * c1), np.float32)
    for kh in range(k1):
        for w in range(W1):
            for kw in range(k1):
                r0 = kh * W * cin + (w + kw) * cin
                R[r0:r0 + cin, w * c1:(w + 1) * c1] = w1n[kh, kw]
    return R


def _conv2_rhs(w2, pw, n_j):
    """Block-Toeplitz RHS for conv2 on the j-dilated pool1 lane layout.

    Row index: kh*pw + (j_out+kw)*(2*C1) + ci ; column index: j_out*C2 + co.
    Junk (odd-j) lanes of the dilated pool1 slab hit all-zero rows.
    """
    k2, _, c1, c2 = w2.shape
    w2n = np.asarray(jax.device_get(w2), np.float32)
    R = np.zeros((k2 * pw, n_j * c2), np.float32)
    for kh in range(k2):
        for j in range(n_j):
            for kw in range(k2):
                r0 = kh * pw + (j + kw) * (2 * c1)
                R[r0:r0 + c1, j * c2:(j + 1) * c2] = w2n[kh, kw]
    return R


def net_forward(x, params, *, block_n=32):
    """x: (N, H, W, 3) float32 NHWC. Returns (N, 1) float32.

    Not jittable at the wrapper level (it builds the Toeplitz weight matrices
    host-side with numpy); the whole forward pass runs as one pallas_call.
    """
    w1, b1, w2, b2, fw1, fb1, fw2, fb2 = params
    N, H, W, Cin = x.shape
    assert Cin == 3 and w1.shape == (K1, K1, Cin, C1) and w2.shape == (K2, K2, C1, C2)

    H1, W1 = H - K1 + 1, W - K1 + 1          # conv1 output
    Hp1, Wp1 = H1 // 2, W1 // 2              # maxpool1 (2x2, stride 2, floor)
    H2, W2 = Hp1 - K2 + 1, Wp1 - K2 + 1      # conv2 output
    Hp2, Wp2 = H2 // 2, W2 // 2              # maxpool2 (floor)
    assert Hp2 >= 1 and Wp2 >= 1, "input spatially too small for this network"

    # maxpool2 + AdaptiveMaxPool2d((1,1)) only ever look at the floor-cropped
    # conv2 region [0:2*Hp2, 0:2*Wp2], so that is all we compute.
    n_i, n_j = 2 * Hp2, 2 * Wp2
    S1 = -(-H // 8) * 8                      # aligned per-image row stride (conv1 slabs)
    S2 = -(-Hp1 // 8) * 8                    # aligned per-image row stride (pool1 slab)
    PW = (W1 - 1) * C1                       # j-dilated pool1 lane width
    KW2 = K2 * PW                            # conv2 contraction width
    grp = 8 // n_i if (n_i <= 8 and 8 % n_i == 0) else 1   # images per aligned pat2 store

    assert block_n % 8 == 0
    B = min(block_n, -(-N // 8) * 8)         # multiple of 8 -> B % grp == 0
    nblk = -(-N // B)
    Npad = nblk * B

    WC = W * Cin
    Hx = S1 + K1 - 1                         # padded input rows per image

    # ---- wrapper-side layout plumbing (pure data movement) -----------------
    x3 = x.reshape(N, H, WC)
    x3 = jnp.pad(x3, ((0, Npad - N), (0, Hx - H), (0, 0)))

    r1 = jnp.asarray(_conv1_rhs(w1, W, W1), jnp.bfloat16)              # (K1*W*Cin, W1*C1)
    r2 = jnp.asarray(_conv2_rhs(w2, PW, n_j), jnp.bfloat16)            # (K2*PW,   n_j*C2)
    b1t = jnp.asarray(np.tile(np.asarray(jax.device_get(b1), np.float32).reshape(1, C1),
                              (1, W1)))                                # (1, W1*C1)
    b2t = jnp.asarray(np.tile(np.asarray(jax.device_get(b2), np.float32).reshape(1, C2),
                              (1, n_j)))                               # (1, n_j*C2)
    fw1b = fw1.astype(jnp.bfloat16)
    fw2b = fw2.astype(jnp.bfloat16)
    fb1f = fb1.astype(jnp.float32).reshape(1, -1)
    fb2f = fb2.astype(jnp.float32).reshape(1, -1)

    def kernel(x_ref, r1_ref, b1_ref, r2_ref, b2_ref,
               fw1_ref, fb1_ref, fw2_ref, fb2_ref,
               o_ref, pat1_ref, a1_ref, p1_ref, pat2_ref):
        # ------ conv1: K1 row-shifted slabs lane-concatenated per image, then
        #        ONE batch-folded matmul against the Toeplitz RHS. ------------
        for b in range(B):
            pieces = [x_ref[b, kh:kh + S1, :] for kh in range(K1)]     # K1 x (S1, WC)
            pat1_ref[pl.ds(b * S1, S1), :] = (
                jnp.concatenate(pieces, axis=1).astype(jnp.bfloat16))  # aligned (S1, K1*WC)
        a1_ref[...] = (
            jnp.dot(pat1_ref[...], r1_ref[...],
                    preferred_element_type=jnp.float32) + b1_ref[...])  # (B*S1, W1*C1)

        # ------ maxpool1 (2x2, stride 2, floor); j kept lane-dilated ---------
        for b in range(B):
            v = a1_ref[pl.ds(b * S1, S1), :]                           # aligned (S1, W1*C1)
            hm = jnp.concatenate(
                [jnp.maximum(v[2 * i:2 * i + 1, :], v[2 * i + 1:2 * i + 2, :])
                 for i in range(Hp1)], axis=0)                         # (Hp1, W1*C1)
            wm = jnp.maximum(hm[:, :PW], hm[:, C1:C1 + PW])            # (Hp1, PW) dilated j
            p1_ref[pl.ds(b * S2, Hp1), :] = wm

        # ------ conv2 lhs: K2 row-shifted pool1 slabs lane-concatenated, packed
        #        `grp` images per aligned store; then ONE batch-folded matmul. -
        for g in range(B // grp):
            blocks = []
            for t in range(grp):
                b = g * grp + t
                pb = p1_ref[pl.ds(b * S2, n_i + K2 - 1), :]            # (n_i+K2-1, PW)
                blocks.append(jnp.concatenate(
                    [pb[kh:kh + n_i, :] for kh in range(K2)], axis=1))  # (n_i, K2*PW)
            pat2_ref[pl.ds(g * grp * n_i, grp * n_i), :] = (
                jnp.concatenate(blocks, axis=0).astype(jnp.bfloat16))
        a2 = (jnp.dot(pat2_ref[...], r2_ref[...],
                      preferred_element_type=jnp.float32) + b2_ref[...])  # (B*n_i, n_j*C2)

        # ------ maxpool2 + Dropout2d + AdaptiveMaxPool2d((1,1)) --------------
        # == global max over the floor-cropped conv2 region (n_i x n_j).
        # TODO(synk): nn.Dropout2d is implemented in inference mode (identity);
        # training-mode stochastic channel dropout/scaling is not reproduced.
        jm = a2[:, :C2]
        for j in range(1, n_j):
            jm = jnp.maximum(jm, a2[:, j * C2:(j + 1) * C2])           # (B*n_i, C2)
        feat = jnp.concatenate(
            [jnp.max(jm[b * n_i:(b + 1) * n_i, :], axis=0, keepdims=True)
             for b in range(B)], axis=0)                               # (B, C2)

        # ------ flatten -> linear(64,32) -> relu -> linear(32,1) -> sigmoid --
        h = jnp.dot(feat.astype(jnp.bfloat16), fw1_ref[...],
                    preferred_element_type=jnp.float32) + fb1_ref[...]  # (B, 32)
        h = jnp.maximum(h, 0.0)
        logit = jnp.dot(h.astype(jnp.bfloat16), fw2_ref[...],
                        preferred_element_type=jnp.float32) + fb2_ref[...]  # (B, 1)
        o_ref[...] = jax.nn.sigmoid(logit)

    def full_spec(a):
        return pl.BlockSpec(a.shape, lambda n, nd=a.ndim: (0,) * nd)

    out = pl.pallas_call(
        kernel,
        out_shape=jax.ShapeDtypeStruct((Npad, 1), jnp.float32),
        grid_spec=pltpu.PrefetchScalarGridSpec(
            num_scalar_prefetch=0,
            grid=(nblk,),
            in_specs=[
                pl.BlockSpec((B, Hx, WC), lambda n: (n, 0, 0)),
                full_spec(r1), full_spec(b1t),
                full_spec(r2), full_spec(b2t),
                full_spec(fw1b), full_spec(fb1f),
                full_spec(fw2b), full_spec(fb2f),
            ],
            out_specs=pl.BlockSpec((B, 1), lambda n: (n, 0)),
            scratch_shapes=[
                pltpu.VMEM((B * S1, K1 * WC), jnp.bfloat16),   # conv1 lhs (im2row slab)
                pltpu.VMEM((B * S1, W1 * C1), jnp.float32),    # conv1 output
                pltpu.VMEM((B * S2, PW), jnp.float32),         # pool1 output (j-dilated)
                pltpu.VMEM((B * n_i, KW2), jnp.bfloat16),      # conv2 lhs
            ],
        ),
        compiler_params=pltpu.CompilerParams(
            dimension_semantics=("parallel",),
            vmem_limit_bytes=32 * 1024 * 1024),
    )(x3, r1, b1t, r2, b2t, fw1b, fb1f, fw2b, fb2f)
    return out[:N]


def reference_net(x, params):
    """Pure-JAX f32 reference with identical semantics (NHWC)."""
    w1, b1, w2, b2, fw1, fb1, fw2, fb2 = params
    dn = ("NHWC", "HWIO", "NHWC")
    y = lax.conv_general_dilated(x, w1, (1, 1), "VALID", dimension_numbers=dn) + b1
    y = lax.reduce_window(y, -jnp.inf, lax.max, (1, 2, 2, 1), (1, 2, 2, 1), "VALID")
    y = lax.conv_general_dilated(y, w2, (1, 1), "VALID", dimension_numbers=dn) + b2
    y = lax.reduce_window(y, -jnp.inf, lax.max, (1, 2, 2, 1), (1, 2, 2, 1), "VALID")
    # Dropout2d: identity (inference). AdaptiveMaxPool2d((1,1)) + Flatten:
    y = jnp.max(y, axis=(1, 2))                     # (N, 64)
    y = jnp.maximum(y @ fw1 + fb1, 0.0)             # (N, 32)
    return jax.nn.sigmoid(y @ fw2 + fb2)            # (N, 1)


if __name__ == "__main__":
    key = jax.random.PRNGKey(0)
    ks = jax.random.split(key, 9)

    # PyTorch would see (2, 3, 16, 16) NCHW; the kernel uses NHWC.
    x = jax.random.normal(ks[0], (2, 16, 16, 3), jnp.float32)

    # Deterministic synthetic parameters (shapes from Net_ModuleDict.__init__).
    w1 = 0.10 * jax.random.normal(ks[1], (3, 3, 3, 32), jnp.float32)   # conv1 HWIO
    b1 = 0.10 * jax.random.normal(ks[2], (1, 32), jnp.float32)
    w2 = 0.05 * jax.random.normal(ks[3], (5, 5, 32, 64), jnp.float32)  # conv2 HWIO
    b2 = 0.10 * jax.random.normal(ks[4], (1, 64), jnp.float32)
    fw1 = 0.10 * jax.random.normal(ks[5], (64, 32), jnp.float32)       # linear1 (in, out)
    fb1 = 0.10 * jax.random.normal(ks[6], (1, 32), jnp.float32)
    fw2 = 0.10 * jax.random.normal(ks[7], (32, 1), jnp.float32)        # linear2 (in, out)
    fb2 = 0.10 * jax.random.normal(ks[8], (1, 1), jnp.float32)
    params = (w1, b1, w2, b2, fw1, fb1, fw2, fb2)

    out = jax.block_until_ready(net_forward(x, params))
    ref = jax.block_until_ready(reference_net(x, params))
    np.testing.assert_allclose(np.asarray(out), np.asarray(ref), rtol=1e-2, atol=1e-2)
    assert out.shape == (2, 1) and out.dtype == jnp.float32
    print("KERNEL_OK")
</pallas_src>

<mosaic_0001>
module attributes {stable_mosaic.version = 11 : i64} {
  func.func @kernel(%arg0: i32, %arg1: memref<8x18x48xf32, #tpu.memory_space<vmem>>, %arg2: memref<144x448xbf16, #tpu.memory_space<vmem>>, %arg3: memref<1x448xf32, #tpu.memory_space<vmem>>, %arg4: memref<2080x128xbf16, #tpu.memory_space<vmem>>, %arg5: memref<1x128xf32, #tpu.memory_space<vmem>>, %arg6: memref<64x32xbf16, #tpu.memory_space<vmem>>, %arg7: memref<1x32xf32, #tpu.memory_space<vmem>>, %arg8: memref<32x1xbf16, #tpu.memory_space<vmem>>, %arg9: memref<1x1xf32, #tpu.memory_space<vmem>>, %arg10: memref<8x1xf32, #tpu.memory_space<vmem>>, %arg11: memref<128x144xbf16, #tpu.memory_space<vmem>>, %arg12: memref<128x448xf32, #tpu.memory_space<vmem>>, %arg13: memref<64x416xf32, #tpu.memory_space<vmem>>, %arg14: memref<16x2080xbf16, #tpu.memory_space<vmem>>) attributes {dimension_semantics = [#tpu.dimension_semantics<parallel>], iteration_bounds = array<i64: 1>, scalar_prefetch = 0 : i64, scratch_operands = 4 : i64, tpu.core_type = #tpu.core_type<tc>, window_params = [{transform_indices = @transform_0, window_bounds = array<i64: 8, 18, 48>}, {pipeline_mode = #tpu.pipeline_mode<synchronous>, transform_indices = @transform_1, window_bounds = array<i64: 144, 448>}, {pipeline_mode = #tpu.pipeline_mode<synchronous>, transform_indices = @transform_2, window_bounds = array<i64: 1, 448>}, {pipeline_mode = #tpu.pipeline_mode<synchronous>, transform_indices = @transform_3, window_bounds = array<i64: 2080, 128>}, {pipeline_mode = #tpu.pipeline_mode<synchronous>, transform_indices = @transform_4, window_bounds = array<i64: 1, 128>}, {pipeline_mode = #tpu.pipeline_mode<synchronous>, transform_indices = @transform_5, window_bounds = array<i64: 64, 32>}, {pipeline_mode = #tpu.pipeline_mode<synchronous>, transform_indices = @transform_6, window_bounds = array<i64: 1, 32>}, {pipeline_mode = #tpu.pipeline_mode<synchronous>, transform_indices = @transform_7, window_bounds = array<i64: 32, 1>}, {pipeline_mode = #tpu.pipeline_mode<synchronous>, transform_indices = @transform_8, window_bounds = array<i64: 1, 1>}, {transform_indices = @transform_9, window_bounds = array<i64: 8, 1>}]} {
    %c0 = arith.constant 0 : index
    %c0_0 = arith.constant 0 : index
    %c0_1 = arith.constant 0 : index
    %0 = vector.load %arg1[%c0, %c0_0, %c0_1] : memref<8x18x48xf32, #tpu.memory_space<vmem>>, vector<1x16x48xf32>
    %1 = vector.shape_cast %0 : vector<1x16x48xf32> to vector<16x48xf32>
    %c0_2 = arith.constant 0 : index
    %c1 = arith.constant 1 : index
    %c0_3 = arith.constant 0 : index
    %2 = vector.load %arg1[%c0_2, %c1, %c0_3] : memref<8x18x48xf32, #tpu.memory_space<vmem>>, vector<1x16x48xf32>
    %3 = vector.shape_cast %2 : vector<1x16x48xf32> to vector<16x48xf32>
    %c0_4 = arith.constant 0 : index
    %c2 = arith.constant 2 : index
    %c0_5 = arith.constant 0 : index
    %4 = vector.load %arg1[%c0_4, %c2, %c0_5] : memref<8x18x48xf32, #tpu.memory_space<vmem>>, vector<1x16x48xf32>
    %5 = vector.shape_cast %4 : vector<1x16x48xf32> to vector<16x48xf32>
    %6 = tpu.concatenate %1, %3, %5 in 1 : vector<16x48xf32>, vector<16x48xf32>, vector<16x48xf32> -> vector<16x144xf32>
    %7 = arith.truncf %6 : vector<16x144xf32> to vector<16x144xbf16>
    %c0_6 = arith.constant 0 : index
    %c0_7 = arith.constant 0 : index
    %8 = vector.load %arg11[%c0_6, %c0_7] : memref<128x144xbf16, #tpu.memory_space<vmem>>, vector<16x144xbf16>
    tpu.vector_store %arg11[%c0_6, %c0_7], %7 {strides = array<i32>} : memref<128x144xbf16, #tpu.memory_space<vmem>>, vector<16x144xbf16>,
    %c1_8 = arith.constant 1 : index
    %c0_9 = arith.constant 0 : index
    %c0_10 = arith.constant 0 : index
    %9 = vector.load %arg1[%c1_8, %c0_9, %c0_10] : memref<8x18x48xf32, #tpu.memory_space<vmem>>, vector<1x16x48xf32>
    %10 = vector.shape_cast %9 : vector<1x16x48xf32> to vector<16x48xf32>
    %c1_11 = arith.constant 1 : index
    %c1_12 = arith.constant 1 : index
    %c0_13 = arith.constant 0 : index
    %11 = vector.load %arg1[%c1_11, %c1_12, %c0_13] : memref<8x18x48xf32, #tpu.memory_space<vmem>>, vector<1x16x48xf32>
    %12 = vector.shape_cast %11 : vector<1x16x48xf32> to vector<16x48xf32>
    %c1_14 = arith.constant 1 : index
    %c2_15 = arith.constant 2 : index
    %c0_16 = arith.constant 0 : index
    %13 = vector.load %arg1[%c1_14, %c2_15, %c0_16] : memref<8x18x48xf32, #tpu.memory_space<vmem>>, vector<1x16x48xf32>
    %14 = vector.shape_cast %13 : vector<1x16x48xf32> to vector<16x48xf32>
    %15 = tpu.concatenate %10, %12, %14 in 1 : vector<16x48xf32>, vector<16x48xf32>, vector<16x48xf32> -> vector<16x144xf32>
    %16 = arith.truncf %15 : vector<16x144xf32> to vector<16x144xbf16>
    %c16 = arith.constant 16 : index
    %c0_17 = arith.constant 0 : index
    %17 = vector.load %arg11[%c16, %c0_17] : memref<128x144xbf16, #tpu.memory_space<vmem>>, vector<16x144xbf16>
    tpu.vector_store %arg11[%c16, %c0_17], %16 {strides = array<i32>} : memref<128x144xbf16, #tpu.memory_space<vmem>>, vector<16x144xbf16>,
    %c2_18 = arith.constant 2 : index
    %c0_19 = arith.constant 0 : index
    %c0_20 = arith.constant 0 : index
    %18 = vector.load %arg1[%c2_18, %c0_19, %c0_20] : memref<8x18x48xf32, #tpu.memory_space<vmem>>, vector<1x16x48xf32>
    %19 = vector.shape_cast %18 : vector<1x16x48xf32> to vector<16x48xf32>
    %c2_21 = arith.constant 2 : index
    %c1_22 = arith.constant 1 : index
    %c0_23 = arith.constant 0 : index
    %20 = vector.load %arg1[%c2_21, %c1_22, %c0_23] : memref<8x18x48xf32, #tpu.memory_space<vmem>>, vector<1x16x48xf32>
    %21 = vector.shape_cast %20 : vector<1x16x48xf32> to vector<16x48xf32>
    %c2_24 = arith.constant 2 : index
    %c2_25 = arith.constant 2 : index
    %c0_26 = arith.constant 0 : index
    %22 = vector.load %arg1[%c2_24, %c2_25, %c0_26] : memref<8x18x48xf32, #tpu.memory_space<vmem>>, vector<1x16x48xf32>
    %23 = vector.shape_cast %22 : vector<1x16x48xf32> to vector<16x48xf32>
    %24 = tpu.concatenate %19, %21, %23 in 1 : vector<16x48xf32>, vector<16x48xf32>, vector<16x48xf32> -> vector<16x144xf32>
    %25 = arith.truncf %24 : vector<16x144xf32> to vector<16x144xbf16>
    %c32 = arith.constant 32 : index
    %c0_27 = arith.constant 0 : index
    %26 = vector.load %arg11[%c32, %c0_27] : memref<128x144xbf16, #tpu.memory_space<vmem>>, vector<16x144xbf16>
    tpu.vector_store %arg11[%c32, %c0_27], %25 {strides = array<i32>} : memref<128x144xbf16, #tpu.memory_space<vmem>>, vector<16x144xbf16>,
    %c3 = arith.constant 3 : index
    %c0_28 = arith.constant 0 : index
    %c0_29 = arith.constant 0 : index
    %27 = vector.load %arg1[%c3, %c0_28, %c0_29] : memref<8x18x48xf32, #tpu.memory_space<vmem>>, vector<1x16x48xf32>
    %28 = vector.shape_cast %27 : vector<1x16x48xf32> to vector<16x48xf32>
    %c3_30 = arith.constant 3 : index
    %c1_31 = arith.constant 1 : index
    %c0_32 = arith.constant 0 : index
    %29 = vector.load %arg1[%c3_30, %c1_31, %c0_32] : memref<8x18x48xf32, #tpu.memory_space<vmem>>, vector<1x16x48xf32>
    %30 = vector.shape_cast %29 : vector<1x16x48xf32> to vector<16x48xf32>
    %c3_33 = arith.constant 3 : index
    %c2_34 = arith.constant 2 : index
    %c0_35 = arith.constant 0 : index
    %31 = vector.load %arg1[%c3_33, %c2_34, %c0_35] : memref<8x18x48xf32, #tpu.memory_space<vmem>>, vector<1x16x48xf32>
    %32 = vector.shape_cast %31 : vector<1x16x48xf32> to vector<16x48xf32>
    %33 = tpu.concatenate %28, %30, %32 in 1 : vector<16x48xf32>, vector<16x48xf32>, vector<16x48xf32> -> vector<16x144xf32>
    %34 = arith.truncf %33 : vector<16x144xf32> to vector<16x144xbf16>
    %c48 = arith.constant 48 : index
    %c0_36 = arith.constant 0 : index
    %35 = vector.load %arg11[%c48, %c0_36] : memref<128x144xbf16, #tpu.memory_space<vmem>>, vector<16x144xbf16>
    tpu.vector_store %arg11[%c48, %c0_36], %34 {strides = array<i32>} : memref<128x144xbf16, #tpu.memory_space<vmem>>, vector<16x144xbf16>,
    %c4 = arith.constant 4 : index
    %c0_37 = arith.constant 0 : index
    %c0_38 = arith.constant 0 : index
    %36 = vector.load %arg1[%c4, %c0_37, %c0_38] : memref<8x18x48xf32, #tpu.memory_space<vmem>>, vector<1x16x48xf32>
    %37 = vector.shape_cast %36 : vector<1x16x48xf32> to vector<16x48xf32>
    %c4_39 = arith.constant 4 : index
    %c1_40 = arith.constant 1 : index
    %c0_41 = arith.constant 0 : index
    %38 = vector.load %arg1[%c4_39, %c1_40, %c0_41] : memref<8x18x48xf32, #tpu.memory_space<vmem>>, vector<1x16x48xf32>
    %39 = vector.shape_cast %38 : vector<1x16x48xf32> to vector<16x48xf32>
    %c4_42 = arith.constant 4 : index
    %c2_43 = arith.constant 2 : index
    %c0_44 = arith.constant 0 : index
    %40 = vector.load %arg1[%c4_42, %c2_43, %c0_44] : memref<8x18x48xf32, #tpu.memory_space<vmem>>, vector<1x16x48xf32>
    %41 = vector.shape_cast %40 : vector<1x16x48xf32> to vector<16x48xf32>
    %42 = tpu.concatenate %37, %39, %41 in 1 : vector<16x48xf32>, vector<16x48xf32>, vector<16x48xf32> -> vector<16x144xf32>
    %43 = arith.truncf %42 : vector<16x144xf32> to vector<16x144xbf16>
    %c64 = arith.constant 64 : index
    %c0_45 = arith.constant 0 : index
    %44 = vector.load %arg11[%c64, %c0_45] : memref<128x144xbf16, #tpu.memory_space<vmem>>, vector<16x144xbf16>
    tpu.vector_store %arg11[%c64, %c0_45], %43 {strides = array<i32>} : memref<128x144xbf16, #tpu.memory_space<vmem>>, vector<16x144xbf16>,
    %c5 = arith.constant 5 : index
    %c0_46 = arith.constant 0 : index
    %c0_47 = arith.constant 0 : index
    %45 = vector.load %arg1[%c5, %c0_46, %c0_47] : memref<8x18x48xf32, #tpu.memory_space<vmem>>, vector<1x16x48xf32>
    %46 = vector.shape_cast %45 : vector<1x16x48xf32> to vector<16x48xf32>
    %c5_48 = arith.constant 5 : index
    %c1_49 = arith.constant 1 : index
    %c0_50 = arith.constant 0 : index
    %47 = vector.load %arg1[%c5_48, %c1_49, %c0_50] : memref<8x18x48xf32, #tpu.memory_space<vmem>>, vector<1x16x48xf32>
    %48 = vector.shape_cast %47 : vector<1x16x48xf32> to vector<16x48xf32>
    %c5_51 = arith.constant 5 : index
    %c2_52 = arith.constant 2 : index
    %c0_53 = arith.constant 0 : index
    %49 = vector.load %arg1[%c5_51, %c2_52, %c0_53] : memref<8x18x48xf32, #tpu.memory_space<vmem>>, vector<1x16x48xf32>
    %50 = vector.shape_cast %49 : vector<1x16x48xf32> to vector<16x48xf32>
    %51 = tpu.concatenate %46, %48, %50 in 1 : vector<16x48xf32>, vector<16x48xf32>, vector<16x48xf32> -> vector<16x144xf32>
    %52 = arith.truncf %51 : vector<16x144xf32> to vector<16x144xbf16>
    %c80 = arith.constant 80 : index
    %c0_54 = arith.constant 0 : index
    %53 = vector.load %arg11[%c80, %c0_54] : memref<128x144xbf16, #tpu.memory_space<vmem>>, vector<16x144xbf16>
    tpu.vector_store %arg11[%c80, %c0_54], %52 {strides = array<i32>} : memref<128x144xbf16, #tpu.memory_space<vmem>>, vector<16x144xbf16>,
    %c6 = arith.constant 6 : index
    %c0_55 = arith.constant 0 : index
    %c0_56 = arith.constant 0 : index
    %54 = vector.load %arg1[%c6, %c0_55, %c0_56] : memref<8x18x48xf32, #tpu.memory_space<vmem>>, vector<1x16x48xf32>
    %55 = vector.shape_cast %54 : vector<1x16x48xf32> to vector<16x48xf32>
    %c6_57 = arith.constant 6 : index
    %c1_58 = arith.constant 1 : index
    %c0_59 = arith.constant 0 : index
    %56 = vector.load %arg1[%c6_57, %c1_58, %c0_59] : memref<8x18x48xf32, #tpu.memory_space<vmem>>, vector<1x16x48xf32>
    %57 = vector.shape_cast %56 : vector<1x16x48xf32> to vector<16x48xf32>
    %c6_60 = arith.constant 6 : index
    %c2_61 = arith.constant 2 : index
    %c0_62 = arith.constant 0 : index
    %58 = vector.load %arg1[%c6_60, %c2_61, %c0_62] : memref<8x18x48xf32, #tpu.memory_space<vmem>>, vector<1x16x48xf32>
    %59 = vector.shape_cast %58 : vector<1x16x48xf32> to vector<16x48xf32>
    %60 = tpu.concatenate %55, %57, %59 in 1 : vector<16x48xf32>, vector<16x48xf32>, vector<16x48xf32> -> vector<16x144xf32>
    %61 = arith.truncf %60 : vector<16x144xf32> to vector<16x144xbf16>
    %c96 = arith.constant 96 : index
    %c0_63 = arith.constant 0 : index
    %62 = vector.load %arg11[%c96, %c0_63] : memref<128x144xbf16, #tpu.memory_space<vmem>>, vector<16x144xbf16>
    tpu.vector_store %arg11[%c96, %c0_63], %61 {strides = array<i32>} : memref<128x144xbf16, #tpu.memory_space<vmem>>, vector<16x144xbf16>,
    %c7 = arith.constant 7 : index
    %c0_64 = arith.constant 0 : index
    %c0_65 = arith.constant 0 : index
    %63 = vector.load %arg1[%c7, %c0_64, %c0_65] : memref<8x18x48xf32, #tpu.memory_space<vmem>>, vector<1x16x48xf32>
    %64 = vector.shape_cast %63 : vector<1x16x48xf32> to vector<16x48xf32>
    %c7_66 = arith.constant 7 : index
    %c1_67 = arith.constant 1 : index
    %c0_68 = arith.constant 0 : index
    %65 = vector.load %arg1[%c7_66, %c1_67, %c0_68] : memref<8x18x48xf32, #tpu.memory_space<vmem>>, vector<1x16x48xf32>
    %66 = vector.shape_cast %65 : vector<1x16x48xf32> to vector<16x48xf32>
    %c7_69 = arith.constant 7 : index
    %c2_70 = arith.constant 2 : index
    %c0_71 = arith.constant 0 : index
    %67 = vector.load %arg1[%c7_69, %c2_70, %c0_71] : memref<8x18x48xf32, #tpu.memory_space<vmem>>, vector<1x16x48xf32>
    %68 = vector.shape_cast %67 : vector<1x16x48xf32> to vector<16x48xf32>
    %69 = tpu.concatenate %64, %66, %68 in 1 : vector<16x48xf32>, vector<16x48xf32>, vector<16x48xf32> -> vector<16x144xf32>
    %70 = arith.truncf %69 : vector<16x144xf32> to vector<16x144xbf16>
    %c112 = arith.constant 112 : index
    %c0_72 = arith.constant 0 : index
    %71 = vector.load %arg11[%c112, %c0_72] : memref<128x144xbf16, #tpu.memory_space<vmem>>, vector<16x144xbf16>
    tpu.vector_store %arg11[%c112, %c0_72], %70 {strides = array<i32>} : memref<128x144xbf16, #tpu.memory_space<vmem>>, vector<16x144xbf16>,
    %c0_73 = arith.constant 0 : index
    %c0_74 = arith.constant 0 : index
    %72 = vector.load %arg11[%c0_73, %c0_74] : memref<128x144xbf16, #tpu.memory_space<vmem>>, vector<128x144xbf16>
    %c0_75 = arith.constant 0 : index
    %c0_76 = arith.constant 0 : index
    %73 = vector.load %arg2[%c0_75, %c0_76] : memref<144x448xbf16, #tpu.memory_space<vmem>>, vector<144x448xbf16>
    %cst = arith.constant dense<0.000000e+00> : vector<128x448xf32>
    %74 = tpu.matmul %72, %73, %cst {dimension_numbers = #tpu.dot_dimension_numbers<[1], [0], [0], [1], [0, 0, 1, 1], [], []>} : vector<128x144xbf16>, vector<144x448xbf16>, vector<128x448xf32> -> vector<128x448xf32>
    %c0_77 = arith.constant 0 : index
    %c0_78 = arith.constant 0 : index
    %75 = vector.load %arg3[%c0_77, %c0_78] : memref<1x448xf32, #tpu.memory_space<vmem>>, vector<1x448xf32>
    %76 = vector.broadcast %75 : vector<1x448xf32> to vector<128x448xf32>
    %77 = arith.addf %74, %76 : vector<128x448xf32>
    %c0_79 = arith.constant 0 : index
    %c0_80 = arith.constant 0 : index
    %78 = vector.load %arg12[%c0_79, %c0_80] : memref<128x448xf32, #tpu.memory_space<vmem>>, vector<128x448xf32>
    tpu.vector_store %arg12[%c0_79, %c0_80], %77 {strides = array<i32>} : memref<128x448xf32, #tpu.memory_space<vmem>>, vector<128x448xf32>,
    %c0_81 = arith.constant 0 : index
    %c0_82 = arith.constant 0 : index
    %79 = vector.load %arg12[%c0_81, %c0_82] : memref<128x448xf32, #tpu.memory_space<vmem>>, vector<16x448xf32>
    %80 = vector.extract_strided_slice %79 {offsets = [0, 0], sizes = [1, 448], strides = [1, 1]} : vector<16x448xf32> to vector<1x448xf32>
    %81 = vector.extract_strided_slice %79 {offsets = [1, 0], sizes = [1, 448], strides = [1, 1]} : vector<16x448xf32> to vector<1x448xf32>
    %82 = arith.maximumf %80, %81 : vector<1x448xf32>
    %83 = vector.extract_strided_slice %79 {offsets = [2, 0], sizes = [1, 448], strides = [1, 1]} : vector<16x448xf32> to vector<1x448xf32>
    %84 = vector.extract_strided_slice %79 {offsets = [3, 0], sizes = [1, 448], strides = [1, 1]} : vector<16x448xf32> to vector<1x448xf32>
    %85 = arith.maximumf %83, %84 : vector<1x448xf32>
    %86 = vector.extract_strided_slice %79 {offsets = [4, 0], sizes = [1, 448], strides = [1, 1]} : vector<16x448xf32> to vector<1x448xf32>
    %87 = vector.extract_strided_slice %79 {offsets = [5, 0], sizes = [1, 448], strides = [1, 1]} : vector<16x448xf32> to vector<1x448xf32>
    %88 = arith.maximumf %86, %87 : vector<1x448xf32>
    %89 = vector.extract_strided_slice %79 {offsets = [6, 0], sizes = [1, 448], strides = [1, 1]} : vector<16x448xf32> to vector<1x448xf32>
    %90 = vector.extract_strided_slice %79 {offsets = [7, 0], sizes = [1, 448], strides = [1, 1]} : vector<16x448xf32> to vector<1x448xf32>
    %91 = arith.maximumf %89, %90 : vector<1x448xf32>
    %92 = vector.extract_strided_slice %79 {offsets = [8, 0], sizes = [1, 448], strides = [1, 1]} : vector<16x448xf32> to vector<1x448xf32>
    %93 = vector.extract_strided_slice %79 {offsets = [9, 0], sizes = [1, 448], strides = [1, 1]} : vector<16x448xf32> to vector<1x448xf32>
    %94 = arith.maximumf %92, %93 : vector<1x448xf32>
    %95 = vector.extract_strided_slice %79 {offsets = [10, 0], sizes = [1, 448], strides = [1, 1]} : vector<16x448xf32> to vector<1x448xf32>
    %96 = vector.extract_strided_slice %79 {offsets = [11, 0], sizes = [1, 448], strides = [1, 1]} : vector<16x448xf32> to vector<1x448xf32>
    %97 = arith.maximumf %95, %96 : vector<1x448xf32>
    %98 = vector.extract_strided_slice %79 {offsets = [12, 0], sizes = [1, 448], strides = [1, 1]} : vector<16x448xf32> to vector<1x448xf32>
    %99 = vector.extract_strided_slice %79 {offsets = [13, 0], sizes = [1, 448], strides = [1, 1]} : vector<16x448xf32> to vector<1x448xf32>
    %100 = arith.maximumf %98, %99 : vector<1x448xf32>
    %101 = tpu.concatenate %82, %85, %88, %91, %94, %97, %100 in 0 : vector<1x448xf32>, vector<1x448xf32>, vector<1x448xf32>, vector<1x448xf32>, vector<1x448xf32>, vector<1x448xf32>, vector<1x448xf32> -> vector<7x448xf32>
    %102 = vector.extract_strided_slice %101 {offsets = [0, 0], sizes = [7, 416], strides = [1, 1]} : vector<7x448xf32> to vector<7x416xf32>
    %103 = vector.extract_strided_slice %101 {offsets = [0, 32], sizes = [7, 416], strides = [1, 1]} : vector<7x448xf32> to vector<7x416xf32>
    %104 = arith.maximumf %102, %103 : vector<7x416xf32>
    %c0_83 = arith.constant 0 : index
    %c0_84 = arith.constant 0 : index
    %105 = vector.load %arg13[%c0_83, %c0_84] : memref<64x416xf32, #tpu.memory_space<vmem>>, vector<7x416xf32>
    tpu.vector_store %arg13[%c0_83, %c0_84], %104 {strides = array<i32>} : memref<64x416xf32, #tpu.memory_space<vmem>>, vector<7x416xf32>,
    %c16_85 = arith.constant 16 : index
    %c0_86 = arith.constant 0 : index
    %106 = vector.load %arg12[%c16_85, %c0_86] : memref<128x448xf32, #tpu.memory_space<vmem>>, vector<16x448xf32>
    %107 = vector.extract_strided_slice %106 {offsets = [0, 0], sizes = [1, 448], strides = [1, 1]} : vector<16x448xf32> to vector<1x448xf32>
    %108 = vector.extract_strided_slice %106 {offsets = [1, 0], sizes = [1, 448], strides = [1, 1]} : vector<16x448xf32> to vector<1x448xf32>
    %109 = arith.maximumf %107, %108 : vector<1x448xf32>
    %110 = vector.extract_strided_slice %106 {offsets = [2, 0], sizes = [1, 448], strides = [1, 1]} : vector<16x448xf32> to vector<1x448xf32>
    %111 = vector.extract_strided_slice %106 {offsets = [3, 0], sizes = [1, 448], strides = [1, 1]} : vector<16x448xf32> to vector<1x448xf32>
    %112 = arith.maximumf %110, %111 : vector<1x448xf32>
    %113 = vector.extract_strided_slice %106 {offsets = [4, 0], sizes = [1, 448], strides = [1, 1]} : vector<16x448xf32> to vector<1x448xf32>
    %114 = vector.extract_strided_slice %106 {offsets = [5, 0], sizes = [1, 448], strides = [1, 1]} : vector<16x448xf32> to vector<1x448xf32>
    %115 = arith.maximumf %113, %114 : vector<1x448xf32>
    %116 = vector.extract_strided_slice %106 {offsets = [6, 0], sizes = [1, 448], strides = [1, 1]} : vector<16x448xf32> to vector<1x448xf32>
    %117 = vector.extract_strided_slice %106 {offsets = [7, 0], sizes = [1, 448], strides = [1, 1]} : vector<16x448xf32> to vector<1x448xf32>
    %118 = arith.maximumf %116, %117 : vector<1x448xf32>
    %119 = vector.extract_strided_slice %106 {offsets = [8, 0], sizes = [1, 448], strides = [1, 1]} : vector<16x448xf32> to vector<1x448xf32>
    %120 = vector.extract_strided_slice %106 {offsets = [9, 0], sizes = [1, 448], strides = [1, 1]} : vector<16x448xf32> to vector<1x448xf32>
    %121 = arith.maximumf %119, %120 : vector<1x448xf32>
    %122 = vector.extract_strided_slice %106 {offsets = [10, 0], sizes = [1, 448], strides = [1, 1]} : vector<16x448xf32> to vector<1x448xf32>
    %123 = vector.extract_strided_slice %106 {offsets = [11, 0], sizes = [1, 448], strides = [1, 1]} : vector<16x448xf32> to vector<1x448xf32>
    %124 = arith.maximumf %122, %123 : vector<1x448xf32>
    %125 = vector.extract_strided_slice %106 {offsets = [12, 0], sizes = [1, 448], strides = [1, 1]} : vector<16x448xf32> to vector<1x448xf32>
    %126 = vector.extract_strided_slice %106 {offsets = [13, 0], sizes = [1, 448], strides = [1, 1]} : vector<16x448xf32> to vector<1x448xf32>
    %127 = arith.maximumf %125, %126 : vector<1x448xf32>
    %128 = tpu.concatenate %109, %112, %115, %118, %121, %124, %127 in 0 : vector<1x448xf32>, vector<1x448xf32>, vector<1x448xf32>, vector<1x448xf32>, vector<1x448xf32>, vector<1x448xf32>, vector<1x448xf32> -> vector<7x448xf32>
    %129 = vector.extract_strided_slice %128 {offsets = [0, 0], sizes = [7, 416], strides = [1, 1]} : vector<7x448xf32> to vector<7x416xf32>
    %130 = vector.extract_strided_slice %128 {offsets = [0, 32], sizes = [7, 416], strides = [1, 1]} : vector<7x448xf32> to vector<7x416xf32>
    %131 = arith.maximumf %129, %130 : vector<7x416xf32>
    %c8 = arith.constant 8 : index
    %c0_87 = arith.constant 0 : index
    %132 = vector.load %arg13[%c8, %c0_87] : memref<64x416xf32, #tpu.memory_space<vmem>>, vector<7x416xf32>
    tpu.vector_store %arg13[%c8, %c0_87], %131 {strides = array<i32>} : memref<64x416xf32, #tpu.memory_space<vmem>>, vector<7x416xf32>,
    %c32_88 = arith.constant 32 : index
    %c0_89 = arith.constant 0 : index
    %133 = vector.load %arg12[%c32_88, %c0_89] : memref<128x448xf32, #tpu.memory_space<vmem>>, vector<16x448xf32>
    %134 = vector.extract_strided_slice %133 {offsets = [0, 0], sizes = [1, 448], strides = [1, 1]} : vector<16x448xf32> to vector<1x448xf32>
    %135 = vector.extract_strided_slice %133 {offsets = [1, 0], sizes = [1, 448], strides = [1, 1]} : vector<16x448xf32> to vector<1x448xf32>
    %136 = arith.maximumf %134, %135 : vector<1x448xf32>
    %137 = vector.extract_strided_slice %133 {offsets = [2, 0], sizes = [1, 448], strides = [1, 1]} : vector<16x448xf32> to vector<1x448xf32>
    %138 = vector.extract_strided_slice %133 {offsets = [3, 0], sizes = [1, 448], strides = [1, 1]} : vector<16x448xf32> to vector<1x448xf32>
    %139 = arith.maximumf %137, %138 : vector<1x448xf32>
    %140 = vector.extract_strided_slice %133 {offsets = [4, 0], sizes = [1, 448], strides = [1, 1]} : vector<16x448xf32> to vector<1x448xf32>
    %141 = vector.extract_strided_slice %133 {offsets = [5, 0], sizes = [1, 448], strides = [1, 1]} : vector<16x448xf32> to vector<1x448xf32>
    %142 = arith.maximumf %140, %141 : vector<1x448xf32>
    %143 = vector.extract_strided_slice %133 {offsets = [6, 0], sizes = [1, 448], strides = [1, 1]} : vector<16x448xf32> to vector<1x448xf32>
    %144 = vector.extract_strided_slice %133 {offsets = [7, 0], sizes = [1, 448], strides = [1, 1]} : vector<16x448xf32> to vector<1x448xf32>
    %145 = arith.maximumf %143, %144 : vector<1x448xf32>
    %146 = vector.extract_strided_slice %133 {offsets = [8, 0], sizes = [1, 448], strides = [1, 1]} : vector<16x448xf32> to vector<1x448xf32>
    %147 = vector.extract_strided_slice %133 {offsets = [9, 0], sizes = [1, 448], strides = [1, 1]} : vector<16x448xf32> to vector<1x448xf32>
    %148 = arith.maximumf %146, %147 : vector<1x448xf32>
    %149 = vector.extract_strided_slice %133 {offsets = [10, 0], sizes = [1, 448], strides = [1, 1]} : vector<16x448xf32> to vector<1x448xf32>
    %150 = vector.extract_strided_slice %133 {offsets = [11, 0], sizes = [1, 448], strides = [1, 1]} : vector<16x448xf32> to vector<1x448xf32>
    %151 = arith.maximumf %149, %150 : vector<1x448xf32>
    %152 = vector.extract_strided_slice %133 {offsets = [12, 0], sizes = [1, 448], strides = [1, 1]} : vector<16x448xf32> to vector<1x448xf32>
    %153 = vector.extract_strided_slice %133 {offsets = [13, 0], sizes = [1, 448], strides = [1, 1]} : vector<16x448xf32> to vector<1x448xf32>
    %154 = arith.maximumf %152, %153 : vector<1x448xf32>
    %155 = tpu.concatenate %136, %139, %142, %145, %148, %151, %154 in 0 : vector<1x448xf32>, vector<1x448xf32>, vector<1x448xf32>, vector<1x448xf32>, vector<1x448xf32>, vector<1x448xf32>, vector<1x448xf32> -> vector<7x448xf32>
    %156 = vector.extract_strided_slice %155 {offsets = [0, 0], sizes = [7, 416], strides = [1, 1]} : vector<7x448xf32> to vector<7x416xf32>
    %157 = vector.extract_strided_slice %155 {offsets = [0, 32], sizes = [7, 416], strides = [1, 1]} : vector<7x448xf32> to vector<7x416xf32>
    %158 = arith.maximumf %156, %157 : vector<7x416xf32>
    %c16_90 = arith.constant 16 : index
    %c0_91 = arith.constant 0 : index
    %159 = vector.load %arg13[%c16_90, %c0_91] : memref<64x416xf32, #tpu.memory_space<vmem>>, vector<7x416xf32>
    tpu.vector_store %arg13[%c16_90, %c0_91], %158 {strides = array<i32>} : memref<64x416xf32, #tpu.memory_space<vmem>>, vector<7x416xf32>,
    %c48_92 = arith.constant 48 : index
    %c0_93 = arith.constant 0 : index
    %160 = vector.load %arg12[%c48_92, %c0_93] : memref<128x448xf32, #tpu.memory_space<vmem>>, vector<16x448xf32>
    %161 = vector.extract_strided_slice %160 {offsets = [0, 0], sizes = [1, 448], strides = [1, 1]} : vector<16x448xf32> to vector<1x448xf32>
    %162 = vector.extract_strided_slice %160 {offsets = [1, 0], sizes = [1, 448], strides = [1, 1]} : vector<16x448xf32> to vector<1x448xf32>
    %163 = arith.maximumf %161, %162 : vector<1x448xf32>
    %164 = vector.extract_strided_slice %160 {offsets = [2, 0], sizes = [1, 448], strides = [1, 1]} : vector<16x448xf32> to vector<1x448xf32>
    %165 = vector.extract_strided_slice %160 {offsets = [3, 0], sizes = [1, 448], strides = [1, 1]} : vector<16x448xf32> to vector<1x448xf32>
    %166 = arith.maximumf %164, %165 : vector<1x448xf32>
    %167 = vector.extract_strided_slice %160 {offsets = [4, 0], sizes = [1, 448], strides = [1, 1]} : vector<16x448xf32> to vector<1x448xf32>
    %168 = vector.extract_strided_slice %160 {offsets = [5, 0], sizes = [1, 448], strides = [1, 1]} : vector<16x448xf32> to vector<1x448xf32>
    %169 = arith.maximumf %167, %168 : vector<1x448xf32>
    %170 = vector.extract_strided_slice %160 {offsets = [6, 0], sizes = [1, 448], strides = [1, 1]} : vector<16x448xf32> to vector<1x448xf32>
    %171 = vector.extract_strided_slice %160 {offsets = [7, 0], sizes = [1, 448], strides = [1, 1]} : vector<16x448xf32> to vector<1x448xf32>
    %172 = arith.maximumf %170, %171 : vector<1x448xf32>
    %173 = vector.extract_strided_slice %160 {offsets = [8, 0], sizes = [1, 448], strides = [1, 1]} : vector<16x448xf32> to vector<1x448xf32>
    %174 = vector.extract_strided_slice %160 {offsets = [9, 0], sizes = [1, 448], strides = [1, 1]} : vector<16x448xf32> to vector<1x448xf32>
    %175 = arith.maximumf %173, %174 : vector<1x448xf32>
    %176 = vector.extract_strided_slice %160 {offsets = [10, 0], sizes = [1, 448], strides = [1, 1]} : vector<16x448xf32> to vector<1x448xf32>
    %177 = vector.extract_strided_slice %160 {offsets = [11, 0], sizes = [1, 448], strides = [1, 1]} : vector<16x448xf32> to vector<1x448xf32>
    %178 = arith.maximumf %176, %177 : vector<1x448xf32>
    %179 = vector.extract_strided_slice %160 {offsets = [12, 0], sizes = [1, 448], strides = [1, 1]} : vector<16x448xf32> to vector<1x448xf32>
    %180 = vector.extract_strided_slice %160 {offsets = [13, 0], sizes = [1, 448], strides = [1, 1]} : vector<16x448xf32> to vector<1x448xf32>
    %181 = arith.maximumf %179, %180 : vector<1x448xf32>
    %182 = tpu.concatenate %163, %166, %169, %172, %175, %178, %181 in 0 : vector<1x448xf32>, vector<1x448xf32>, vector<1x448xf32>, vector<1x448xf32>, vector<1x448xf32>, vector<1x448xf32>, vector<1x448xf32> -> vector<7x448xf32>
    %183 = vector.extract_strided_slice %182 {offsets = [0, 0], sizes = [7, 416], strides = [1, 1]} : vector<7x448xf32> to vector<7x416xf32>
    %184 = vector.extract_strided_slice %182 {offsets = [0, 32], sizes = [7, 416], strides = [1, 1]} : vector<7x448xf32> to vector<7x416xf32>
    %185 = arith.maximumf %183, %184 : vector<7x416xf32>
    %c24 = arith.constant 24 : index
    %c0_94 = arith.constant 0 : index
    %186 = vector.load %arg13[%c24, %c0_94] : memref<64x416xf32, #tpu.memory_space<vmem>>, vector<7x416xf32>
    tpu.vector_store %arg13[%c24, %c0_94], %185 {strides = array<i32>} : memref<64x416xf32, #tpu.memory_space<vmem>>, vector<7x416xf32>,
    %c64_95 = arith.constant 64 : index
    %c0_96 = arith.constant 0 : index
    %187 = vector.load %arg12[%c64_95, %c0_96] : memref<128x448xf32, #tpu.memory_space<vmem>>, vector<16x448xf32>
    %188 = vector.extract_strided_slice %187 {offsets = [0, 0], sizes = [1, 448], strides = [1, 1]} : vector<16x448xf32> to vector<1x448xf32>
    %189 = vector.extract_strided_slice %187 {offsets = [1, 0], sizes = [1, 448], strides = [1, 1]} : vector<16x448xf32> to vector<1x448xf32>
    %190 = arith.maximumf %188, %189 : vector<1x448xf32>
    %191 = vector.extract_strided_slice %187 {offsets = [2, 0], sizes = [1, 448], strides = [1, 1]} : vector<16x448xf32> to vector<1x448xf32>
    %192 = vector.extract_strided_slice %187 {offsets = [3, 0], sizes = [1, 448], strides = [1, 1]} : vector<16x448xf32> to vector<1x448xf32>
    %193 = arith.maximumf %191, %192 : vector<1x448xf32>
    %194 = vector.extract_strided_slice %187 {offsets = [4, 0], sizes = [1, 448], strides = [1, 1]} : vector<16x448xf32> to vector<1x448xf32>
    %195 = vector.extract_strided_slice %187 {offsets = [5, 0], sizes = [1, 448], strides = [1, 1]} : vector<16x448xf32> to vector<1x448xf32>
    %196 = arith.maximumf %194, %195 : vector<1x448xf32>
    %197 = vector.extract_strided_slice %187 {offsets = [6, 0], sizes = [1, 448], strides = [1, 1]} : vector<16x448xf32> to vector<1x448xf32>
    %198 = vector.extract_strided_slice %187 {offsets = [7, 0], sizes = [1, 448], strides = [1, 1]} : vector<16x448xf32> to vector<1x448xf32>
    %199 = arith.maximumf %197, %198 : vector<1x448xf32>
    %200 = vector.extract_strided_slice %187 {offsets = [8, 0], sizes = [1, 448], strides = [1, 1]} : vector<16x448xf32> to vector<1x448xf32>
    %201 = vector.extract_strided_slice %187 {offsets = [9, 0], sizes = [1, 448], strides = [1, 1]} : vector<16x448xf32> to vector<1x448xf32>
    %202 = arith.maximumf %200, %201 : vector<1x448xf32>
    %203 = vector.extract_strided_slice %187 {offsets = [10, 0], sizes = [1, 448], strides = [1, 1]} : vector<16x448xf32> to vector<1x448xf32>
    %204 = vector.extract_strided_slice %187 {offsets = [11, 0], sizes = [1, 448], strides = [1, 1]} : vector<16x448xf32> to vector<1x448xf32>
    %205 = arith.maximumf %203, %204 : vector<1x448xf32>
    %206 = vector.extract_strided_slice %187 {offsets = [12, 0], sizes = [1, 448], strides = [1, 1]} : vector<16x448xf32> to vector<1x448xf32>
    %207 = vector.extract_strided_slice %187 {offsets = [13, 0], sizes = [1, 448], strides = [1, 1]} : vector<16x448xf32> to vector<1x448xf32>
    %208 = arith.maximumf %206, %207 : vector<1x448xf32>
    %209 = tpu.concatenate %190, %193, %196, %199, %202, %205, %208 in 0 : vector<1x448xf32>, vector<1x448xf32>, vector<1x448xf32>, vector<1x448xf32>, vector<1x448xf32>, vector<1x448xf32>, vector<1x448xf32> -> vector<7x448xf32>
    %210 = vector.extract_strided_slice %209 {offsets = [0, 0], sizes = [7, 416], strides = [1, 1]} : vector<7x448xf32> to vector<7x416xf32>
    %211 = vector.extract_strided_slice %209 {offsets = [0, 32], sizes = [7, 416], strides = [1, 1]} : vector<7x448xf32> to vector<7x416xf32>
    %212 = arith.maximumf %210, %211 : vector<7x416xf32>
    %c32_97 = arith.constant 32 : index
    %c0_98 = arith.constant 0 : index
    %213 = vector.load %arg13[%c32_97, %c0_98] : memref<64x416xf32, #tpu.memory_space<vmem>>, vector<7x416xf32>
    tpu.vector_store %arg13[%c32_97, %c0_98], %212 {strides = array<i32>} : memref<64x416xf32, #tpu.memory_space<vmem>>, vector<7x416xf32>,
    %c80_99 = arith.constant 80 : index
    %c0_100 = arith.constant 0 : index
    %214 = vector.load %arg12[%c80_99, %c0_100] : memref<128x448xf32, #tpu.memory_space<vmem>>, vector<16x448xf32>
    %215 = vector.extract_strided_slice %214 {offsets = [0, 0], sizes = [1, 448], strides = [1, 1]} : vector<16x448xf32> to vector<1x448xf32>
    %216 = vector.extract_strided_slice %214 {offsets = [1, 0], sizes = [1, 448], strides = [1, 1]} : vector<16x448xf32> to vector<1x448xf32>
    %217 = arith.maximumf %215, %216 : vector<1x448xf32>
    %218 = vector.extract_strided_slice %214 {offsets = [2, 0], sizes = [1, 448], strides = [1, 1]} : vector<16x448xf32> to vector<1x448xf32>
    %219 = vector.extract_strided_slice %214 {offsets = [3, 0], sizes = [1, 448], strides = [1, 1]} : vector<16x448xf32> to vector<1x448xf32>
    %220 = arith.maximumf %218, %219 : vector<1x448xf32>
    %221 = vector.extract_strided_slice %214 {offsets = [4, 0], sizes = [1, 448], strides = [1, 1]} : vector<16x448xf32> to vector<1x448xf32>
    %222 = vector.extract_strided_slice %214 {offsets = [5, 0], sizes = [1, 448], strides = [1, 1]} : vector<16x448xf32> to vector<1x448xf32>
    %223 = arith.maximumf %221, %222 : vector<1x448xf32>
    %224 = vector.extract_strided_slice %214 {offsets = [6, 0], sizes = [1, 448], strides = [1, 1]} : vector<16x448xf32> to vector<1x448xf32>
    %225 = vector.extract_strided_slice %214 {offsets = [7, 0], sizes = [1, 448], strides = [1, 1]} : vector<16x448xf32> to vector<1x448xf32>
    %226 = arith.maximumf %224, %225 : vector<1x448xf32>
    %227 = vector.extract_strided_slice %214 {offsets = [8, 0], sizes = [1, 448], strides = [1, 1]} : vector<16x448xf32> to vector<1x448xf32>
    %228 = vector.extract_strided_slice %214 {offsets = [9, 0], sizes = [1, 448], strides = [1, 1]} : vector<16x448xf32> to vector<1x448xf32>
    %229 = arith.maximumf %227, %228 : vector<1x448xf32>
    %230 = vector.extract_strided_slice %214 {offsets = [10, 0], sizes = [1, 448], strides = [1, 1]} : vector<16x448xf32> to vector<1x448xf32>
    %231 = vector.extract_strided_slice %214 {offsets = [11, 0], sizes = [1, 448], strides = [1, 1]} : vector<16x448xf32> to vector<1x448xf32>
    %232 = arith.maximumf %230, %231 : vector<1x448xf32>
    %233 = vector.extract_strided_slice %214 {offsets = [12, 0], sizes = [1, 448], strides = [1, 1]} : vector<16x448xf32> to vector<1x448xf32>
    %234 = vector.extract_strided_slice %214 {offsets = [13, 0], sizes = [1, 448], strides = [1, 1]} : vector<16x448xf32> to vector<1x448xf32>
    %235 = arith.maximumf %233, %234 : vector<1x448xf32>
    %236 = tpu.concatenate %217, %220, %223, %226, %229, %232, %235 in 0 : vector<1x448xf32>, vector<1x448xf32>, vector<1x448xf32>, vector<1x448xf32>, vector<1x448xf32>, vector<1x448xf32>, vector<1x448xf32> -> vector<7x448xf32>
    %237 = vector.extract_strided_slice %236 {offsets = [0, 0], sizes = [7, 416], strides = [1, 1]} : vector<7x448xf32> to vector<7x416xf32>
    %238 = vector.extract_strided_slice %236 {offsets = [0, 32], sizes = [7, 416], strides = [1, 1]} : vector<7x448xf32> to vector<7x416xf32>
    %239 = arith.maximumf %237, %238 : vector<7x416xf32>
    %c40 = arith.constant 40 : index
    %c0_101 = arith.constant 0 : index
    %240 = vector.load %arg13[%c40, %c0_101] : memref<64x416xf32, #tpu.memory_space<vmem>>, vector<7x416xf32>
    tpu.vector_store %arg13[%c40, %c0_101], %239 {strides = array<i32>} : memref<64x416xf32, #tpu.memory_space<vmem>>, vector<7x416xf32>,
    %c96_102 = arith.constant 96 : index
    %c0_103 = arith.constant 0 : index
    %241 = vector.load %arg12[%c96_102, %c0_103] : memref<128x448xf32, #tpu.memory_space<vmem>>, vector<16x448xf32>
    %242 = vector.extract_strided_slice %241 {offsets = [0, 0], sizes = [1, 448], strides = [1, 1]} : vector<16x448xf32> to vector<1x448xf32>
    %243 = vector.extract_strided_slice %241 {offsets = [1, 0], sizes = [1, 448], strides = [1, 1]} : vector<16x448xf32> to vector<1x448xf32>
    %244 = arith.maximumf %242, %243 : vector<1x448xf32>
    %245 = vector.extract_strided_slice %241 {offsets = [2, 0], sizes = [1, 448], strides = [1, 1]} : vector<16x448xf32> to vector<1x448xf32>
    %246 = vector.extract_strided_slice %241 {offsets = [3, 0], sizes = [1, 448], strides = [1, 1]} : vector<16x448xf32> to vector<1x448xf32>
    %247 = arith.maximumf %245, %246 : vector<1x448xf32>
    %248 = vector.extract_strided_slice %241 {offsets = [4, 0], sizes = [1, 448], strides = [1, 1]} : vector<16x448xf32> to vector<1x448xf32>
    %249 = vector.extract_strided_slice %241 {offsets = [5, 0], sizes = [1, 448], strides = [1, 1]} : vector<16x448xf32> to vector<1x448xf32>
    %250 = arith.maximumf %248, %249 : vector<1x448xf32>
    %251 = vector.extract_strided_slice %241 {offsets = [6, 0], sizes = [1, 448], strides = [1, 1]} : vector<16x448xf32> to vector<1x448xf32>
    %252 = vector.extract_strided_slice %241 {offsets = [7, 0], sizes = [1, 448], strides = [1, 1]} : vector<16x448xf32> to vector<1x448xf32>
    %253 = arith.maximumf %251, %252 : vector<1x448xf32>
    %254 = vector.extract_strided_slice %241 {offsets = [8, 0], sizes = [1, 448], strides = [1, 1]} : vector<16x448xf32> to vector<1x448xf32>
    %255 = vector.extract_strided_slice %241 {offsets = [9, 0], sizes = [1, 448], strides = [1, 1]} : vector<16x448xf32> to vector<1x448xf32>
    %256 = arith.maximumf %254, %255 : vector<1x448xf32>
    %257 = vector.extract_strided_slice %241 {offsets = [10, 0], sizes = [1, 448], strides = [1, 1]} : vector<16x448xf32> to vector<1x448xf32>
    %258 = vector.extract_strided_slice %241 {offsets = [11, 0], sizes = [1, 448], strides = [1, 1]} : vector<16x448xf32> to vector<1x448xf32>
    %259 = arith.maximumf %257, %258 : vector<1x448xf32>
    %260 = vector.extract_strided_slice %241 {offsets = [12, 0], sizes = [1, 448], strides = [1, 1]} : vector<16x448xf32> to vector<1x448xf32>
    %261 = vector.extract_strided_slice %241 {offsets = [13, 0], sizes = [1, 448], strides = [1, 1]} : vector<16x448xf32> to vector<1x448xf32>
    %262 = arith.maximumf %260, %261 : vector<1x448xf32>
    %263 = tpu.concatenate %244, %247, %250, %253, %256, %259, %262 in 0 : vector<1x448xf32>, vector<1x448xf32>, vector<1x448xf32>, vector<1x448xf32>, vector<1x448xf32>, vector<1x448xf32>, vector<1x448xf32> -> vector<7x448xf32>
    %264 = vector.extract_strided_slice %263 {offsets = [0, 0], sizes = [7, 416], strides = [1, 1]} : vector<7x448xf32> to vector<7x416xf32>
    %265 = vector.extract_strided_slice %263 {offsets = [0, 32], sizes = [7, 416], strides = [1, 1]} : vector<7x448xf32> to vector<7x416xf32>
    %266 = arith.maximumf %264, %265 : vector<7x416xf32>
    %c48_104 = arith.constant 48 : index
    %c0_105 = arith.constant 0 : index
    %267 = vector.load %arg13[%c48_104, %c0_105] : memref<64x416xf32, #tpu.memory_space<vmem>>, vector<7x416xf32>
    tpu.vector_store %arg13[%c48_104, %c0_105], %266 {strides = array<i32>} : memref<64x416xf32, #tpu.memory_space<vmem>>, vector<7x416xf32>,
    %c112_106 = arith.constant 112 : index
    %c0_107 = arith.constant 0 : index
    %268 = vector.load %arg12[%c112_106, %c0_107] : memref<128x448xf32, #tpu.memory_space<vmem>>, vector<16x448xf32>
    %269 = vector.extract_strided_slice %268 {offsets = [0, 0], sizes = [1, 448], strides = [1, 1]} : vector<16x448xf32> to vector<1x448xf32>
    %270 = vector.extract_strided_slice %268 {offsets = [1, 0], sizes = [1, 448], strides = [1, 1]} : vector<16x448xf32> to vector<1x448xf32>
    %271 = arith.maximumf %269, %270 : vector<1x448xf32>
    %272 = vector.extract_strided_slice %268 {offsets = [2, 0], sizes = [1, 448], strides = [1, 1]} : vector<16x448xf32> to vector<1x448xf32>
    %273 = vector.extract_strided_slice %268 {offsets = [3, 0], sizes = [1, 448], strides = [1, 1]} : vector<16x448xf32> to vector<1x448xf32>
    %274 = arith.maximumf %272, %273 : vector<1x448xf32>
    %275 = vector.extract_strided_slice %268 {offsets = [4, 0], sizes = [1, 448], strides = [1, 1]} : vector<16x448xf32> to vector<1x448xf32>
    %276 = vector.extract_strided_slice %268 {offsets = [5, 0], sizes = [1, 448], strides = [1, 1]} : vector<16x448xf32> to vector<1x448xf32>
    %277 = arith.maximumf %275, %276 : vector<1x448xf32>
    %278 = vector.extract_strided_slice %268 {offsets = [6, 0], sizes = [1, 448], strides = [1, 1]} : vector<16x448xf32> to vector<1x448xf32>
    %279 = vector.extract_strided_slice %268 {offsets = [7, 0], sizes = [1, 448], strides = [1, 1]} : vector<16x448xf32> to vector<1x448xf32>
    %280 = arith.maximumf %278, %279 : vector<1x448xf32>
    %281 = vector.extract_strided_slice %268 {offsets = [8, 0], sizes = [1, 448], strides = [1, 1]} : vector<16x448xf32> to vector<1x448xf32>
    %282 = vector.extract_strided_slice %268 {offsets = [9, 0], sizes = [1, 448], strides = [1, 1]} : vector<16x448xf32> to vector<1x448xf32>
    %283 = arith.maximumf %281, %282 : vector<1x448xf32>
    %284 = vector.extract_strided_slice %268 {offsets = [10, 0], sizes = [1, 448], strides = [1, 1]} : vector<16x448xf32> to vector<1x448xf32>
    %285 = vector.extract_strided_slice %268 {offsets = [11, 0], sizes = [1, 448], strides = [1, 1]} : vector<16x448xf32> to vector<1x448xf32>
    %286 = arith.maximumf %284, %285 : vector<1x448xf32>
    %287 = vector.extract_strided_slice %268 {offsets = [12, 0], sizes = [1, 448], strides = [1, 1]} : vector<16x448xf32> to vector<1x448xf32>
    %288 = vector.extract_strided_slice %268 {offsets = [13, 0], sizes = [1, 448], strides = [1, 1]} : vector<16x448xf32> to vector<1x448xf32>
    %289 = arith.maximumf %287, %288 : vector<1x448xf32>
    %290 = tpu.concatenate %271, %274, %277, %280, %283, %286, %289 in 0 : vector<1x448xf32>, vector<1x448xf32>, vector<1x448xf32>, vector<1x448xf32>, vector<1x448xf32>, vector<1x448xf32>, vector<1x448xf32> -> vector<7x448xf32>
    %291 = vector.extract_strided_slice %290 {offsets = [0, 0], sizes = [7, 416], strides = [1, 1]} : vector<7x448xf32> to vector<7x416xf32>
    %292 = vector.extract_strided_slice %290 {offsets = [0, 32], sizes = [7, 416], strides = [1, 1]} : vector<7x448xf32> to vector<7x416xf32>
    %293 = arith.maximumf %291, %292 : vector<7x416xf32>
    %c56 = arith.constant 56 : index
    %c0_108 = arith.constant 0 : index
    %294 = vector.load %arg13[%c56, %c0_108] : memref<64x416xf32, #tpu.memory_space<vmem>>, vector<7x416xf32>
    tpu.vector_store %arg13[%c56, %c0_108], %293 {strides = array<i32>} : memref<64x416xf32, #tpu.memory_space<vmem>>, vector<7x416xf32>,
    %c0_109 = arith.constant 0 : index
    %c0_110 = arith.constant 0 : index
    %295 = vector.load %arg13[%c0_109, %c0_110] : memref<64x416xf32, #tpu.memory_space<vmem>>, vector<6x416xf32>
    %296 = vector.extract_strided_slice %295 {offsets = [0, 0], sizes = [2, 416], strides = [1, 1]} : vector<6x416xf32> to vector<2x416xf32>
    %297 = vector.extract_strided_slice %295 {offsets = [1, 0], sizes = [2, 416], strides = [1, 1]} : vector<6x416xf32> to vector<2x416xf32>
    %298 = vector.extract_strided_slice %295 {offsets = [2, 0], sizes = [2, 416], strides = [1, 1]} : vector<6x416xf32> to vector<2x416xf32>
    %299 = vector.extract_strided_slice %295 {offsets = [3, 0], sizes = [2, 416], strides = [1, 1]} : vector<6x416xf32> to vector<2x416xf32>
    %300 = vector.extract_strided_slice %295 {offsets = [4, 0], sizes = [2, 416], strides = [1, 1]} : vector<6x416xf32> to vector<2x416xf32>
    %301 = tpu.concatenate %296, %297, %298, %299, %300 in 1 : vector<2x416xf32>, vector<2x416xf32>, vector<2x416xf32>, vector<2x416xf32>, vector<2x416xf32> -> vector<2x2080xf32>
    %c8_111 = arith.constant 8 : index
    %c0_112 = arith.constant 0 : index
    %302 = vector.load %arg13[%c8_111, %c0_112] : memref<64x416xf32, #tpu.memory_space<vmem>>, vector<6x416xf32>
    %303 = vector.extract_strided_slice %302 {offsets = [0, 0], sizes = [2, 416], strides = [1, 1]} : vector<6x416xf32> to vector<2x416xf32>
    %304 = vector.extract_strided_slice %302 {offsets = [1, 0], sizes = [2, 416], strides = [1, 1]} : vector<6x416xf32> to vector<2x416xf32>
    %305 = vector.extract_strided_slice %302 {offsets = [2, 0], sizes = [2, 416], strides = [1, 1]} : vector<6x416xf32> to vector<2x416xf32>
    %306 = vector.extract_strided_slice %302 {offsets = [3, 0], sizes = [2, 416], strides = [1, 1]} : vector<6x416xf32> to vector<2x416xf32>
    %307 = vector.extract_strided_slice %302 {offsets = [4, 0], sizes = [2, 416], strides = [1, 1]} : vector<6x416xf32> to vector<2x416xf32>
    %308 = tpu.concatenate %303, %304, %305, %306, %307 in 1 : vector<2x416xf32>, vector<2x416xf32>, vector<2x416xf32>, vector<2x416xf32>, vector<2x416xf32> -> vector<2x2080xf32>
    %c16_113 = arith.constant 16 : index
    %c0_114 = arith.constant 0 : index
    %309 = vector.load %arg13[%c16_113, %c0_114] : memref<64x416xf32, #tpu.memory_space<vmem>>, vector<6x416xf32>
    %310 = vector.extract_strided_slice %309 {offsets = [0, 0], sizes = [2, 416], strides = [1, 1]} : vector<6x416xf32> to vector<2x416xf32>
    %311 = vector.extract_strided_slice %309 {offsets = [1, 0], sizes = [2, 416], strides = [1, 1]} : vector<6x416xf32> to vector<2x416xf32>
    %312 = vector.extract_strided_slice %309 {offsets = [2, 0], sizes = [2, 416], strides = [1, 1]} : vector<6x416xf32> to vector<2x416xf32>
    %313 = vector.extract_strided_slice %309 {offsets = [3, 0], sizes = [2, 416], strides = [1, 1]} : vector<6x416xf32> to vector<2x416xf32>
    %314 = vector.extract_strided_slice %309 {offsets = [4, 0], sizes = [2, 416], strides = [1, 1]} : vector<6x416xf32> to vector<2x416xf32>
    %315 = tpu.concatenate %310, %311, %312, %313, %314 in 1 : vector<2x416xf32>, vector<2x416xf32>, vector<2x416xf32>, vector<2x416xf32>, vector<2x416xf32> -> vector<2x2080xf32>
    %c24_115 = arith.constant 24 : index
    %c0_116 = arith.constant 0 : index
    %316 = vector.load %arg13[%c24_115, %c0_116] : memref<64x416xf32, #tpu.memory_space<vmem>>, vector<6x416xf32>
    %317 = vector.extract_strided_slice %316 {offsets = [0, 0], sizes = [2, 416], strides = [1, 1]} : vector<6x416xf32> to vector<2x416xf32>
    %318 = vector.extract_strided_slice %316 {offsets = [1, 0], sizes = [2, 416], strides = [1, 1]} : vector<6x416xf32> to vector<2x416xf32>
    %319 = vector.extract_strided_slice %316 {offsets = [2, 0], sizes = [2, 416], strides = [1, 1]} : vector<6x416xf32> to vector<2x416xf32>
    %320 = vector.extract_strided_slice %316 {offsets = [3, 0], sizes = [2, 416], strides = [1, 1]} : vector<6x416xf32> to vector<2x416xf32>
    %321 = vector.extract_strided_slice %316 {offsets = [4, 0], sizes = [2, 416], strides = [1, 1]} : vector<6x416xf32> to vector<2x416xf32>
    %322 = tpu.concatenate %317, %318, %319, %320, %321 in 1 : vector<2x416xf32>, vector<2x416xf32>, vector<2x416xf32>, vector<2x416xf32>, vector<2x416xf32> -> vector<2x2080xf32>
    %323 = tpu.concatenate %301, %308, %315, %322 in 0 : vector<2x2080xf32>, vector<2x2080xf32>, vector<2x2080xf32>, vector<2x2080xf32> -> vector<8x2080xf32>
    %324 = arith.truncf %323 : vector<8x2080xf32> to vector<8x2080xbf16>
    %c0_117 = arith.constant 0 : index
    %c0_118 = arith.constant 0 : index
    %325 = vector.load %arg14[%c0_117, %c0_118] : memref<16x2080xbf16, #tpu.memory_space<vmem>>, vector<8x2080xbf16>
    tpu.vector_store %arg14[%c0_117, %c0_118], %324 {strides = array<i32>} : memref<16x2080xbf16, #tpu.memory_space<vmem>>, vector<8x2080xbf16>,
    %c32_119 = arith.constant 32 : index
    %c0_120 = arith.constant 0 : index
    %326 = vector.load %arg13[%c32_119, %c0_120] : memref<64x416xf32, #tpu.memory_space<vmem>>, vector<6x416xf32>
    %327 = vector.extract_strided_slice %326 {offsets = [0, 0], sizes = [2, 416], strides = [1, 1]} : vector<6x416xf32> to vector<2x416xf32>
    %328 = vector.extract_strided_slice %326 {offsets = [1, 0], sizes = [2, 416], strides = [1, 1]} : vector<6x416xf32> to vector<2x416xf32>
    %329 = vector.extract_strided_slice %326 {offsets = [2, 0], sizes = [2, 416], strides = [1, 1]} : vector<6x416xf32> to vector<2x416xf32>
    %330 = vector.extract_strided_slice %326 {offsets = [3, 0], sizes = [2, 416], strides = [1, 1]} : vector<6x416xf32> to vector<2x416xf32>
    %331 = vector.extract_strided_slice %326 {offsets = [4, 0], sizes = [2, 416], strides = [1, 1]} : vector<6x416xf32> to vector<2x416xf32>
    %332 = tpu.concatenate %327, %328, %329, %330, %331 in 1 : vector<2x416xf32>, vector<2x416xf32>, vector<2x416xf32>, vector<2x416xf32>, vector<2x416xf32> -> vector<2x2080xf32>
    %c40_121 = arith.constant 40 : index
    %c0_122 = arith.constant 0 : index
    %333 = vector.load %arg13[%c40_121, %c0_122] : memref<64x416xf32, #tpu.memory_space<vmem>>, vector<6x416xf32>
    %334 = vector.extract_strided_slice %333 {offsets = [0, 0], sizes = [2, 416], strides = [1, 1]} : vector<6x416xf32> to vector<2x416xf32>
    %335 = vector.extract_strided_slice %333 {offsets = [1, 0], sizes = [2, 416], strides = [1, 1]} : vector<6x416xf32> to vector<2x416xf32>
    %336 = vector.extract_strided_slice %333 {offsets = [2, 0], sizes = [2, 416], strides = [1, 1]} : vector<6x416xf32> to vector<2x416xf32>
    %337 = vector.extract_strided_slice %333 {offsets = [3, 0], sizes = [2, 416], strides = [1, 1]} : vector<6x416xf32> to vector<2x416xf32>
    %338 = vector.extract_strided_slice %333 {offsets = [4, 0], sizes = [2, 416], strides = [1, 1]} : vector<6x416xf32> to vector<2x416xf32>
    %339 = tpu.concatenate %334, %335, %336, %337, %338 in 1 : vector<2x416xf32>, vector<2x416xf32>, vector<2x416xf32>, vector<2x416xf32>, vector<2x416xf32> -> vector<2x2080xf32>
    %c48_123 = arith.constant 48 : index
    %c0_124 = arith.constant 0 : index
    %340 = vector.load %arg13[%c48_123, %c0_124] : memref<64x416xf32, #tpu.memory_space<vmem>>, vector<6x416xf32>
    %341 = vector.extract_strided_slice %340 {offsets = [0, 0], sizes = [2, 416], strides = [1, 1]} : vector<6x416xf32> to vector<2x416xf32>
    %342 = vector.extract_strided_slice %340 {offsets = [1, 0], sizes = [2, 416], strides = [1, 1]} : vector<6x416xf32> to vector<2x416xf32>
    %343 = vector.extract_strided_slice %340 {offsets = [2, 0], sizes = [2, 416], strides = [1, 1]} : vector<6x416xf32> to vector<2x416xf32>
    %344 = vector.extract_strided_slice %340 {offsets = [3, 0], sizes = [2, 416], strides = [1, 1]} : vector<6x416xf32> to vector<2x416xf32>
    %345 = vector.extract_strided_slice %340 {offsets = [4, 0], sizes = [2, 416], strides = [1, 1]} : vector<6x416xf32> to vector<2x416xf32>
    %346 = tpu.concatenate %341, %342, %343, %344, %345 in 1 : vector<2x416xf32>, vector<2x416xf32>, vector<2x416xf32>, vector<2x416xf32>, vector<2x416xf32> -> vector<2x2080xf32>
    %c56_125 = arith.constant 56 : index
    %c0_126 = arith.constant 0 : index
    %347 = vector.load %arg13[%c56_125, %c0_126] : memref<64x416xf32, #tpu.memory_space<vmem>>, vector<6x416xf32>
    %348 = vector.extract_strided_slice %347 {offsets = [0, 0], sizes = [2, 416], strides = [1, 1]} : vector<6x416xf32> to vector<2x416xf32>
    %349 = vector.extract_strided_slice %347 {offsets = [1, 0], sizes = [2, 416], strides = [1, 1]} : vector<6x416xf32> to vector<2x416xf32>
    %350 = vector.extract_strided_slice %347 {offsets = [2, 0], sizes = [2, 416], strides = [1, 1]} : vector<6x416xf32> to vector<2x416xf32>
    %351 = vector.extract_strided_slice %347 {offsets = [3, 0], sizes = [2, 416], strides = [1, 1]} : vector<6x416xf32> to vector<2x416xf32>
    %352 = vector.extract_strided_slice %347 {offsets = [4, 0], sizes = [2, 416], strides = [1, 1]} : vector<6x416xf32> to vector<2x416xf32>
    %353 = tpu.concatenate %348, %349, %350, %351, %352 in 1 : vector<2x416xf32>, vector<2x416xf32>, vector<2x416xf32>, vector<2x416xf32>, vector<2x416xf32> -> vector<2x2080xf32>
    %354 = tpu.concatenate %332, %339, %346, %353 in 0 : vector<2x2080xf32>, vector<2x2080xf32>, vector<2x2080xf32>, vector<2x2080xf32> -> vector<8x2080xf32>
    %355 = arith.truncf %354 : vector<8x2080xf32> to vector<8x2080xbf16>
    %c8_127 = arith.constant 8 : index
    %c0_128 = arith.constant 0 : index
    %356 = vector.load %arg14[%c8_127, %c0_128] : memref<16x2080xbf16, #tpu.memory_space<vmem>>, vector<8x2080xbf16>
    tpu.vector_store %arg14[%c8_127, %c0_128], %355 {strides = array<i32>} : memref<16x2080xbf16, #tpu.memory_space<vmem>>, vector<8x2080xbf16>,
    %c0_129 = arith.constant 0 : index
    %c0_130 = arith.constant 0 : index
    %357 = vector.load %arg14[%c0_129, %c0_130] : memref<16x2080xbf16, #tpu.memory_space<vmem>>, vector<16x2080xbf16>
    %c0_131 = arith.constant 0 : index
    %c0_132 = arith.constant 0 : index
    %358 = vector.load %arg4[%c0_131, %c0_132] : memref<2080x128xbf16, #tpu.memory_space<vmem>>, vector<2080x128xbf16>
    %cst_133 = arith.constant dense<0.000000e+00> : vector<16x128xf32>
    %359 = tpu.matmul %357, %358, %cst_133 {dimension_numbers = #tpu.dot_dimension_numbers<[1], [0], [0], [1], [0, 0, 1, 1], [], []>} : vector<16x2080xbf16>, vector<2080x128xbf16>, vector<16x128xf32> -> vector<16x128xf32>
    %c0_134 = arith.constant 0 : index
    %c0_135 = arith.constant 0 : index
    %360 = vector.load %arg5[%c0_134, %c0_135] : memref<1x128xf32, #tpu.memory_space<vmem>>, vector<1x128xf32>
    %361 = vector.broadcast %360 : vector<1x128xf32> to vector<16x128xf32>
    %362 = arith.addf %359, %361 : vector<16x128xf32>
    %363 = vector.extract_strided_slice %362 {offsets = [0, 0], sizes = [16, 64], strides = [1, 1]} : vector<16x128xf32> to vector<16x64xf32>
    %364 = vector.extract_strided_slice %362 {offsets = [0, 64], sizes = [16, 64], strides = [1, 1]} : vector<16x128xf32> to vector<16x64xf32>
    %365 = arith.maximumf %363, %364 : vector<16x64xf32>
    %366 = vector.extract_strided_slice %365 {offsets = [0, 0], sizes = [2, 64], strides = [1, 1]} : vector<16x64xf32> to vector<2x64xf32>
    %cst_136 = arith.constant dense<0xFF800000> : vector<64xf32>
    %367 = vector.multi_reduction <maximumf>, %366, %cst_136 [0] : vector<2x64xf32> to vector<64xf32>
    %368 = vector.shape_cast %367 : vector<64xf32> to vector<1x64xf32>
    %369 = vector.extract_strided_slice %365 {offsets = [2, 0], sizes = [2, 64], strides = [1, 1]} : vector<16x64xf32> to vector<2x64xf32>
    %cst_137 = arith.constant dense<0xFF800000> : vector<64xf32>
    %370 = vector.multi_reduction <maximumf>, %369, %cst_137 [0] : vector<2x64xf32> to vector<64xf32>
    %371 = vector.shape_cast %370 : vector<64xf32> to vector<1x64xf32>
    %372 = vector.extract_strided_slice %365 {offsets = [4, 0], sizes = [2, 64], strides = [1, 1]} : vector<16x64xf32> to vector<2x64xf32>
    %cst_138 = arith.constant dense<0xFF800000> : vector<64xf32>
    %373 = vector.multi_reduction <maximumf>, %372, %cst_138 [0] : vector<2x64xf32> to vector<64xf32>
    %374 = vector.shape_cast %373 : vector<64xf32> to vector<1x64xf32>
    %375 = vector.extract_strided_slice %365 {offsets = [6, 0], sizes = [2, 64], strides = [1, 1]} : vector<16x64xf32> to vector<2x64xf32>
    %cst_139 = arith.constant dense<0xFF800000> : vector<64xf32>
    %376 = vector.multi_reduction <maximumf>, %375, %cst_139 [0] : vector<2x64xf32> to vector<64xf32>
    %377 = vector.shape_cast %376 : vector<64xf32> to vector<1x64xf32>
    %378 = vector.extract_strided_slice %365 {offsets = [8, 0], sizes = [2, 64], strides = [1, 1]} : vector<16x64xf32> to vector<2x64xf32>
    %cst_140 = arith.constant dense<0xFF800000> : vector<64xf32>
    %379 = vector.multi_reduction <maximumf>, %378, %cst_140 [0] : vector<2x64xf32> to vector<64xf32>
    %380 = vector.shape_cast %379 : vector<64xf32> to vector<1x64xf32>
    %381 = vector.extract_strided_slice %365 {offsets = [10, 0], sizes = [2, 64], strides = [1, 1]} : vector<16x64xf32> to vector<2x64xf32>
    %cst_141 = arith.constant dense<0xFF800000> : vector<64xf32>
    %382 = vector.multi_reduction <maximumf>, %381, %cst_141 [0] : vector<2x64xf32> to vector<64xf32>
    %383 = vector.shape_cast %382 : vector<64xf32> to vector<1x64xf32>
    %384 = vector.extract_strided_slice %365 {offsets = [12, 0], sizes = [2, 64], strides = [1, 1]} : vector<16x64xf32> to vector<2x64xf32>
    %cst_142 = arith.constant dense<0xFF800000> : vector<64xf32>
    %385 = vector.multi_reduction <maximumf>, %384, %cst_142 [0] : vector<2x64xf32> to vector<64xf32>
    %386 = vector.shape_cast %385 : vector<64xf32> to vector<1x64xf32>
    %387 = vector.extract_strided_slice %365 {offsets = [14, 0], sizes = [2, 64], strides = [1, 1]} : vector<16x64xf32> to vector<2x64xf32>
    %cst_143 = arith.constant dense<0xFF800000> : vector<64xf32>
    %388 = vector.multi_reduction <maximumf>, %387, %cst_143 [0] : vector<2x64xf32> to vector<64xf32>
    %389 = vector.shape_cast %388 : vector<64xf32> to vector<1x64xf32>
    %390 = tpu.concatenate %368, %371, %374, %377, %380, %383, %386, %389 in 0 : vector<1x64xf32>, vector<1x64xf32>, vector<1x64xf32>, vector<1x64xf32>, vector<1x64xf32>, vector<1x64xf32>, vector<1x64xf32>, vector<1x64xf32> -> vector<8x64xf32>
    %391 = arith.truncf %390 : vector<8x64xf32> to vector<8x64xbf16>
    %c0_144 = arith.constant 0 : index
    %c0_145 = arith.constant 0 : index
    %392 = vector.load %arg6[%c0_144, %c0_145] : memref<64x32xbf16, #tpu.memory_space<vmem>>, vector<64x32xbf16>
    %cst_146 = arith.constant dense<0.000000e+00> : vector<8x32xf32>
    %393 = tpu.matmul %391, %392, %cst_146 {dimension_numbers = #tpu.dot_dimension_numbers<[1], [0], [0], [1], [0, 0, 1, 1], [], []>} : vector<8x64xbf16>, vector<64x32xbf16>, vector<8x32xf32> -> vector<8x32xf32>
    %c0_147 = arith.constant 0 : index
    %c0_148 = arith.constant 0 : index
    %394 = vector.load %arg7[%c0_147, %c0_148] : memref<1x32xf32, #tpu.memory_space<vmem>>, vector<1x32xf32>
    %395 = vector.broadcast %394 : vector<1x32xf32> to vector<8x32xf32>
    %396 = arith.addf %393, %395 : vector<8x32xf32>
    %cst_149 = arith.constant 0.000000e+00 : f32
    %397 = vector.broadcast %cst_149 : f32 to vector<8x32xf32>
    %398 = arith.maximumf %396, %397 : vector<8x32xf32>
    %399 = arith.truncf %398 : vector<8x32xf32> to vector<8x32xbf16>
    %c0_150 = arith.constant 0 : index
    %c0_151 = arith.constant 0 : index
    %400 = vector.load %arg8[%c0_150, %c0_151] : memref<32x1xbf16, #tpu.memory_space<vmem>>, vector<32x1xbf16>
    %cst_152 = arith.constant dense<0.000000e+00> : vector<8x1xf32>
    %401 = tpu.matmul %399, %400, %cst_152 {dimension_numbers = #tpu.dot_dimension_numbers<[1], [0], [0], [1], [0, 0, 1, 1], [], []>} : vector<8x32xbf16>, vector<32x1xbf16>, vector<8x1xf32> -> vector<8x1xf32>
    %c0_153 = arith.constant 0 : index
    %c0_154 = arith.constant 0 : index
    %402 = vector.load %arg9[%c0_153, %c0_154] : memref<1x1xf32, #tpu.memory_space<vmem>>, vector<1x1xf32>
    %403 = vector.broadcast %402 : vector<1x1xf32> to vector<8x1xf32>
    %404 = arith.addf %401, %403 : vector<8x1xf32>
    %405 = arith.negf %404 : vector<8x1xf32>
    %406 = math.exp %405 : vector<8x1xf32>
    %cst_155 = arith.constant 1.000000e+00 : f32
    %407 = vector.broadcast %cst_155 : f32 to vector<8x1xf32>
    %408 = arith.addf %407, %406 : vector<8x1xf32>
    %409 = arith.divf %407, %408 : vector<8x1xf32>
    %c0_156 = arith.constant 0 : index
    %c0_157 = arith.constant 0 : index
    %410 = vector.load %arg10[%c0_156, %c0_157] : memref<8x1xf32, #tpu.memory_space<vmem>>, vector<8x1xf32>
    tpu.vector_store %arg10[%c0_156, %c0_157], %409 {strides = array<i32>} : memref<8x1xf32, #tpu.memory_space<vmem>>, vector<8x1xf32>,
    return
  }
  func.func @transform_0(%arg0: i32) -> (i32, i32, i32) {
    %c0_i32 = arith.constant 0 : i32
    %c0_i32_0 = arith.constant 0 : i32
    %c0_i32_1 = arith.constant 0 : i32
    return %arg0, %c0_i32, %c0_i32_0 : i32, i32, i32
  }
  func.func @transform_1(%arg0: i32) -> (i32, i32) {
    %c0_i32 = arith.constant 0 : i32
    %c0_i32_0 = arith.constant 0 : i32
    %c0_i32_1 = arith.constant 0 : i32
    return %c0_i32, %c0_i32_0 : i32, i32
  }
  func.func @transform_2(%arg0: i32) -> (i32, i32) {
    %c0_i32 = arith.constant 0 : i32
    %c0_i32_0 = arith.constant 0 : i32
    %c0_i32_1 = arith.constant 0 : i32
    return %c0_i32, %c0_i32_0 : i32, i32
  }
  func.func @transform_3(%arg0: i32) -> (i32, i32) {
    %c0_i32 = arith.constant 0 : i32
    %c0_i32_0 = arith.constant 0 : i32
    %c0_i32_1 = arith.constant 0 : i32
    return %c0_i32, %c0_i32_0 : i32, i32
  }
  func.func @transform_4(%arg0: i32) -> (i32, i32) {
    %c0_i32 = arith.constant 0 : i32
    %c0_i32_0 = arith.constant 0 : i32
    %c0_i32_1 = arith.constant 0 : i32
    return %c0_i32, %c0_i32_0 : i32, i32
  }
  func.func @transform_5(%arg0: i32) -> (i32, i32) {
    %c0_i32 = arith.constant 0 : i32
    %c0_i32_0 = arith.constant 0 : i32
    %c0_i32_1 = arith.constant 0 : i32
    return %c0_i32, %c0_i32_0 : i32, i32
  }
  func.func @transform_6(%arg0: i32) -> (i32, i32) {
    %c0_i32 = arith.constant 0 : i32
    %c0_i32_0 = arith.constant 0 : i32
    %c0_i32_1 = arith.constant 0 : i32
    return %c0_i32, %c0_i32_0 : i32, i32
  }
  func.func @transform_7(%arg0: i32) -> (i32, i32) {
    %c0_i32 = arith.constant 0 : i32
    %c0_i32_0 = arith.constant 0 : i32
    %c0_i32_1 = arith.constant 0 : i32
    return %c0_i32, %c0_i32_0 : i32, i32
  }
  func.func @transform_8(%arg0: i32) -> (i32, i32) {
    %c0_i32 = arith.constant 0 : i32
    %c0_i32_0 = arith.constant 0 : i32
    %c0_i32_1 = arith.constant 0 : i32
    return %c0_i32, %c0_i32_0 : i32, i32
  }
  func.func @transform_9(%arg0: i32) -> (i32, i32) {
    %c0_i32 = arith.constant 0 : i32
    %c0_i32_0 = arith.constant 0 : i32
    return %arg0, %c0_i32 : i32, i32
  }
}

</mosaic_0001>

<llo_original>
// kernel: tpu_custom_call.1
$region0: #{tpu_custom_call.1}
  #allocation0 [shape = 'u32[]', space=smem, size = 0x4, offset = 0x4, fixed_abs, tag = 'smem constant byte address 0x4 - core index']
  #allocation1 [shape = 'u32[144,128]{1,0:T(1,128)}', space=vmem, size = 0x12000, scoped, tag = 'internal scratch']
  #allocation2 [shape = 'bf16[128,144]{1,0:T(16,128)(2,1)}', space=vmem, size = 0x10000, scoped, tag = 'scratch operand']
  #allocation3 [shape = 'f32[128,448]{1,0:T(8,128)}', space=vmem, size = 0x40000, scoped, tag = 'scratch operand']
  #allocation4 [shape = 'f32[64,416]{1,0:T(8,128)}', space=vmem, size = 0x20000, scoped, tag = 'scratch operand']
  #allocation5 [shape = 'bf16[16,2080]{1,0:T(16,128)(2,1)}', space=vmem, size = 0x11000, scoped, tag = 'scratch operand']
  #allocation6 [shape = 'f32[1,1]{1,0:T(1,128)S(1)}', space=vmem, size = 0x200, scoped, tag = 'scoped memory for tpu_custom_call.1']
  %s0 = inlined_call_operand.vmem [shape: f32[8,18,48], index: 0, kind: input, shape index: {}]
  %s1 = inlined_call_operand.vmem [shape: bf16[144,448], index: 1, kind: input, shape index: {}]
  %s2 = inlined_call_operand.vmem [shape: f32[1,448], index: 2, kind: input, shape index: {}]
  %s3 = inlined_call_operand.hbm [shape: bf16[2080,128], index: 3, kind: input, shape index: {}]
  %s4 = inlined_call_operand.vmem [shape: f32[1,128], index: 4, kind: input, shape index: {}]
  %s5 = inlined_call_operand.vmem [shape: bf16[64,32], index: 5, kind: input, shape index: {}]
  %s6 = inlined_call_operand.vmem [shape: f32[1,32], index: 6, kind: input, shape index: {}]
  %s7 = inlined_call_operand.vmem [shape: bf16[32,1], index: 7, kind: input, shape index: {}]
  %s8 = inlined_call_operand.<no memory space> [shape: f32[1,1], index: 8, kind: input, shape index: {}]
  %s9 = inlined_call_operand.vmem [shape: f32[8,1], index: 9, kind: output, shape index: {}]
  %s10 = sld [smem:[#allocation0]]
  $region50: #{tpu_custom_call.1} parent=0
    _
  %s12 = ssub.s32 1, %s10
  %s13 = scalar_select 0, %s12, %s10
  %v14 = vstv %s8
  %15 = vst [vmem:[#allocation6] sm:$0x1] %v14
  $region1: #{tpu_custom_call.1} parent=0
    #allocation7 [shape = 'u8[532480]{0}', space=vmem, size = 0x82000, scoped, tag = 'input window, operand 3, single buffered']
    #allocation8 [shape = 's32[1]{0}', space=sflag, size = 0x4, scoped, tag = 'scoped memory for tpu_custom_call.1']
    %16 = vsyncpa [#allocation8], 0
    // Predicated region
    $region2: #{tpu_custom_call.1} parent=1 // pred_check
      _
    $region3: #{tpu_custom_call.1} parent=1 // pred_check_branch
      %18 = sbr.rel (0) target = $region5
    $region4: #{tpu_custom_call.1} parent=1 // pred_region
      _
    $region5: #{tpu_custom_call.1} parent=1 // pred_fallthru
      _
    // Predicated region
    $region6: #{tpu_custom_call.1} parent=1 // pred_check
      _
    $region7: #{tpu_custom_call.1} parent=1 // pred_check_branch
      %20 = sbr.rel (0) target = $region9
    $region8: #{tpu_custom_call.1} parent=1 // pred_region
      _
    $region9: #{tpu_custom_call.1} parent=1 // pred_fallthru
      _
    // Predicated region
    $region10: #{tpu_custom_call.1} parent=1 // pred_check
      _
    $region11: #{tpu_custom_call.1} parent=1 // pred_check_branch
      %22 = sbr.rel (0) target = $region13
    $region12: #{tpu_custom_call.1} parent=1 // pred_region
      _
    $region13: #{tpu_custom_call.1} parent=1 // pred_fallthru
      _
    // Predicated region
    $region14: #{tpu_custom_call.1} parent=1 // pred_check
      _
    $region15: #{tpu_custom_call.1} parent=1 // pred_check_branch
      %24 = sbr.rel (0) target = $region17
    $region16: #{tpu_custom_call.1} parent=1 // pred_region
      %s26 = ssub.s32 16640, 16640
      %27 = vsyncadd [#allocation8], %s26
      %s28 = sshll.u32 [#allocation7], 4
      %s29 = int_to_ptr.vmem [resolvable:$true] %s28
      %34 = dma.hbm_to_vmem [thread:$0]  %s3, 16640, %s29, [#allocation8], 64, 64, 4
    $region17: #{tpu_custom_call.1} parent=1 // pred_fallthru
      _
    // Predicated region
    $region18: #{tpu_custom_call.1} parent=1 // pred_check
      _
    $region19: #{tpu_custom_call.1} parent=1 // pred_check_branch
      %36 = sbr.rel (0) target = $region21
    $region20: #{tpu_custom_call.1} parent=1 // pred_region
      _
    $region21: #{tpu_custom_call.1} parent=1 // pred_fallthru
      _
    // Predicated region
    $region22: #{tpu_custom_call.1} parent=1 // pred_check
      _
    $region23: #{tpu_custom_call.1} parent=1 // pred_check_branch
      %38 = sbr.rel (0) target = $region25
    $region24: #{tpu_custom_call.1} parent=1 // pred_region
      _
    $region25: #{tpu_custom_call.1} parent=1 // pred_fallthru
      _
    // Predicated region
    $region26: #{tpu_custom_call.1} parent=1 // pred_check
      _
    $region27: #{tpu_custom_call.1} parent=1 // pred_check_branch
      %40 = sbr.rel (0) target = $region29
    $region28: #{tpu_custom_call.1} parent=1 // pred_region
      _
    $region29: #{tpu_custom_call.1} parent=1 // pred_fallthru
      _
    // Predicated region
    $region30: #{tpu_custom_call.1} parent=1 // pred_check
      _
    $region31: #{tpu_custom_call.1} parent=1 // pred_check_branch
      %42 = sbr.rel (0) target = $region33
    $region32: #{tpu_custom_call.1} parent=1 // pred_region
      _
    $region33: #{tpu_custom_call.1} parent=1 // pred_fallthru
      _
    // Predicated region
    $region34: #{tpu_custom_call.1} parent=1 // pred_check
      _
    $region35: #{tpu_custom_call.1} parent=1 // pred_check_branch
      %44 = sbr.rel (0) target = $region37
    $region36: #{tpu_custom_call.1} parent=1 // pred_region
      _
    $region37: #{tpu_custom_call.1} parent=1 // pred_fallthru
      _
    // Predicated region
    $region38: #{tpu_custom_call.1} parent=1 // pred_check
      _
    $region39: #{tpu_custom_call.1} parent=1 // pred_check_branch
      %46 = sbr.rel (0) target = $region41
    $region40: #{tpu_custom_call.1} parent=1 // pred_region
      %47 = dma.done [#allocation8], 16640
    $region41: #{tpu_custom_call.1} parent=1 // pred_fallthru
      _
    %v49 = vld [vmem:[%s0] sm:$0xff]
    %v50 = vld [vmem:[%s0 + $0x8] sm:$0xff]
    %v51 = vld [vmem:[%s0 + $0x1] sm:$0xff]
    %v52 = vld [vmem:[%s0 + $0x9] sm:$0xff]
    %v53 = vld [vmem:[%s0 + $0x2] sm:$0xff]
    %v54 = vld [vmem:[%s0 + $0xa] sm:$0xff]
    %57 = vrot.lane.b32.xlu0 %v51, 48
    %v58 = vpop.permute.xlu0 %57
    %59 = vrot.lane.b32.xlu0 %v52, 48
    %v60 = vpop.permute.xlu0 %59
    %65 = vrot.lane.b32.xlu0 %v53, 96
    %v66 = vpop.permute.xlu0 %65
    %67 = vrot.lane.b32.xlu0 %v54, 96
    %v68 = vpop.permute.xlu0 %67
    %vm71 = vcmask 392192
    %v72 = vsel %vm71, %v49, %v58
    %v73 = vsel %vm71, %v50, %v60
    %vm74 = vcmask 785408
    %v75 = vsel %vm74, %v72, %v66
    %v76 = vsel %vm74, %v73, %v68
    %v77 = vpack.c.bf16 %v76, %v75
    %v78 = vpack.c.bf16 %v68, %v66
    %79 = vst [vmem:[#allocation2] sm:$0xff] %v77
    %vm80 = vcmask 130048
    %81 = vst.msk [vmem:[#allocation2 + $0x8] sm:$0xff] %vm80, %v78
    %s82 = scalar_lea.vmem %s0, 24
    %v83 = vld [vmem:[%s82] sm:$0xff]
    %v84 = vld [vmem:[%s82 + $0x8] sm:$0xff]
    %v85 = vld [vmem:[%s82 + $0x1] sm:$0xff]
    %v86 = vld [vmem:[%s82 + $0x9] sm:$0xff]
    %v87 = vld [vmem:[%s82 + $0x2] sm:$0xff]
    %v88 = vld [vmem:[%s82 + $0xa] sm:$0xff]
    %91 = vrot.lane.b32.xlu0 %v85, 48
    %v92 = vpop.permute.xlu0 %91
    %93 = vrot.lane.b32.xlu0 %v86, 48
    %v94 = vpop.permute.xlu0 %93
    %99 = vrot.lane.b32.xlu0 %v87, 96
    %v100 = vpop.permute.xlu0 %99
    %101 = vrot.lane.b32.xlu0 %v88, 96
    %v102 = vpop.permute.xlu0 %101
    %v105 = vsel %vm71, %v83, %v92
    %v106 = vsel %vm71, %v84, %v94
    %v107 = vsel %vm74, %v105, %v100
    %v108 = vsel %vm74, %v106, %v102
    %v109 = vpack.c.bf16 %v108, %v107
    %v110 = vpack.c.bf16 %v102, %v100
    %111 = vst [vmem:[#allocation2 + $0x10] sm:$0xff] %v109
    %112 = vst.msk [vmem:[#allocation2 + $0x18] sm:$0xff] %vm80, %v110
    %s113 = scalar_lea.vmem %s0, 48
    %v114 = vld [vmem:[%s113] sm:$0xff]
    %v115 = vld [vmem:[%s113 + $0x8] sm:$0xff]
    %v116 = vld [vmem:[%s113 + $0x1] sm:$0xff]
    %v117 = vld [vmem:[%s113 + $0x9] sm:$0xff]
    %v118 = vld [vmem:[%s113 + $0x2] sm:$0xff]
    %v119 = vld [vmem:[%s113 + $0xa] sm:$0xff]
    %122 = vrot.lane.b32.xlu0 %v116, 48
    %v123 = vpop.permute.xlu0 %122
    %124 = vrot.lane.b32.xlu0 %v117, 48
    %v125 = vpop.permute.xlu0 %124
    %130 = vrot.lane.b32.xlu0 %v118, 96
    %v131 = vpop.permute.xlu0 %130
    %132 = vrot.lane.b32.xlu0 %v119, 96
    %v133 = vpop.permute.xlu0 %132
    %v136 = vsel %vm71, %v114, %v123
    %v137 = vsel %vm71, %v115, %v125
    %v138 = vsel %vm74, %v136, %v131
    %v139 = vsel %vm74, %v137, %v133
    %v140 = vpack.c.bf16 %v139, %v138
    %v141 = vpack.c.bf16 %v133, %v131
    %142 = vst [vmem:[#allocation2 + $0x20] sm:$0xff] %v140
    %143 = vst.msk [vmem:[#allocation2 + $0x28] sm:$0xff] %vm80, %v141
    %s144 = scalar_lea.vmem %s0, 72
    %v145 = vld [vmem:[%s144] sm:$0xff]
    %v146 = vld [vmem:[%s144 + $0x8] sm:$0xff]
    %v147 = vld [vmem:[%s144 + $0x1] sm:$0xff]
    %v148 = vld [vmem:[%s144 + $0x9] sm:$0xff]
    %v149 = vld [vmem:[%s144 + $0x2] sm:$0xff]
    %v150 = vld [vmem:[%s144 + $0xa] sm:$0xff]
    %153 = vrot.lane.b32.xlu0 %v147, 48
    %v154 = vpop.permute.xlu0 %153
    %155 = vrot.lane.b32.xlu0 %v148, 48
    %v156 = vpop.permute.xlu0 %155
    %161 = vrot.lane.b32.xlu0 %v149, 96
    %v162 = vpop.permute.xlu0 %161
    %163 = vrot.lane.b32.xlu0 %v150, 96
    %v164 = vpop.permute.xlu0 %163
    %v167 = vsel %vm71, %v145, %v154
    %v168 = vsel %vm71, %v146, %v156
    %v169 = vsel %vm74, %v167, %v162
    %v170 = vsel %vm74, %v168, %v164
    %v171 = vpack.c.bf16 %v170, %v169
    %v172 = vpack.c.bf16 %v164, %v162
    %173 = vst [vmem:[#allocation2 + $0x30] sm:$0xff] %v171
    %174 = vst.msk [vmem:[#allocation2 + $0x38] sm:$0xff] %vm80, %v172
    %s175 = scalar_lea.vmem %s0, 96
    %v176 = vld [vmem:[%s175] sm:$0xff]
    %v177 = vld [vmem:[%s175 + $0x8] sm:$0xff]
    %v178 = vld [vmem:[%s175 + $0x1] sm:$0xff]
    %v179 = vld [vmem:[%s175 + $0x9] sm:$0xff]
    %v180 = vld [vmem:[%s175 + $0x2] sm:$0xff]
    %v181 = vld [vmem:[%s175 + $0xa] sm:$0xff]
    %184 = vrot.lane.b32.xlu0 %v178, 48
    %v185 = vpop.permute.xlu0 %184
    %186 = vrot.lane.b32.xlu0 %v179, 48
    %v187 = vpop.permute.xlu0 %186
    %192 = vrot.lane.b32.xlu0 %v180, 96
    %v193 = vpop.permute.xlu0 %192
    %194 = vrot.lane.b32.xlu0 %v181, 96
    %v195 = vpop.permute.xlu0 %194
    %v198 = vsel %vm71, %v176, %v185
    %v199 = vsel %vm71, %v177, %v187
    %v200 = vsel %vm74, %v198, %v193
    %v201 = vsel %vm74, %v199, %v195
    %v202 = vpack.c.bf16 %v201, %v200
    %v203 = vpack.c.bf16 %v195, %v193
    %204 = vst [vmem:[#allocation2 + $0x40] sm:$0xff] %v202
    %205 = vst.msk [vmem:[#allocation2 + $0x48] sm:$0xff] %vm80, %v203
    %s206 = scalar_lea.vmem %s0, 120
    %v207 = vld [vmem:[%s206] sm:$0xff]
    %v208 = vld [vmem:[%s206 + $0x8] sm:$0xff]
    %v209 = vld [vmem:[%s206 + $0x1] sm:$0xff]
    %v210 = vld [vmem:[%s206 + $0x9] sm:$0xff]
    %v211 = vld [vmem:[%s206 + $0x2] sm:$0xff]
    %v212 = vld [vmem:[%s206 + $0xa] sm:$0xff]
    %215 = vrot.lane.b32.xlu0 %v209, 48
    %v216 = vpop.permute.xlu0 %215
    %217 = vrot.lane.b32.xlu0 %v210, 48
    %v218 = vpop.permute.xlu0 %217
    %223 = vrot.lane.b32.xlu0 %v211, 96
    %v224 = vpop.permute.xlu0 %223
    %225 = vrot.lane.b32.xlu0 %v212, 96
    %v226 = vpop.permute.xlu0 %225
    %v229 = vsel %vm71, %v207, %v216
    %v230 = vsel %vm71, %v208, %v218
    %v231 = vsel %vm74, %v229, %v224
    %v232 = vsel %vm74, %v230, %v226
    %v233 = vpack.c.bf16 %v232, %v231
    %v234 = vpack.c.bf16 %v226, %v224
    %235 = vst [vmem:[#allocation2 + $0x50] sm:$0xff] %v233
    %236 = vst.msk [vmem:[#allocation2 + $0x58] sm:$0xff] %vm80, %v234
    %s237 = scalar_lea.vmem %s0, 144
    %v238 = vld [vmem:[%s237] sm:$0xff]
    %v239 = vld [vmem:[%s237 + $0x8] sm:$0xff]
    %v240 = vld [vmem:[%s237 + $0x1] sm:$0xff]
    %v241 = vld [vmem:[%s237 + $0x9] sm:$0xff]
    %v242 = vld [vmem:[%s237 + $0x2] sm:$0xff]
    %v243 = vld [vmem:[%s237 + $0xa] sm:$0xff]
    %246 = vrot.lane.b32.xlu0 %v240, 48
    %v247 = vpop.permute.xlu0 %246
    %248 = vrot.lane.b32.xlu0 %v241, 48
    %v249 = vpop.permute.xlu0 %248
    %254 = vrot.lane.b32.xlu0 %v242, 96
    %v255 = vpop.permute.xlu0 %254
    %256 = vrot.lane.b32.xlu0 %v243, 96
    %v257 = vpop.permute.xlu0 %256
    %v260 = vsel %vm71, %v238, %v247
    %v261 = vsel %vm71, %v239, %v249
    %v262 = vsel %vm74, %v260, %v255
    %v263 = vsel %vm74, %v261, %v257
    %v264 = vpack.c.bf16 %v263, %v262
    %v265 = vpack.c.bf16 %v257, %v255
    %266 = vst [vmem:[#allocation2 + $0x60] sm:$0xff] %v264
    %267 = vst.msk [vmem:[#allocation2 + $0x68] sm:$0xff] %vm80, %v265
    %s268 = scalar_lea.vmem %s0, 168
    %v269 = vld [vmem:[%s268] sm:$0xff]
    %v270 = vld [vmem:[%s268 + $0x8] sm:$0xff]
    %v271 = vld [vmem:[%s268 + $0x1] sm:$0xff]
    %v272 = vld [vmem:[%s268 + $0x9] sm:$0xff]
    %v273 = vld [vmem:[%s268 + $0x2] sm:$0xff]
    %v274 = vld [vmem:[%s268 + $0xa] sm:$0xff]
    %277 = vrot.lane.b32.xlu0 %v271, 48
    %v278 = vpop.permute.xlu0 %277
    %279 = vrot.lane.b32.xlu0 %v272, 48
    %v280 = vpop.permute.xlu0 %279
    %285 = vrot.lane.b32.xlu0 %v273, 96
    %v286 = vpop.permute.xlu0 %285
    %287 = vrot.lane.b32.xlu0 %v274, 96
    %v288 = vpop.permute.xlu0 %287
    %v291 = vsel %vm71, %v269, %v278
    %v292 = vsel %vm71, %v270, %v280
    %v293 = vsel %vm74, %v291, %v286
    %v294 = vsel %vm74, %v292, %v288
    %v295 = vpack.c.bf16 %v294, %v293
    %v296 = vpack.c.bf16 %v288, %v286
    %297 = vst [vmem:[#allocation2 + $0x70] sm:$0xff] %v295
    %298 = vst.msk [vmem:[#allocation2 + $0x78] sm:$0xff] %vm80, %v296
    %v299 = vld [vmem:[#allocation2] sm:$0xff]
    %v300 = vld [vmem:[#allocation2 + $0x8] sm:$0xff]
    %v301 = vld [vmem:[#allocation2 + $0x10] sm:$0xff]
    %v302 = vld [vmem:[#allocation2 + $0x18] sm:$0xff]
    %v303 = vld [vmem:[#allocation2 + $0x20] sm:$0xff]
    %v304 = vld [vmem:[#allocation2 + $0x28] sm:$0xff]
    %v305 = vld [vmem:[#allocation2 + $0x30] sm:$0xff]
    %v306 = vld [vmem:[#allocation2 + $0x38] sm:$0xff]
    %v307 = vld [vmem:[#allocation2 + $0x40] sm:$0xff]
    %v308 = vld [vmem:[#allocation2 + $0x48] sm:$0xff]
    %v309 = vld [vmem:[#allocation2 + $0x50] sm:$0xff]
    %v310 = vld [vmem:[#allocation2 + $0x58] sm:$0xff]
    %v311 = vld [vmem:[#allocation2 + $0x60] sm:$0xff]
    %v312 = vld [vmem:[#allocation2 + $0x68] sm:$0xff]
    %v313 = vld [vmem:[#allocation2 + $0x70] sm:$0xff]
    %v314 = vld [vmem:[#allocation2 + $0x78] sm:$0xff]
    %v315 = vld [vmem:[%s1] sm:$0xff]
    %v316 = vld [vmem:[%s1 + $0x8] sm:$0xff]
    %v317 = vld [vmem:[%s1 + $0x10] sm:$0xff]
    %v318 = vld [vmem:[%s1 + $0x18] sm:$0xff]
    %v319 = vld [vmem:[%s1 + $0x20] sm:$0xff]
    %v320 = vld [vmem:[%s1 + $0x28] sm:$0xff]
    %v321 = vld [vmem:[%s1 + $0x30] sm:$0xff]
    %v322 = vld [vmem:[%s1 + $0x38] sm:$0xff]
    %v323 = vld [vmem:[%s1 + $0x40] sm:$0xff]
    %v324 = vld [vmem:[%s1 + $0x48] sm:$0xff]
    %v325 = vld [vmem:[%s1 + $0x50] sm:$0xff]
    %v326 = vld [vmem:[%s1 + $0x58] sm:$0xff]
    %v327 = vld [vmem:[%s1 + $0x60] sm:$0xff]
    %v328 = vld [vmem:[%s1 + $0x68] sm:$0xff]
    %v329 = vld [vmem:[%s1 + $0x70] sm:$0xff]
    %v330 = vld [vmem:[%s1 + $0x78] sm:$0xff]
    %v331 = vld [vmem:[%s1 + $0x80] sm:$0xff]
    %v332 = vld [vmem:[%s1 + $0x88] sm:$0xff]
    %v333 = vld [vmem:[%s1 + $0x90] sm:$0xff]
    %v334 = vld [vmem:[%s1 + $0x98] sm:$0xff]
    %v335 = vld [vmem:[%s1 + $0xa0] sm:$0xff]
    %v336 = vld [vmem:[%s1 + $0xa8] sm:$0xff]
    %v337 = vld [vmem:[%s1 + $0xb0] sm:$0xff]
    %v338 = vld [vmem:[%s1 + $0xb8] sm:$0xff]
    %v339 = vld [vmem:[%s1 + $0xc0] sm:$0xff]
    %v340 = vld [vmem:[%s1 + $0xc8] sm:$0xff]
    %v341 = vld [vmem:[%s1 + $0xd0] sm:$0xff]
    %v342 = vld [vmem:[%s1 + $0xd8] sm:$0xff]
    %v343 = vld [vmem:[%s1 + $0xe0] sm:$0xff]
    %v344 = vld [vmem:[%s1 + $0xe8] sm:$0xff]
    %v345 = vld [vmem:[%s1 + $0xf0] sm:$0xff]
    %v346 = vld [vmem:[%s1 + $0xf8] sm:$0xff]
    %v347 = vld [vmem:[%s1 + $0x100] sm:$0xff]
    %v348 = vld [vmem:[%s1 + $0x108] sm:$0xff]
    %v349 = vld [vmem:[%s1 + $0x110] sm:$0xff]
    %v350 = vld [vmem:[%s1 + $0x118] sm:$0xff]
    %v351 = vld [vmem:[%s2] sm:$0xf]
    %v353 = vlaneseq
    %v354 = vshrl.u32 %v353, 7
    %v355 = vsub.s32 0, %v354
    %v356 = vrot.slane %v351, %v355
    %v357 = vlaneseq
    %v358 = vshrl.u32 %v357, 7
    %v359 = vsub.s32 1, %v358
    %v360 = vrot.slane %v351, %v359
    %v361 = vlaneseq
    %v362 = vshrl.u32 %v361, 7
    %v363 = vsub.s32 2, %v362
    %v364 = vrot.slane %v351, %v363
    %v365 = vlaneseq
    %v366 = vshrl.u32 %v365, 7
    %v367 = vsub.s32 3, %v366
    %v368 = vrot.slane %v351, %v367
    %v409 = vunpack.c.l.b16 %v315
    %v410 = vunpack.c.h.b16 %v315
    %v411 = vunpack.c.l.b16 %v316
    %v412 = vunpack.c.h.b16 %v316
    %v413 = vunpack.c.l.b16 %v317
    %v414 = vunpack.c.h.b16 %v317
    %v415 = vunpack.c.l.b16 %v318
    %v416 = vunpack.c.h.b16 %v318
    %v417 = vunpack.c.l.b16 %v319
    %v418 = vunpack.c.h.b16 %v319
    %v419 = vunpack.c.l.b16 %v320
    %v420 = vunpack.c.h.b16 %v320
    %v421 = vunpack.c.l.b16 %v321
    %v422 = vunpack.c.h.b16 %v321
    %v423 = vunpack.c.l.b16 %v322
    %v424 = vunpack.c.h.b16 %v322
    %v425 = vunpack.c.l.b16 %v323
    %v426 = vunpack.c.h.b16 %v323
    %v427 = vunpack.c.l.b16 %v324
    %v428 = vunpack.c.h.b16 %v324
    %v429 = vunpack.c.l.b16 %v325
    %v430 = vunpack.c.h.b16 %v325
    %v431 = vunpack.c.l.b16 %v326
    %v432 = vunpack.c.h.b16 %v326
    %v433 = vunpack.c.l.b16 %v327
    %v434 = vunpack.c.h.b16 %v327
    %v435 = vunpack.c.l.b16 %v328
    %v436 = vunpack.c.h.b16 %v328
    %v437 = vunpack.c.l.b16 %v329
    %v438 = vunpack.c.h.b16 %v329
    %v439 = vunpack.c.l.b16 %v330
    %v440 = vunpack.c.h.b16 %v330
    %v441 = vunpack.c.l.b16 %v331
    %v442 = vunpack.c.h.b16 %v331
    %v443 = vunpack.c.l.b16 %v332
    %v444 = vunpack.c.h.b16 %v332
    %v445 = vunpack.c.l.b16 %v333
    %v446 = vunpack.c.h.b16 %v333
    %v447 = vunpack.c.l.b16 %v334
    %v448 = vunpack.c.h.b16 %v334
    %v449 = vunpack.c.l.b16 %v335
    %v450 = vunpack.c.h.b16 %v335
    %v451 = vunpack.c.l.b16 %v336
    %v452 = vunpack.c.h.b16 %v336
    %v453 = vunpack.c.l.b16 %v337
    %v454 = vunpack.c.h.b16 %v337
    %v455 = vunpack.c.l.b16 %v338
    %v456 = vunpack.c.h.b16 %v338
    %v457 = vunpack.c.l.b16 %v339
    %v458 = vunpack.c.h.b16 %v339
    %v459 = vunpack.c.l.b16 %v340
    %v460 = vunpack.c.h.b16 %v340
    %v461 = vunpack.c.l.b16 %v341
    %v462 = vunpack.c.h.b16 %v341
    %v463 = vunpack.c.l.b16 %v342
    %v464 = vunpack.c.h.b16 %v342
    %v465 = vunpack.c.l.b16 %v343
    %v466 = vunpack.c.h.b16 %v343
    %v467 = vunpack.c.l.b16 %v344
    %v468 = vunpack.c.h.b16 %v344
    %v469 = vunpack.c.l.b16 %v345
    %v470 = vunpack.c.h.b16 %v345
    %v471 = vunpack.c.l.b16 %v346
    %v472 = vunpack.c.h.b16 %v346
    %v473 = vunpack.c.l.b16 %v347
    %v474 = vunpack.c.h.b16 %v347
    %v475 = vunpack.c.l.b16 %v348
    %v476 = vunpack.c.h.b16 %v348
    %v477 = vunpack.c.l.b16 %v349
    %v478 = vunpack.c.h.b16 %v349
    %v479 = vunpack.c.l.b16 %v350
    %v480 = vunpack.c.h.b16 %v350
    %v481 = vpack.c.b16 %v413, %v409
    %v482 = vpack.c.b16 %v414, %v410
    %v483 = vpack.c.b16 %v415, %v411
    %v484 = vpack.c.b16 %v416, %v412
    %v485 = vpack.c.b16 %v421, %v417
    %v486 = vpack.c.b16 %v422, %v418
    %v487 = vpack.c.b16 %v423, %v419
    %v488 = vpack.c.b16 %v424, %v420
    %v489 = vpack.c.b16 %v429, %v425
    %v490 = vpack.c.b16 %v430, %v426
    %v491 = vpack.c.b16 %v431, %v427
    %v492 = vpack.c.b16 %v432, %v428
    %v493 = vpack.c.b16 %v437, %v433
    %v494 = vpack.c.b16 %v438, %v434
    %v495 = vpack.c.b16 %v439, %v435
    %v496 = vpack.c.b16 %v440, %v436
    %v497 = vpack.c.b16 %v445, %v441
    %v498 = vpack.c.b16 %v446, %v442
    %v499 = vpack.c.b16 %v447, %v443
    %v500 = vpack.c.b16 %v448, %v444
    %v501 = vpack.c.b16 %v453, %v449
    %v502 = vpack.c.b16 %v454, %v450
    %v503 = vpack.c.b16 %v455, %v451
    %v504 = vpack.c.b16 %v456, %v452
    %v505 = vpack.c.b16 %v461, %v457
    %v506 = vpack.c.b16 %v462, %v458
    %v507 = vpack.c.b16 %v463, %v459
    %v508 = vpack.c.b16 %v464, %v460
    %v509 = vpack.c.b16 %v469, %v465
    %v510 = vpack.c.b16 %v470, %v466
    %v511 = vpack.c.b16 %v471, %v467
    %v512 = vpack.c.b16 %v472, %v468
    %v513 = vpack.c.b16 %v477, %v473
    %v514 = vpack.c.b16 %v478, %v474
    %v515 = vpack.c.b16 %v479, %v475
    %v516 = vpack.c.b16 %v480, %v476
    %v554 = vsel %vm80, %v300, 0
    %v557 = vsel %vm80, %v302, 0
    %v560 = vsel %vm80, %v304, 0
    %v563 = vsel %vm80, %v306, 0
    %v566 = vsel %vm80, %v308, 0
    %v569 = vsel %vm80, %v310, 0
    %v572 = vsel %vm80, %v312, 0
    %v575 = vsel %vm80, %v314, 0
    %577 = vmatprep.subr.bf16.mxu0 %v482
    %578 = vmatpush1.bf16.msra.mxu0 %v481
    %579 = vmatprep.subr.bf16.mxu0 %v486
    %580 = vmatpush1.bf16.msra.mxu0 %v485
    %581 = vmatprep.subr.bf16.mxu0 %v490
    %582 = vmatpush1.bf16.msra.mxu0 %v489
    %583 = vmatprep.subr.bf16.mxu0 %v494
    %584 = vmatpush1.bf16.msra.mxu0 %v493
    %585 = vmatprep.subr.bf16.mxu0 %v498
    %586 = vmatpush1.bf16.msra.mxu0 %v497
    %587 = vmatprep.subr.bf16.mxu0 %v502
    %588 = vmatpush1.bf16.msra.mxu0 %v501
    %589 = vmatprep.subr.bf16.mxu0 %v506
    %590 = vmatpush1.bf16.msra.mxu0 %v505
    %591 = vmatprep.subr.bf16.mxu0 %v510
    %592 = vmatpush1.bf16.msra.mxu0 %v509
    %593 = vmatprep.subr.bf16.mxu0 %v514
    %594 = vmatpush1.bf16.msra.mxu0 %v513
    %595 = vmatprep.subr.bf16.mxu0 0
    %596 = vmatpush1.bf16.msra.mxu0 0
    %597 = vmatprep.subr.bf16.mxu0 0
    %598 = vmatpush1.bf16.msra.mxu0 0
    %599 = vmatprep.subr.bf16.mxu0 0
    %600 = vmatpush1.bf16.msra.mxu0 0
    %601 = vmatprep.subr.bf16.mxu0 0
    %602 = vmatpush1.bf16.msra.mxu0 0
    %603 = vmatprep.subr.bf16.mxu0 0
    %604 = vmatpush1.bf16.msra.mxu0 0
    %605 = vmatprep.subr.bf16.mxu0 0
    %606 = vmatpush1.bf16.msra.mxu0 0
    %607 = vmatprep.subr.bf16.mxu0 0
    %608 = vmatpush1.bf16.msra.mxu0 0
    %609 = vmatprep.mubr.bf16.mxu0 %v554
    %610 = vmatmul.mubr.bf16.gmra.mrb[0].mxu0 %v299
    %v611 = vpop.f32.mrb[0].mxu0
    %v612 = vadd.f32 %v356, %v611
    %v613 = vpop.f32.mrb[0].mxu0
    %v614 = vadd.f32 %v360, %v613
    %v615 = vpop.f32.mrb[0].mxu0
    %v616 = vadd.f32 %v356, %v615
    %v617 = vpop.f32.mrb[0].mxu0
    %v618 = vadd.f32 %v360, %v617
    %619 = vmatprep.mubr.bf16.mxu0 %v557
    %620 = vmatmul.mubr.bf16.gmra.mrb[0].mxu0 %v301
    %v621 = vpop.f32.mrb[0].mxu0
    %v622 = vadd.f32 %v356, %v621
    %v623 = vpop.f32.mrb[0].mxu0
    %v624 = vadd.f32 %v360, %v623
    %v625 = vpop.f32.mrb[0].mxu0
    %v626 = vadd.f32 %v356, %v625
    %v627 = vpop.f32.mrb[0].mxu0
    %v628 = vadd.f32 %v360, %v627
    %629 = vmatprep.mubr.bf16.mxu0 %v560
    %630 = vmatmul.mubr.bf16.gmra.mrb[0].mxu0 %v303
    %v631 = vpop.f32.mrb[0].mxu0
    %v632 = vadd.f32 %v356, %v631
    %v633 = vpop.f32.mrb[0].mxu0
    %v634 = vadd.f32 %v360, %v633
    %v635 = vpop.f32.mrb[0].mxu0
    %v636 = vadd.f32 %v356, %v635
    %v637 = vpop.f32.mrb[0].mxu0
    %v638 = vadd.f32 %v360, %v637
    %639 = vmatprep.mubr.bf16.mxu0 %v563
    %640 = vmatmul.mubr.bf16.gmra.mrb[0].mxu0 %v305
    %v641 = vpop.f32.mrb[0].mxu0
    %v642 = vadd.f32 %v356, %v641
    %v643 = vpop.f32.mrb[0].mxu0
    %v644 = vadd.f32 %v360, %v643
    %v645 = vpop.f32.mrb[0].mxu0
    %v646 = vadd.f32 %v356, %v645
    %v647 = vpop.f32.mrb[0].mxu0
    %v648 = vadd.f32 %v360, %v647
    %649 = vmatprep.mubr.bf16.mxu0 %v566
    %650 = vmatmul.mubr.bf16.gmra.mrb[0].mxu0 %v307
    %v651 = vpop.f32.mrb[0].mxu0
    %v652 = vadd.f32 %v356, %v651
    %v653 = vpop.f32.mrb[0].mxu0
    %v654 = vadd.f32 %v360, %v653
    %v655 = vpop.f32.mrb[0].mxu0
    %v656 = vadd.f32 %v356, %v655
    %v657 = vpop.f32.mrb[0].mxu0
    %v658 = vadd.f32 %v360, %v657
    %659 = vmatprep.mubr.bf16.mxu0 %v569
    %660 = vmatmul.mubr.bf16.gmra.mrb[0].mxu0 %v309
    %v661 = vpop.f32.mrb[0].mxu0
    %v662 = vadd.f32 %v356, %v661
    %v663 = vpop.f32.mrb[0].mxu0
    %v664 = vadd.f32 %v360, %v663
    %v665 = vpop.f32.mrb[0].mxu0
    %v666 = vadd.f32 %v356, %v665
    %v667 = vpop.f32.mrb[0].mxu0
    %v668 = vadd.f32 %v360, %v667
    %669 = vmatprep.mubr.bf16.mxu0 %v572
    %670 = vmatmul.mubr.bf16.gmra.mrb[0].mxu0 %v311
    %v671 = vpop.f32.mrb[0].mxu0
    %v672 = vadd.f32 %v356, %v671
    %v673 = vpop.f32.mrb[0].mxu0
    %v674 = vadd.f32 %v360, %v673
    %v675 = vpop.f32.mrb[0].mxu0
    %v676 = vadd.f32 %v356, %v675
    %v677 = vpop.f32.mrb[0].mxu0
    %v678 = vadd.f32 %v360, %v677
    %679 = vmatprep.mubr.bf16.mxu0 %v575
    %680 = vmatmul.mubr.bf16.gmra.mrb[0].mxu0 %v313
    %v681 = vpop.f32.mrb[0].mxu0
    %v682 = vadd.f32 %v356, %v681
    %v683 = vpop.f32.mrb[0].mxu0
    %v684 = vadd.f32 %v360, %v683
    %v685 = vpop.f32.mrb[0].mxu0
    %v686 = vadd.f32 %v356, %v685
    %v687 = vpop.f32.mrb[0].mxu0
    %v688 = vadd.f32 %v360, %v687
    %689 = vdwg.mxu0
    %690 = vmatprep.subr.bf16.mxu0 %v484
    %691 = vmatpush1.bf16.msra.mxu0 %v483
    %692 = vmatprep.subr.bf16.mxu0 %v488
    %693 = vmatpush1.bf16.msra.mxu0 %v487
    %694 = vmatprep.subr.bf16.mxu0 %v492
    %695 = vmatpush1.bf16.msra.mxu0 %v491
    %696 = vmatprep.subr.bf16.mxu0 %v496
    %697 = vmatpush1.bf16.msra.mxu0 %v495
    %698 = vmatprep.subr.bf16.mxu0 %v500
    %699 = vmatpush1.bf16.msra.mxu0 %v499
    %700 = vmatprep.subr.bf16.mxu0 %v504
    %701 = vmatpush1.bf16.msra.mxu0 %v503
    %702 = vmatprep.subr.bf16.mxu0 %v508
    %703 = vmatpush1.bf16.msra.mxu0 %v507
    %704 = vmatprep.subr.bf16.mxu0 %v512
    %705 = vmatpush1.bf16.msra.mxu0 %v511
    %706 = vmatprep.subr.bf16.mxu0 %v516
    %707 = vmatpush1.bf16.msra.mxu0 %v515
    %708 = vmatprep.subr.bf16.mxu0 0
    %709 = vmatpush1.bf16.msra.mxu0 0
    %710 = vmatprep.subr.bf16.mxu0 0
    %711 = vmatpush1.bf16.msra.mxu0 0
    %712 = vmatprep.subr.bf16.mxu0 0
    %713 = vmatpush1.bf16.msra.mxu0 0
    %714 = vmatprep.subr.bf16.mxu0 0
    %715 = vmatpush1.bf16.msra.mxu0 0
    %716 = vmatprep.subr.bf16.mxu0 0
    %717 = vmatpush1.bf16.msra.mxu0 0
    %718 = vmatprep.subr.bf16.mxu0 0
    %719 = vmatpush1.bf16.msra.mxu0 0
    %720 = vmatprep.subr.bf16.mxu0 0
    %721 = vmatpush1.bf16.msra.mxu0 0
    %722 = vmatprep.mubr.bf16.mxu0 %v554
    %723 = vmatmul.mubr.bf16.gmra.mrb[0].mxu0 %v299
    %v724 = vpop.f32.mrb[0].mxu0
    %v725 = vadd.f32 %v364, %v724
    %v726 = vpop.f32.mrb[0].mxu0
    %v727 = vadd.f32 %v368, %v726
    %v728 = vpop.f32.mrb[0].mxu0
    %v729 = vadd.f32 %v364, %v728
    %v730 = vpop.f32.mrb[0].mxu0
    %v731 = vadd.f32 %v368, %v730
    %732 = vmatprep.mubr.bf16.mxu0 %v557
    %733 = vmatmul.mubr.bf16.gmra.mrb[0].mxu0 %v301
    %v734 = vpop.f32.mrb[0].mxu0
    %v735 = vadd.f32 %v364, %v734
    %v736 = vpop.f32.mrb[0].mxu0
    %v737 = vadd.f32 %v368, %v736
    %v738 = vpop.f32.mrb[0].mxu0
    %v739 = vadd.f32 %v364, %v738
    %v740 = vpop.f32.mrb[0].mxu0
    %v741 = vadd.f32 %v368, %v740
    %742 = vmatprep.mubr.bf16.mxu0 %v560
    %743 = vmatmul.mubr.bf16.gmra.mrb[0].mxu0 %v303
    %v744 = vpop.f32.mrb[0].mxu0
    %v745 = vadd.f32 %v364, %v744
    %v746 = vpop.f32.mrb[0].mxu0
    %v747 = vadd.f32 %v368, %v746
    %v748 = vpop.f32.mrb[0].mxu0
    %v749 = vadd.f32 %v364, %v748
    %v750 = vpop.f32.mrb[0].mxu0
    %v751 = vadd.f32 %v368, %v750
    %752 = vmatprep.mubr.bf16.mxu0 %v563
    %753 = vmatmul.mubr.bf16.gmra.mrb[0].mxu0 %v305
    %v754 = vpop.f32.mrb[0].mxu0
    %v755 = vadd.f32 %v364, %v754
    %v756 = vpop.f32.mrb[0].mxu0
    %v757 = vadd.f32 %v368, %v756
    %v758 = vpop.f32.mrb[0].mxu0
    %v759 = vadd.f32 %v364, %v758
    %v760 = vpop.f32.mrb[0].mxu0
    %v761 = vadd.f32 %v368, %v760
    %762 = vmatprep.mubr.bf16.mxu0 %v566
    %763 = vmatmul.mubr.bf16.gmra.mrb[0].mxu0 %v307
    %v764 = vpop.f32.mrb[0].mxu0
    %v765 = vadd.f32 %v364, %v764
    %v766 = vpop.f32.mrb[0].mxu0
    %v767 = vadd.f32 %v368, %v766
    %v768 = vpop.f32.mrb[0].mxu0
    %v769 = vadd.f32 %v364, %v768
    %v770 = vpop.f32.mrb[0].mxu0
    %v771 = vadd.f32 %v368, %v770
    %772 = vmatprep.mubr.bf16.mxu0 %v569
    %773 = vmatmul.mubr.bf16.gmra.mrb[0].mxu0 %v309
    %v774 = vpop.f32.mrb[0].mxu0
    %v775 = vadd.f32 %v364, %v774
    %v776 = vpop.f32.mrb[0].mxu0
    %v777 = vadd.f32 %v368, %v776
    %v778 = vpop.f32.mrb[0].mxu0
    %v779 = vadd.f32 %v364, %v778
    %v780 = vpop.f32.mrb[0].mxu0
    %v781 = vadd.f32 %v368, %v780
    %782 = vmatprep.mubr.bf16.mxu0 %v572
    %783 = vmatmul.mubr.bf16.gmra.mrb[0].mxu0 %v311
    %v784 = vpop.f32.mrb[0].mxu0
    %v785 = vadd.f32 %v364, %v784
    %v786 = vpop.f32.mrb[0].mxu0
    %v787 = vadd.f32 %v368, %v786
    %v788 = vpop.f32.mrb[0].mxu0
    %v789 = vadd.f32 %v364, %v788
    %v790 = vpop.f32.mrb[0].mxu0
    %v791 = vadd.f32 %v368, %v790
    %792 = vmatprep.mubr.bf16.mxu0 %v575
    %793 = vmatmul.mubr.bf16.gmra.mrb[0].mxu0 %v313
    %v794 = vpop.f32.mrb[0].mxu0
    %v795 = vadd.f32 %v364, %v794
    %v796 = vpop.f32.mrb[0].mxu0
    %v797 = vadd.f32 %v368, %v796
    %v798 = vpop.f32.mrb[0].mxu0
    %v799 = vadd.f32 %v364, %v798
    %v800 = vpop.f32.mrb[0].mxu0
    %v801 = vadd.f32 %v368, %v800
    %802 = vdwg.mxu0
    %803 = vst [vmem:[#allocation3] sm:$0xff] %v612
    %804 = vst [vmem:[#allocation3 + $0x8] sm:$0xff] %v614
    %805 = vst [vmem:[#allocation3 + $0x10] sm:$0xff] %v725
    %vm806 = vcmask 523264
    %807 = vst.msk [vmem:[#allocation3 + $0x18] sm:$0xff] %vm806, %v727
    %808 = vst [vmem:[#allocation3 + $0x20] sm:$0xff] %v616
    %809 = vst [vmem:[#allocation3 + $0x28] sm:$0xff] %v618
    %810 = vst [vmem:[#allocation3 + $0x30] sm:$0xff] %v729
    %811 = vst.msk [vmem:[#allocation3 + $0x38] sm:$0xff] %vm806, %v731
    %812 = vst [vmem:[#allocation3 + $0x40] sm:$0xff] %v622
    %813 = vst [vmem:[#allocation3 + $0x48] sm:$0xff] %v624
    %814 = vst [vmem:[#allocation3 + $0x50] sm:$0xff] %v735
    %815 = vst.msk [vmem:[#allocation3 + $0x58] sm:$0xff] %vm806, %v737
    %816 = vst [vmem:[#allocation3 + $0x60] sm:$0xff] %v626
    %817 = vst [vmem:[#allocation3 + $0x68] sm:$0xff] %v628
    %818 = vst [vmem:[#allocation3 + $0x70] sm:$0xff] %v739
    %819 = vst.msk [vmem:[#allocation3 + $0x78] sm:$0xff] %vm806, %v741
    %820 = vst [vmem:[#allocation3 + $0x80] sm:$0xff] %v632
    %821 = vst [vmem:[#allocation3 + $0x88] sm:$0xff] %v634
    %822 = vst [vmem:[#allocation3 + $0x90] sm:$0xff] %v745
    %823 = vst.msk [vmem:[#allocation3 + $0x98] sm:$0xff] %vm806, %v747
    %824 = vst [vmem:[#allocation3 + $0xa0] sm:$0xff] %v636
    %825 = vst [vmem:[#allocation3 + $0xa8] sm:$0xff] %v638
    %826 = vst [vmem:[#allocation3 + $0xb0] sm:$0xff] %v749
    %827 = vst.msk [vmem:[#allocation3 + $0xb8] sm:$0xff] %vm806, %v751
    %828 = vst [vmem:[#allocation3 + $0xc0] sm:$0xff] %v642
    %829 = vst [vmem:[#allocation3 + $0xc8] sm:$0xff] %v644
    %830 = vst [vmem:[#allocation3 + $0xd0] sm:$0xff] %v755
    %831 = vst.msk [vmem:[#allocation3 + $0xd8] sm:$0xff] %vm806, %v757
    %832 = vst [vmem:[#allocation3 + $0xe0] sm:$0xff] %v646
    %833 = vst [vmem:[#allocation3 + $0xe8] sm:$0xff] %v648
    %834 = vst [vmem:[#allocation3 + $0xf0] sm:$0xff] %v759
    %835 = vst.msk [vmem:[#allocation3 + $0xf8] sm:$0xff] %vm806, %v761
    %836 = vst [vmem:[#allocation3 + $0x100] sm:$0xff] %v652
    %837 = vst [vmem:[#allocation3 + $0x108] sm:$0xff] %v654
    %838 = vst [vmem:[#allocation3 + $0x110] sm:$0xff] %v765
    %839 = vst.msk [vmem:[#allocation3 + $0x118] sm:$0xff] %vm806, %v767
    %840 = vst [vmem:[#allocation3 + $0x120] sm:$0xff] %v656
    %841 = vst [vmem:[#allocation3 + $0x128] sm:$0xff] %v658
    %842 = vst [vmem:[#allocation3 + $0x130] sm:$0xff] %v769
    %843 = vst.msk [vmem:[#allocation3 + $0x138] sm:$0xff] %vm806, %v771
    %844 = vst [vmem:[#allocation3 + $0x140] sm:$0xff] %v662
    %845 = vst [vmem:[#allocation3 + $0x148] sm:$0xff] %v664
    %846 = vst [vmem:[#allocation3 + $0x150] sm:$0xff] %v775
    %847 = vst.msk [vmem:[#allocation3 + $0x158] sm:$0xff] %vm806, %v777
    %848 = vst [vmem:[#allocation3 + $0x160] sm:$0xff] %v666
    %849 = vst [vmem:[#allocation3 + $0x168] sm:$0xff] %v668
    %850 = vst [vmem:[#allocation3 + $0x170] sm:$0xff] %v779
    %851 = vst.msk [vmem:[#allocation3 + $0x178] sm:$0xff] %vm806, %v781
    %852 = vst [vmem:[#allocation3 + $0x180] sm:$0xff] %v672
    %853 = vst [vmem:[#allocation3 + $0x188] sm:$0xff] %v674
    %854 = vst [vmem:[#allocation3 + $0x190] sm:$0xff] %v785
    %855 = vst.msk [vmem:[#allocation3 + $0x198] sm:$0xff] %vm806, %v787
    %856 = vst [vmem:[#allocation3 + $0x1a0] sm:$0xff] %v676
    %857 = vst [vmem:[#allocation3 + $0x1a8] sm:$0xff] %v678
    %858 = vst [vmem:[#allocation3 + $0x1b0] sm:$0xff] %v789
    %859 = vst.msk [vmem:[#allocation3 + $0x1b8] sm:$0xff] %vm806, %v791
    %860 = vst [vmem:[#allocation3 + $0x1c0] sm:$0xff] %v682
    %861 = vst [vmem:[#allocation3 + $0x1c8] sm:$0xff] %v684
    %862 = vst [vmem:[#allocation3 + $0x1d0] sm:$0xff] %v795
    %863 = vst.msk [vmem:[#allocation3 + $0x1d8] sm:$0xff] %vm806, %v797
    %864 = vst [vmem:[#allocation3 + $0x1e0] sm:$0xff] %v686
    %865 = vst [vmem:[#allocation3 + $0x1e8] sm:$0xff] %v688
    %866 = vst [vmem:[#allocation3 + $0x1f0] sm:$0xff] %v799
    %867 = vst.msk [vmem:[#allocation3 + $0x1f8] sm:$0xff] %vm806, %v801
    %v868 = vld [vmem:[#allocation3] sm:$0xff]
    %v869 = vld [vmem:[#allocation3 + $0x8] sm:$0xff]
    %v870 = vld [vmem:[#allocation3 + $0x10] sm:$0xff]
    %v871 = vld [vmem:[#allocation3 + $0x18] sm:$0xff]
    %v872 = vld [vmem:[#allocation3 + $0x20] sm:$0xff]
    %v873 = vld [vmem:[#allocation3 + $0x28] sm:$0xff]
    %v874 = vld [vmem:[#allocation3 + $0x30] sm:$0xff]
    %v875 = vld [vmem:[#allocation3 + $0x38] sm:$0xff]
    %v880 = vrot.slane %v868, 1
    %v881 = vrot.slane %v869, 1
    %v882 = vrot.slane %v870, 1
    %v883 = vrot.slane %v871, 1
    %v888 = vmax.f32 %v868, %v880
    %v889 = vmax.f32 %v869, %v881
    %v890 = vmax.f32 %v870, %v882
    %v891 = vmax.f32 %v871, %v883
    %v896 = vrot.slane %v872, 1
    %v897 = vrot.slane %v873, 1
    %v898 = vrot.slane %v874, 1
    %v899 = vrot.slane %v875, 1
    %v904 = vmax.f32 %v872, %v896
    %v905 = vmax.f32 %v873, %v897
    %v906 = vmax.f32 %v874, %v898
    %v907 = vmax.f32 %v875, %v899
    %v912 = vrot.slane %v888, 1
    %v913 = vrot.slane %v889, 1
    %v914 = vrot.slane %v890, 1
    %v915 = vrot.slane %v891, 1
    %v920 = vrot.slane %v888, 2
    %v921 = vrot.slane %v889, 2
    %v922 = vrot.slane %v890, 2
    %v923 = vrot.slane %v891, 2
    %v928 = vrot.slane %v888, 3
    %v929 = vrot.slane %v889, 3
    %v930 = vrot.slane %v890, 3
    %v931 = vrot.slane %v891, 3
    %v940 = vrot.slane %v904, 4
    %v941 = vrot.slane %v905, 4
    %v942 = vrot.slane %v906, 4
    %v943 = vrot.slane %v907, 4
    %v948 = vrot.slane %v904, 5
    %v949 = vrot.slane %v905, 5
    %v950 = vrot.slane %v906, 5
    %v951 = vrot.slane %v907, 5
    %v956 = vrot.slane %v904, 6
    %v957 = vrot.slane %v905, 6
    %v958 = vrot.slane %v906, 6
    %v959 = vrot.slane %v907, 6
    %vm964 = vcmask 1040384
    %v965 = vsel %vm964, %v888, %v912
    %v966 = vsel %vm964, %v889, %v913
    %v967 = vsel %vm964, %v890, %v914
    %v968 = vsel %vm964, %v891, %v915
    %vm969 = vcmask 1041408
    %v970 = vsel %vm969, %v965, %v920
    %v971 = vsel %vm969, %v966, %v921
    %v972 = vsel %vm969, %v967, %v922
    %v973 = vsel %vm969, %v968, %v923
    %vm974 = vcmask 1042432
    %v975 = vsel %vm974, %v970, %v928
    %v976 = vsel %vm974, %v971, %v929
    %v977 = vsel %vm974, %v972, %v930
    %v978 = vsel %vm974, %v973, %v931
    %vm979 = vcmask 1043456
    %v980 = vsel %vm979, %v975, %v940
    %v981 = vsel %vm979, %v976, %v941
    %v982 = vsel %vm979, %v977, %v942
    %v983 = vsel %vm979, %v978, %v943
    %vm984 = vcmask 1044480
    %v985 = vsel %vm984, %v980, %v948
    %v986 = vsel %vm984, %v981, %v949
    %v987 = vsel %vm984, %v982, %v950
    %v988 = vsel %vm984, %v983, %v951
    %vm989 = vcmask 1045504
    %v990 = vsel %vm989, %v985, %v956
    %v991 = vsel %vm989, %v986, %v957
    %v992 = vsel %vm989, %v987, %v958
    %v993 = vsel %vm989, %v988, %v959
    %998 = vrot.lane.b32.xlu0 %v990, 96
    %v999 = vpop.permute.xlu0 %998
    %1000 = vrot.lane.b32.xlu0 %v991, 96
    %v1001 = vpop.permute.xlu0 %1000
    %1002 = vrot.lane.b32.xlu0 %v992, 96
    %v1003 = vpop.permute.xlu0 %1002
    %1004 = vrot.lane.b32.xlu0 %v993, 96
    %v1005 = vpop.permute.xlu0 %1004
    %v1006 = vsel %vm74, %v999, %v1001
    %v1007 = vsel %vm74, %v1001, %v1003
    %v1008 = vsel %vm74, %v1003, %v1005
    %v1013 = vmax.f32 %v990, %v1006
    %v1014 = vmax.f32 %v991, %v1007
    %v1015 = vmax.f32 %v992, %v1008
    %v1016 = vmax.f32 %v993, %v1005
    %1017 = vst [vmem:[#allocation4] sm:$0x7f] %v1013
    %1018 = vst [vmem:[#allocation4 + $0x8] sm:$0x7f] %v1014
    %1019 = vst [vmem:[#allocation4 + $0x10] sm:$0x7f] %v1015
    %vm1020 = vcmask 260096
    %1021 = vst.msk [vmem:[#allocation4 + $0x18] sm:$0x7f] %vm1020, %v1016
    %v1022 = vld [vmem:[#allocation3 + $0x40] sm:$0xff]
    %v1023 = vld [vmem:[#allocation3 + $0x48] sm:$0xff]
    %v1024 = vld [vmem:[#allocation3 + $0x50] sm:$0xff]
    %v1025 = vld [vmem:[#allocation3 + $0x58] sm:$0xff]
    %v1026 = vld [vmem:[#allocation3 + $0x60] sm:$0xff]
    %v1027 = vld [vmem:[#allocation3 + $0x68] sm:$0xff]
    %v1028 = vld [vmem:[#allocation3 + $0x70] sm:$0xff]
    %v1029 = vld [vmem:[#allocation3 + $0x78] sm:$0xff]
    %v1034 = vrot.slane %v1022, 1
    %v1035 = vrot.slane %v1023, 1
    %v1036 = vrot.slane %v1024, 1
    %v1037 = vrot.slane %v1025, 1
    %v1042 = vmax.f32 %v1022, %v1034
    %v1043 = vmax.f32 %v1023, %v1035
    %v1044 = vmax.f32 %v1024, %v1036
    %v1045 = vmax.f32 %v1025, %v1037
    %v1050 = vrot.slane %v1026, 1
    %v1051 = vrot.slane %v1027, 1
    %v1052 = vrot.slane %v1028, 1
    %v1053 = vrot.slane %v1029, 1
    %v1058 = vmax.f32 %v1026, %v1050
    %v1059 = vmax.f32 %v1027, %v1051
    %v1060 = vmax.f32 %v1028, %v1052
    %v1061 = vmax.f32 %v1029, %v1053
    %v1066 = vrot.slane %v1042, 1
    %v1067 = vrot.slane %v1043, 1
    %v1068 = vrot.slane %v1044, 1
    %v1069 = vrot.slane %v1045, 1
    %v1074 = vrot.slane %v1042, 2
    %v1075 = vrot.slane %v1043, 2
    %v1076 = vrot.slane %v1044, 2
    %v1077 = vrot.slane %v1045, 2
    %v1082 = vrot.slane %v1042, 3
    %v1083 = vrot.slane %v1043, 3
    %v1084 = vrot.slane %v1044, 3
    %v1085 = vrot.slane %v1045, 3
    %v1094 = vrot.slane %v1058, 4
    %v1095 = vrot.slane %v1059, 4
    %v1096 = vrot.slane %v1060, 4
    %v1097 = vrot.slane %v1061, 4
    %v1102 = vrot.slane %v1058, 5
    %v1103 = vrot.slane %v1059, 5
    %v1104 = vrot.slane %v1060, 5
    %v1105 = vrot.slane %v1061, 5
    %v1110 = vrot.slane %v1058, 6
    %v1111 = vrot.slane %v1059, 6
    %v1112 = vrot.slane %v1060, 6
    %v1113 = vrot.slane %v1061, 6
    %v1118 = vsel %vm964, %v1042, %v1066
    %v1119 = vsel %vm964, %v1043, %v1067
    %v1120 = vsel %vm964, %v1044, %v1068
    %v1121 = vsel %vm964, %v1045, %v1069
    %v1122 = vsel %vm969, %v1118, %v1074
    %v1123 = vsel %vm969, %v1119, %v1075
    %v1124 = vsel %vm969, %v1120, %v1076
    %v1125 = vsel %vm969, %v1121, %v1077
    %v1126 = vsel %vm974, %v1122, %v1082
    %v1127 = vsel %vm974, %v1123, %v1083
    %v1128 = vsel %vm974, %v1124, %v1084
    %v1129 = vsel %vm974, %v1125, %v1085
    %v1130 = vsel %vm979, %v1126, %v1094
    %v1131 = vsel %vm979, %v1127, %v1095
    %v1132 = vsel %vm979, %v1128, %v1096
    %v1133 = vsel %vm979, %v1129, %v1097
    %v1134 = vsel %vm984, %v1130, %v1102
    %v1135 = vsel %vm984, %v1131, %v1103
    %v1136 = vsel %vm984, %v1132, %v1104
    %v1137 = vsel %vm984, %v1133, %v1105
    %v1138 = vsel %vm989, %v1134, %v1110
    %v1139 = vsel %vm989, %v1135, %v1111
    %v1140 = vsel %vm989, %v1136, %v1112
    %v1141 = vsel %vm989, %v1137, %v1113
    %1146 = vrot.lane.b32.xlu0 %v1138, 96
    %v1147 = vpop.permute.xlu0 %1146
    %1148 = vrot.lane.b32.xlu0 %v1139, 96
    %v1149 = vpop.permute.xlu0 %1148
    %1150 = vrot.lane.b32.xlu0 %v1140, 96
    %v1151 = vpop.permute.xlu0 %1150
    %1152 = vrot.lane.b32.xlu0 %v1141, 96
    %v1153 = vpop.permute.xlu0 %1152
    %v1154 = vsel %vm74, %v1147, %v1149
    %v1155 = vsel %vm74, %v1149, %v1151
    %v1156 = vsel %vm74, %v1151, %v1153
    %v1161 = vmax.f32 %v1138, %v1154
    %v1162 = vmax.f32 %v1139, %v1155
    %v1163 = vmax.f32 %v1140, %v1156
    %v1164 = vmax.f32 %v1141, %v1153
    %1165 = vst [vmem:[#allocation4 + $0x20] sm:$0x7f] %v1161
    %1166 = vst [vmem:[#allocation4 + $0x28] sm:$0x7f] %v1162
    %1167 = vst [vmem:[#allocation4 + $0x30] sm:$0x7f] %v1163
    %1168 = vst.msk [vmem:[#allocation4 + $0x38] sm:$0x7f] %vm1020, %v1164
    %v1169 = vld [vmem:[#allocation3 + $0x80] sm:$0xff]
    %v1170 = vld [vmem:[#allocation3 + $0x88] sm:$0xff]
    %v1171 = vld [vmem:[#allocation3 + $0x90] sm:$0xff]
    %v1172 = vld [vmem:[#allocation3 + $0x98] sm:$0xff]
    %v1173 = vld [vmem:[#allocation3 + $0xa0] sm:$0xff]
    %v1174 = vld [vmem:[#allocation3 + $0xa8] sm:$0xff]
    %v1175 = vld [vmem:[#allocation3 + $0xb0] sm:$0xff]
    %v1176 = vld [vmem:[#allocation3 + $0xb8] sm:$0xff]
    %v1181 = vrot.slane %v1169, 1
    %v1182 = vrot.slane %v1170, 1
    %v1183 = vrot.slane %v1171, 1
    %v1184 = vrot.slane %v1172, 1
    %v1189 = vmax.f32 %v1169, %v1181
    %v1190 = vmax.f32 %v1170, %v1182
    %v1191 = vmax.f32 %v1171, %v1183
    %v1192 = vmax.f32 %v1172, %v1184
    %v1197 = vrot.slane %v1173, 1
    %v1198 = vrot.slane %v1174, 1
    %v1199 = vrot.slane %v1175, 1
    %v1200 = vrot.slane %v1176, 1
    %v1205 = vmax.f32 %v1173, %v1197
    %v1206 = vmax.f32 %v1174, %v1198
    %v1207 = vmax.f32 %v1175, %v1199
    %v1208 = vmax.f32 %v1176, %v1200
    %v1213 = vrot.slane %v1189, 1
    %v1214 = vrot.slane %v1190, 1
    %v1215 = vrot.slane %v1191, 1
    %v1216 = vrot.slane %v1192, 1
    %v1221 = vrot.slane %v1189, 2
    %v1222 = vrot.slane %v1190, 2
    %v1223 = vrot.slane %v1191, 2
    %v1224 = vrot.slane %v1192, 2
    %v1229 = vrot.slane %v1189, 3
    %v1230 = vrot.slane %v1190, 3
    %v1231 = vrot.slane %v1191, 3
    %v1232 = vrot.slane %v1192, 3
    %v1241 = vrot.slane %v1205, 4
    %v1242 = vrot.slane %v1206, 4
    %v1243 = vrot.slane %v1207, 4
    %v1244 = vrot.slane %v1208, 4
    %v1249 = vrot.slane %v1205, 5
    %v1250 = vrot.slane %v1206, 5
    %v1251 = vrot.slane %v1207, 5
    %v1252 = vrot.slane %v1208, 5
    %v1257 = vrot.slane %v1205, 6
    %v1258 = vrot.slane %v1206, 6
    %v1259 = vrot.slane %v1207, 6
    %v1260 = vrot.slane %v1208, 6
    %v1265 = vsel %vm964, %v1189, %v1213
    %v1266 = vsel %vm964, %v1190, %v1214
    %v1267 = vsel %vm964, %v1191, %v1215
    %v1268 = vsel %vm964, %v1192, %v1216
    %v1269 = vsel %vm969, %v1265, %v1221
    %v1270 = vsel %vm969, %v1266, %v1222
    %v1271 = vsel %vm969, %v1267, %v1223
    %v1272 = vsel %vm969, %v1268, %v1224
    %v1273 = vsel %vm974, %v1269, %v1229
    %v1274 = vsel %vm974, %v1270, %v1230
    %v1275 = vsel %vm974, %v1271, %v1231
    %v1276 = vsel %vm974, %v1272, %v1232
    %v1277 = vsel %vm979, %v1273, %v1241
    %v1278 = vsel %vm979, %v1274, %v1242
    %v1279 = vsel %vm979, %v1275, %v1243
    %v1280 = vsel %vm979, %v1276, %v1244
    %v1281 = vsel %vm984, %v1277, %v1249
    %v1282 = vsel %vm984, %v1278, %v1250
    %v1283 = vsel %vm984, %v1279, %v1251
    %v1284 = vsel %vm984, %v1280, %v1252
    %v1285 = vsel %vm989, %v1281, %v1257
    %v1286 = vsel %vm989, %v1282, %v1258
    %v1287 = vsel %vm989, %v1283, %v1259
    %v1288 = vsel %vm989, %v1284, %v1260
    %1293 = vrot.lane.b32.xlu0 %v1285, 96
    %v1294 = vpop.permute.xlu0 %1293
    %1295 = vrot.lane.b32.xlu0 %v1286, 96
    %v1296 = vpop.permute.xlu0 %1295
    %1297 = vrot.lane.b32.xlu0 %v1287, 96
    %v1298 = vpop.permute.xlu0 %1297
    %1299 = vrot.lane.b32.xlu0 %v1288, 96
    %v1300 = vpop.permute.xlu0 %1299
    %v1301 = vsel %vm74, %v1294, %v1296
    %v1302 = vsel %vm74, %v1296, %v1298
    %v1303 = vsel %vm74, %v1298, %v1300
    %v1308 = vmax.f32 %v1285, %v1301
    %v1309 = vmax.f32 %v1286, %v1302
    %v1310 = vmax.f32 %v1287, %v1303
    %v1311 = vmax.f32 %v1288, %v1300
    %1312 = vst [vmem:[#allocation4 + $0x40] sm:$0x7f] %v1308
    %1313 = vst [vmem:[#allocation4 + $0x48] sm:$0x7f] %v1309
    %1314 = vst [vmem:[#allocation4 + $0x50] sm:$0x7f] %v1310
    %1315 = vst.msk [vmem:[#allocation4 + $0x58] sm:$0x7f] %vm1020, %v1311
    %v1316 = vld [vmem:[#allocation3 + $0xc0] sm:$0xff]
    %v1317 = vld [vmem:[#allocation3 + $0xc8] sm:$0xff]
    %v1318 = vld [vmem:[#allocation3 + $0xd0] sm:$0xff]
    %v1319 = vld [vmem:[#allocation3 + $0xd8] sm:$0xff]
    %v1320 = vld [vmem:[#allocation3 + $0xe0] sm:$0xff]
    %v1321 = vld [vmem:[#allocation3 + $0xe8] sm:$0xff]
    %v1322 = vld [vmem:[#allocation3 + $0xf0] sm:$0xff]
    %v1323 = vld [vmem:[#allocation3 + $0xf8] sm:$0xff]
    %v1328 = vrot.slane %v1316, 1
    %v1329 = vrot.slane %v1317, 1
    %v1330 = vrot.slane %v1318, 1
    %v1331 = vrot.slane %v1319, 1
    %v1336 = vmax.f32 %v1316, %v1328
    %v1337 = vmax.f32 %v1317, %v1329
    %v1338 = vmax.f32 %v1318, %v1330
    %v1339 = vmax.f32 %v1319, %v1331
    %v1344 = vrot.slane %v1320, 1
    %v1345 = vrot.slane %v1321, 1
    %v1346 = vrot.slane %v1322, 1
    %v1347 = vrot.slane %v1323, 1
    %v1352 = vmax.f32 %v1320, %v1344
    %v1353 = vmax.f32 %v1321, %v1345
    %v1354 = vmax.f32 %v1322, %v1346
    %v1355 = vmax.f32 %v1323, %v1347
    %v1360 = vrot.slane %v1336, 1
    %v1361 = vrot.slane %v1337, 1
    %v1362 = vrot.slane %v1338, 1
    %v1363 = vrot.slane %v1339, 1
    %v1368 = vrot.slane %v1336, 2
    %v1369 = vrot.slane %v1337, 2
    %v1370 = vrot.slane %v1338, 2
    %v1371 = vrot.slane %v1339, 2
    %v1376 = vrot.slane %v1336, 3
    %v1377 = vrot.slane %v1337, 3
    %v1378 = vrot.slane %v1338, 3
    %v1379 = vrot.slane %v1339, 3
    %v1388 = vrot.slane %v1352, 4
    %v1389 = vrot.slane %v1353, 4
    %v1390 = vrot.slane %v1354, 4
    %v1391 = vrot.slane %v1355, 4
    %v1396 = vrot.slane %v1352, 5
    %v1397 = vrot.slane %v1353, 5
    %v1398 = vrot.slane %v1354, 5
    %v1399 = vrot.slane %v1355, 5
    %v1404 = vrot.slane %v1352, 6
    %v1405 = vrot.slane %v1353, 6
    %v1406 = vrot.slane %v1354, 6
    %v1407 = vrot.slane %v1355, 6
    %v1412 = vsel %vm964, %v1336, %v1360
    %v1413 = vsel %vm964, %v1337, %v1361
    %v1414 = vsel %vm964, %v1338, %v1362
    %v1415 = vsel %vm964, %v1339, %v1363
    %v1416 = vsel %vm969, %v1412, %v1368
    %v1417 = vsel %vm969, %v1413, %v1369
    %v1418 = vsel %vm969, %v1414, %v1370
    %v1419 = vsel %vm969, %v1415, %v1371
    %v1420 = vsel %vm974, %v1416, %v1376
    %v1421 = vsel %vm974, %v1417, %v1377
    %v1422 = vsel %vm974, %v1418, %v1378
    %v1423 = vsel %vm974, %v1419, %v1379
    %v1424 = vsel %vm979, %v1420, %v1388
    %v1425 = vsel %vm979, %v1421, %v1389
    %v1426 = vsel %vm979, %v1422, %v1390
    %v1427 = vsel %vm979, %v1423, %v1391
    %v1428 = vsel %vm984, %v1424, %v1396
    %v1429 = vsel %vm984, %v1425, %v1397
    %v1430 = vsel %vm984, %v1426, %v1398
    %v1431 = vsel %vm984, %v1427, %v1399
    %v1432 = vsel %vm989, %v1428, %v1404
    %v1433 = vsel %vm989, %v1429, %v1405
    %v1434 = vsel %vm989, %v1430, %v1406
    %v1435 = vsel %vm989, %v1431, %v1407
    %1440 = vrot.lane.b32.xlu0 %v1432, 96
    %v1441 = vpop.permute.xlu0 %1440
    %1442 = vrot.lane.b32.xlu0 %v1433, 96
    %v1443 = vpop.permute.xlu0 %1442
    %1444 = vrot.lane.b32.xlu0 %v1434, 96
    %v1445 = vpop.permute.xlu0 %1444
    %1446 = vrot.lane.b32.xlu0 %v1435, 96
    %v1447 = vpop.permute.xlu0 %1446
    %v1448 = vsel %vm74, %v1441, %v1443
    %v1449 = vsel %vm74, %v1443, %v1445
    %v1450 = vsel %vm74, %v1445, %v1447
    %v1455 = vmax.f32 %v1432, %v1448
    %v1456 = vmax.f32 %v1433, %v1449
    %v1457 = vmax.f32 %v1434, %v1450
    %v1458 = vmax.f32 %v1435, %v1447
    %1459 = vst [vmem:[#allocation4 + $0x60] sm:$0x7f] %v1455
    %1460 = vst [vmem:[#allocation4 + $0x68] sm:$0x7f] %v1456
    %1461 = vst [vmem:[#allocation4 + $0x70] sm:$0x7f] %v1457
    %1462 = vst.msk [vmem:[#allocation4 + $0x78] sm:$0x7f] %vm1020, %v1458
    %v1463 = vld [vmem:[#allocation3 + $0x100] sm:$0xff]
    %v1464 = vld [vmem:[#allocation3 + $0x108] sm:$0xff]
    %v1465 = vld [vmem:[#allocation3 + $0x110] sm:$0xff]
    %v1466 = vld [vmem:[#allocation3 + $0x118] sm:$0xff]
    %v1467 = vld [vmem:[#allocation3 + $0x120] sm:$0xff]
    %v1468 = vld [vmem:[#allocation3 + $0x128] sm:$0xff]
    %v1469 = vld [vmem:[#allocation3 + $0x130] sm:$0xff]
    %v1470 = vld [vmem:[#allocation3 + $0x138] sm:$0xff]
    %v1475 = vrot.slane %v1463, 1
    %v1476 = vrot.slane %v1464, 1
    %v1477 = vrot.slane %v1465, 1
    %v1478 = vrot.slane %v1466, 1
    %v1483 = vmax.f32 %v1463, %v1475
    %v1484 = vmax.f32 %v1464, %v1476
    %v1485 = vmax.f32 %v1465, %v1477
    %v1486 = vmax.f32 %v1466, %v1478
    %v1491 = vrot.slane %v1467, 1
    %v1492 = vrot.slane %v1468, 1
    %v1493 = vrot.slane %v1469, 1
    %v1494 = vrot.slane %v1470, 1
    %v1499 = vmax.f32 %v1467, %v1491
    %v1500 = vmax.f32 %v1468, %v1492
    %v1501 = vmax.f32 %v1469, %v1493
    %v1502 = vmax.f32 %v1470, %v1494
    %v1507 = vrot.slane %v1483, 1
    %v1508 = vrot.slane %v1484, 1
    %v1509 = vrot.slane %v1485, 1
    %v1510 = vrot.slane %v1486, 1
    %v1515 = vrot.slane %v1483, 2
    %v1516 = vrot.slane %v1484, 2
    %v1517 = vrot.slane %v1485, 2
    %v1518 = vrot.slane %v1486, 2
    %v1523 = vrot.slane %v1483, 3
    %v1524 = vrot.slane %v1484, 3
    %v1525 = vrot.slane %v1485, 3
    %v1526 = vrot.slane %v1486, 3
    %v1535 = vrot.slane %v1499, 4
    %v1536 = vrot.slane %v1500, 4
    %v1537 = vrot.slane %v1501, 4
    %v1538 = vrot.slane %v1502, 4
    %v1543 = vrot.slane %v1499, 5
    %v1544 = vrot.slane %v1500, 5
    %v1545 = vrot.slane %v1501, 5
    %v1546 = vrot.slane %v1502, 5
    %v1551 = vrot.slane %v1499, 6
    %v1552 = vrot.slane %v1500, 6
    %v1553 = vrot.slane %v1501, 6
    %v1554 = vrot.slane %v1502, 6
    %v1559 = vsel %vm964, %v1483, %v1507
    %v1560 = vsel %vm964, %v1484, %v1508
    %v1561 = vsel %vm964, %v1485, %v1509
    %v1562 = vsel %vm964, %v1486, %v1510
    %v1563 = vsel %vm969, %v1559, %v1515
    %v1564 = vsel %vm969, %v1560, %v1516
    %v1565 = vsel %vm969, %v1561, %v1517
    %v1566 = vsel %vm969, %v1562, %v1518
    %v1567 = vsel %vm974, %v1563, %v1523
    %v1568 = vsel %vm974, %v1564, %v1524
    %v1569 = vsel %vm974, %v1565, %v1525
    %v1570 = vsel %vm974, %v1566, %v1526
    %v1571 = vsel %vm979, %v1567, %v1535
    %v1572 = vsel %vm979, %v1568, %v1536
    %v1573 = vsel %vm979, %v1569, %v1537
    %v1574 = vsel %vm979, %v1570, %v1538
    %v1575 = vsel %vm984, %v1571, %v1543
    %v1576 = vsel %vm984, %v1572, %v1544
    %v1577 = vsel %vm984, %v1573, %v1545
    %v1578 = vsel %vm984, %v1574, %v1546
    %v1579 = vsel %vm989, %v1575, %v1551
    %v1580 = vsel %vm989, %v1576, %v1552
    %v1581 = vsel %vm989, %v1577, %v1553
    %v1582 = vsel %vm989, %v1578, %v1554
    %1587 = vrot.lane.b32.xlu0 %v1579, 96
    %v1588 = vpop.permute.xlu0 %1587
    %1589 = vrot.lane.b32.xlu0 %v1580, 96
    %v1590 = vpop.permute.xlu0 %1589
    %1591 = vrot.lane.b32.xlu0 %v1581, 96
    %v1592 = vpop.permute.xlu0 %1591
    %1593 = vrot.lane.b32.xlu0 %v1582, 96
    %v1594 = vpop.permute.xlu0 %1593
    %v1595 = vsel %vm74, %v1588, %v1590
    %v1596 = vsel %vm74, %v1590, %v1592
    %v1597 = vsel %vm74, %v1592, %v1594
    %v1602 = vmax.f32 %v1579, %v1595
    %v1603 = vmax.f32 %v1580, %v1596
    %v1604 = vmax.f32 %v1581, %v1597
    %v1605 = vmax.f32 %v1582, %v1594
    %1606 = vst [vmem:[#allocation4 + $0x80] sm:$0x7f] %v1602
    %1607 = vst [vmem:[#allocation4 + $0x88] sm:$0x7f] %v1603
    %1608 = vst [vmem:[#allocation4 + $0x90] sm:$0x7f] %v1604
    %1609 = vst.msk [vmem:[#allocation4 + $0x98] sm:$0x7f] %vm1020, %v1605
    %v1610 = vld [vmem:[#allocation3 + $0x140] sm:$0xff]
    %v1611 = vld [vmem:[#allocation3 + $0x148] sm:$0xff]
    %v1612 = vld [vmem:[#allocation3 + $0x150] sm:$0xff]
    %v1613 = vld [vmem:[#allocation3 + $0x158] sm:$0xff]
    %v1614 = vld [vmem:[#allocation3 + $0x160] sm:$0xff]
    %v1615 = vld [vmem:[#allocation3 + $0x168] sm:$0xff]
    %v1616 = vld [vmem:[#allocation3 + $0x170] sm:$0xff]
    %v1617 = vld [vmem:[#allocation3 + $0x178] sm:$0xff]
    %v1622 = vrot.slane %v1610, 1
    %v1623 = vrot.slane %v1611, 1
    %v1624 = vrot.slane %v1612, 1
    %v1625 = vrot.slane %v1613, 1
    %v1630 = vmax.f32 %v1610, %v1622
    %v1631 = vmax.f32 %v1611, %v1623
    %v1632 = vmax.f32 %v1612, %v1624
    %v1633 = vmax.f32 %v1613, %v1625
    %v1638 = vrot.slane %v1614, 1
    %v1639 = vrot.slane %v1615, 1
    %v1640 = vrot.slane %v1616, 1
    %v1641 = vrot.slane %v1617, 1
    %v1646 = vmax.f32 %v1614, %v1638
    %v1647 = vmax.f32 %v1615, %v1639
    %v1648 = vmax.f32 %v1616, %v1640
    %v1649 = vmax.f32 %v1617, %v1641
    %v1654 = vrot.slane %v1630, 1
    %v1655 = vrot.slane %v1631, 1
    %v1656 = vrot.slane %v1632, 1
    %v1657 = vrot.slane %v1633, 1
    %v1662 = vrot.slane %v1630, 2
    %v1663 = vrot.slane %v1631, 2
    %v1664 = vrot.slane %v1632, 2
    %v1665 = vrot.slane %v1633, 2
    %v1670 = vrot.slane %v1630, 3
    %v1671 = vrot.slane %v1631, 3
    %v1672 = vrot.slane %v1632, 3
    %v1673 = vrot.slane %v1633, 3
    %v1682 = vrot.slane %v1646, 4
    %v1683 = vrot.slane %v1647, 4
    %v1684 = vrot.slane %v1648, 4
    %v1685 = vrot.slane %v1649, 4
    %v1690 = vrot.slane %v1646, 5
    %v1691 = vrot.slane %v1647, 5
    %v1692 = vrot.slane %v1648, 5
    %v1693 = vrot.slane %v1649, 5
    %v1698 = vrot.slane %v1646, 6
    %v1699 = vrot.slane %v1647, 6
    %v1700 = vrot.slane %v1648, 6
    %v1701 = vrot.slane %v1649, 6
    %v1706 = vsel %vm964, %v1630, %v1654
    %v1707 = vsel %vm964, %v1631, %v1655
    %v1708 = vsel %vm964, %v1632, %v1656
    %v1709 = vsel %vm964, %v1633, %v1657
    %v1710 = vsel %vm969, %v1706, %v1662
    %v1711 = vsel %vm969, %v1707, %v1663
    %v1712 = vsel %vm969, %v1708, %v1664
    %v1713 = vsel %vm969, %v1709, %v1665
    %v1714 = vsel %vm974, %v1710, %v1670
    %v1715 = vsel %vm974, %v1711, %v1671
    %v1716 = vsel %vm974, %v1712, %v1672
    %v1717 = vsel %vm974, %v1713, %v1673
    %v1718 = vsel %vm979, %v1714, %v1682
    %v1719 = vsel %vm979, %v1715, %v1683
    %v1720 = vsel %vm979, %v1716, %v1684
    %v1721 = vsel %vm979, %v1717, %v1685
    %v1722 = vsel %vm984, %v1718, %v1690
    %v1723 = vsel %vm984, %v1719, %v1691
    %v1724 = vsel %vm984, %v1720, %v1692
    %v1725 = vsel %vm984, %v1721, %v1693
    %v1726 = vsel %vm989, %v1722, %v1698
    %v1727 = vsel %vm989, %v1723, %v1699
    %v1728 = vsel %vm989, %v1724, %v1700
    %v1729 = vsel %vm989, %v1725, %v1701
    %1734 = vrot.lane.b32.xlu0 %v1726, 96
    %v1735 = vpop.permute.xlu0 %1734
    %1736 = vrot.lane.b32.xlu0 %v1727, 96
    %v1737 = vpop.permute.xlu0 %1736
    %1738 = vrot.lane.b32.xlu0 %v1728, 96
    %v1739 = vpop.permute.xlu0 %1738
    %1740 = vrot.lane.b32.xlu0 %v1729, 96
    %v1741 = vpop.permute.xlu0 %1740
    %v1742 = vsel %vm74, %v1735, %v1737
    %v1743 = vsel %vm74, %v1737, %v1739
    %v1744 = vsel %vm74, %v1739, %v1741
    %v1749 = vmax.f32 %v1726, %v1742
    %v1750 = vmax.f32 %v1727, %v1743
    %v1751 = vmax.f32 %v1728, %v1744
    %v1752 = vmax.f32 %v1729, %v1741
    %1753 = vst [vmem:[#allocation4 + $0xa0] sm:$0x7f] %v1749
    %1754 = vst [vmem:[#allocation4 + $0xa8] sm:$0x7f] %v1750
    %1755 = vst [vmem:[#allocation4 + $0xb0] sm:$0x7f] %v1751
    %1756 = vst.msk [vmem:[#allocation4 + $0xb8] sm:$0x7f] %vm1020, %v1752
    %v1757 = vld [vmem:[#allocation3 + $0x180] sm:$0xff]
    %v1758 = vld [vmem:[#allocation3 + $0x188] sm:$0xff]
    %v1759 = vld [vmem:[#allocation3 + $0x190] sm:$0xff]
    %v1760 = vld [vmem:[#allocation3 + $0x198] sm:$0xff]
    %v1761 = vld [vmem:[#allocation3 + $0x1a0] sm:$0xff]
    %v1762 = vld [vmem:[#allocation3 + $0x1a8] sm:$0xff]
    %v1763 = vld [vmem:[#allocation3 + $0x1b0] sm:$0xff]
    %v1764 = vld [vmem:[#allocation3 + $0x1b8] sm:$0xff]
    %v1769 = vrot.slane %v1757, 1
    %v1770 = vrot.slane %v1758, 1
    %v1771 = vrot.slane %v1759, 1
    %v1772 = vrot.slane %v1760, 1
    %v1777 = vmax.f32 %v1757, %v1769
    %v1778 = vmax.f32 %v1758, %v1770
    %v1779 = vmax.f32 %v1759, %v1771
    %v1780 = vmax.f32 %v1760, %v1772
    %v1785 = vrot.slane %v1761, 1
    %v1786 = vrot.slane %v1762, 1
    %v1787 = vrot.slane %v1763, 1
    %v1788 = vrot.slane %v1764, 1
    %v1793 = vmax.f32 %v1761, %v1785
    %v1794 = vmax.f32 %v1762, %v1786
    %v1795 = vmax.f32 %v1763, %v1787
    %v1796 = vmax.f32 %v1764, %v1788
    %v1801 = vrot.slane %v1777, 1
    %v1802 = vrot.slane %v1778, 1
    %v1803 = vrot.slane %v1779, 1
    %v1804 = vrot.slane %v1780, 1
    %v1809 = vrot.slane %v1777, 2
    %v1810 = vrot.slane %v1778, 2
    %v1811 = vrot.slane %v1779, 2
    %v1812 = vrot.slane %v1780, 2
    %v1817 = vrot.slane %v1777, 3
    %v1818 = vrot.slane %v1778, 3
    %v1819 = vrot.slane %v1779, 3
    %v1820 = vrot.slane %v1780, 3
    %v1829 = vrot.slane %v1793, 4
    %v1830 = vrot.slane %v1794, 4
    %v1831 = vrot.slane %v1795, 4
    %v1832 = vrot.slane %v1796, 4
    %v1837 = vrot.slane %v1793, 5
    %v1838 = vrot.slane %v1794, 5
    %v1839 = vrot.slane %v1795, 5
    %v1840 = vrot.slane %v1796, 5
    %v1845 = vrot.slane %v1793, 6
    %v1846 = vrot.slane %v1794, 6
    %v1847 = vrot.slane %v1795, 6
    %v1848 = vrot.slane %v1796, 6
    %v1853 = vsel %vm964, %v1777, %v1801
    %v1854 = vsel %vm964, %v1778, %v1802
    %v1855 = vsel %vm964, %v1779, %v1803
    %v1856 = vsel %vm964, %v1780, %v1804
    %v1857 = vsel %vm969, %v1853, %v1809
    %v1858 = vsel %vm969, %v1854, %v1810
    %v1859 = vsel %vm969, %v1855, %v1811
    %v1860 = vsel %vm969, %v1856, %v1812
    %v1861 = vsel %vm974, %v1857, %v1817
    %v1862 = vsel %vm974, %v1858, %v1818
    %v1863 = vsel %vm974, %v1859, %v1819
    %v1864 = vsel %vm974, %v1860, %v1820
    %v1865 = vsel %vm979, %v1861, %v1829
    %v1866 = vsel %vm979, %v1862, %v1830
    %v1867 = vsel %vm979, %v1863, %v1831
    %v1868 = vsel %vm979, %v1864, %v1832
    %v1869 = vsel %vm984, %v1865, %v1837
    %v1870 = vsel %vm984, %v1866, %v1838
    %v1871 = vsel %vm984, %v1867, %v1839
    %v1872 = vsel %vm984, %v1868, %v1840
    %v1873 = vsel %vm989, %v1869, %v1845
    %v1874 = vsel %vm989, %v1870, %v1846
    %v1875 = vsel %vm989, %v1871, %v1847
    %v1876 = vsel %vm989, %v1872, %v1848
    %1881 = vrot.lane.b32.xlu0 %v1873, 96
    %v1882 = vpop.permute.xlu0 %1881
    %1883 = vrot.lane.b32.xlu0 %v1874, 96
    %v1884 = vpop.permute.xlu0 %1883
    %1885 = vrot.lane.b32.xlu0 %v1875, 96
    %v1886 = vpop.permute.xlu0 %1885
    %1887 = vrot.lane.b32.xlu0 %v1876, 96
    %v1888 = vpop.permute.xlu0 %1887
    %v1889 = vsel %vm74, %v1882, %v1884
    %v1890 = vsel %vm74, %v1884, %v1886
    %v1891 = vsel %vm74, %v1886, %v1888
    %v1896 = vmax.f32 %v1873, %v1889
    %v1897 = vmax.f32 %v1874, %v1890
    %v1898 = vmax.f32 %v1875, %v1891
    %v1899 = vmax.f32 %v1876, %v1888
    %1900 = vst [vmem:[#allocation4 + $0xc0] sm:$0x7f] %v1896
    %1901 = vst [vmem:[#allocation4 + $0xc8] sm:$0x7f] %v1897
    %1902 = vst [vmem:[#allocation4 + $0xd0] sm:$0x7f] %v1898
    %1903 = vst.msk [vmem:[#allocation4 + $0xd8] sm:$0x7f] %vm1020, %v1899
    %v1904 = vld [vmem:[#allocation3 + $0x1c0] sm:$0xff]
    %v1905 = vld [vmem:[#allocation3 + $0x1c8] sm:$0xff]
    %v1906 = vld [vmem:[#allocation3 + $0x1d0] sm:$0xff]
    %v1907 = vld [vmem:[#allocation3 + $0x1d8] sm:$0xff]
    %v1908 = vld [vmem:[#allocation3 + $0x1e0] sm:$0xff]
    %v1909 = vld [vmem:[#allocation3 + $0x1e8] sm:$0xff]
    %v1910 = vld [vmem:[#allocation3 + $0x1f0] sm:$0xff]
    %v1911 = vld [vmem:[#allocation3 + $0x1f8] sm:$0xff]
    %v1916 = vrot.slane %v1904, 1
    %v1917 = vrot.slane %v1905, 1
    %v1918 = vrot.slane %v1906, 1
    %v1919 = vrot.slane %v1907, 1
    %v1924 = vmax.f32 %v1904, %v1916
    %v1925 = vmax.f32 %v1905, %v1917
    %v1926 = vmax.f32 %v1906, %v1918
    %v1927 = vmax.f32 %v1907, %v1919
    %v1932 = vrot.slane %v1908, 1
    %v1933 = vrot.slane %v1909, 1
    %v1934 = vrot.slane %v1910, 1
    %v1935 = vrot.slane %v1911, 1
    %v1940 = vmax.f32 %v1908, %v1932
    %v1941 = vmax.f32 %v1909, %v1933
    %v1942 = vmax.f32 %v1910, %v1934
    %v1943 = vmax.f32 %v1911, %v1935
    %v1948 = vrot.slane %v1924, 1
    %v1949 = vrot.slane %v1925, 1
    %v1950 = vrot.slane %v1926, 1
    %v1951 = vrot.slane %v1927, 1
    %v1956 = vrot.slane %v1924, 2
    %v1957 = vrot.slane %v1925, 2
    %v1958 = vrot.slane %v1926, 2
    %v1959 = vrot.slane %v1927, 2
    %v1964 = vrot.slane %v1924, 3
    %v1965 = vrot.slane %v1925, 3
    %v1966 = vrot.slane %v1926, 3
    %v1967 = vrot.slane %v1927, 3
    %v1976 = vrot.slane %v1940, 4
    %v1977 = vrot.slane %v1941, 4
    %v1978 = vrot.slane %v1942, 4
    %v1979 = vrot.slane %v1943, 4
    %v1984 = vrot.slane %v1940, 5
    %v1985 = vrot.slane %v1941, 5
    %v1986 = vrot.slane %v1942, 5
    %v1987 = vrot.slane %v1943, 5
    %v1992 = vrot.slane %v1940, 6
    %v1993 = vrot.slane %v1941, 6
    %v1994 = vrot.slane %v1942, 6
    %v1995 = vrot.slane %v1943, 6
    %v2000 = vsel %vm964, %v1924, %v1948
    %v2001 = vsel %vm964, %v1925, %v1949
    %v2002 = vsel %vm964, %v1926, %v1950
    %v2003 = vsel %vm964, %v1927, %v1951
    %v2004 = vsel %vm969, %v2000, %v1956
    %v2005 = vsel %vm969, %v2001, %v1957
    %v2006 = vsel %vm969, %v2002, %v1958
    %v2007 = vsel %vm969, %v2003, %v1959
    %v2008 = vsel %vm974, %v2004, %v1964
    %v2009 = vsel %vm974, %v2005, %v1965
    %v2010 = vsel %vm974, %v2006, %v1966
    %v2011 = vsel %vm974, %v2007, %v1967
    %v2012 = vsel %vm979, %v2008, %v1976
    %v2013 = vsel %vm979, %v2009, %v1977
    %v2014 = vsel %vm979, %v2010, %v1978
    %v2015 = vsel %vm979, %v2011, %v1979
    %v2016 = vsel %vm984, %v2012, %v1984
    %v2017 = vsel %vm984, %v2013, %v1985
    %v2018 = vsel %vm984, %v2014, %v1986
    %v2019 = vsel %vm984, %v2015, %v1987
    %v2020 = vsel %vm989, %v2016, %v1992
    %v2021 = vsel %vm989, %v2017, %v1993
    %v2022 = vsel %vm989, %v2018, %v1994
    %v2023 = vsel %vm989, %v2019, %v1995
    %2028 = vrot.lane.b32.xlu0 %v2020, 96
    %v2029 = vpop.permute.xlu0 %2028
    %2030 = vrot.lane.b32.xlu0 %v2021, 96
    %v2031 = vpop.permute.xlu0 %2030
    %2032 = vrot.lane.b32.xlu0 %v2022, 96
    %v2033 = vpop.permute.xlu0 %2032
    %2034 = vrot.lane.b32.xlu0 %v2023, 96
    %v2035 = vpop.permute.xlu0 %2034
    %v2036 = vsel %vm74, %v2029, %v2031
    %v2037 = vsel %vm74, %v2031, %v2033
    %v2038 = vsel %vm74, %v2033, %v2035
    %v2043 = vmax.f32 %v2020, %v2036
    %v2044 = vmax.f32 %v2021, %v2037
    %v2045 = vmax.f32 %v2022, %v2038
    %v2046 = vmax.f32 %v2023, %v2035
    %2047 = vst [vmem:[#allocation4 + $0xe0] sm:$0x7f] %v2043
    %2048 = vst [vmem:[#allocation4 + $0xe8] sm:$0x7f] %v2044
    %2049 = vst [vmem:[#allocation4 + $0xf0] sm:$0x7f] %v2045
    %2050 = vst.msk [vmem:[#allocation4 + $0xf8] sm:$0x7f] %vm1020, %v2046
    %v2051 = vld [vmem:[#allocation4] sm:$0x3f]
    %v2052 = vld [vmem:[#allocation4 + $0x8] sm:$0x3f]
    %v2053 = vld [vmem:[#allocation4 + $0x10] sm:$0x3f]
    %v2054 = vld [vmem:[#allocation4 + $0x18] sm:$0x3f]
    %v2059 = vrot.slane %v2051, 1
    %v2060 = vrot.slane %v2052, 1
    %v2061 = vrot.slane %v2053, 1
    %v2062 = vrot.slane %v2054, 1
    %2063 = vrot.lane.b32.xlu0 %v2059, 32
    %v2064 = vpop.permute.xlu0 %2063
    %2065 = vrot.lane.b32.xlu0 %v2060, 32
    %v2066 = vpop.permute.xlu0 %2065
    %2067 = vrot.lane.b32.xlu0 %v2061, 32
    %v2068 = vpop.permute.xlu0 %2067
    %2069 = vrot.lane.b32.xlu0 %v2062, 32
    %v2070 = vpop.permute.xlu0 %2069
    %vm2071 = vcmask 261120
    %v2072 = vsel %vm2071, %v2064, %v2066
    %v2073 = vsel %vm2071, %v2066, %v2068
    %v2074 = vsel %vm2071, %v2068, %v2070
    %v2079 = vrot.slane %v2051, 2
    %v2080 = vrot.slane %v2052, 2
    %v2081 = vrot.slane %v2053, 2
    %v2082 = vrot.slane %v2054, 2
    %2083 = vrot.lane.b32.xlu0 %v2079, 64
    %v2084 = vpop.permute.xlu0 %2083
    %2085 = vrot.lane.b32.xlu0 %v2080, 64
    %v2086 = vpop.permute.xlu0 %2085
    %2087 = vrot.lane.b32.xlu0 %v2081, 64
    %v2088 = vpop.permute.xlu0 %2087
    %2089 = vrot.lane.b32.xlu0 %v2082, 64
    %v2090 = vpop.permute.xlu0 %2089
    %v2091 = vsel %vm806, %v2084, %v2086
    %v2092 = vsel %vm806, %v2086, %v2088
    %v2093 = vsel %vm806, %v2088, %v2090
    %v2098 = vrot.slane %v2051, 3
    %v2099 = vrot.slane %v2052, 3
    %v2100 = vrot.slane %v2053, 3
    %v2101 = vrot.slane %v2054, 3
    %2102 = vrot.lane.b32.xlu0 %v2098, 96
    %v2103 = vpop.permute.xlu0 %2102
    %2104 = vrot.lane.b32.xlu0 %v2099, 96
    %v2105 = vpop.permute.xlu0 %2104
    %2106 = vrot.lane.b32.xlu0 %v2100, 96
    %v2107 = vpop.permute.xlu0 %2106
    %2108 = vrot.lane.b32.xlu0 %v2101, 96
    %v2109 = vpop.permute.xlu0 %2108
    %v2110 = vsel %vm74, %v2103, %v2105
    %v2111 = vsel %vm74, %v2105, %v2107
    %v2112 = vsel %vm74, %v2107, %v2109
    %v2117 = vrot.slane %v2051, 4
    %v2118 = vrot.slane %v2052, 4
    %v2119 = vrot.slane %v2053, 4
    %v2120 = vrot.slane %v2054, 4
    %v2125 = vsel %vm2071, %v2054, %v2064
    %v2126 = vsel %vm806, %v2074, %v2084
    %v2127 = vsel %vm74, %v2093, %v2103
    %v2128 = vld [vmem:[#allocation4 + $0x20] sm:$0x3f]
    %v2129 = vld [vmem:[#allocation4 + $0x28] sm:$0x3f]
    %v2130 = vld [vmem:[#allocation4 + $0x30] sm:$0x3f]
    %v2131 = vld [vmem:[#allocation4 + $0x38] sm:$0x3f]
    %v2136 = vrot.slane %v2128, 1
    %v2137 = vrot.slane %v2129, 1
    %v2138 = vrot.slane %v2130, 1
    %v2139 = vrot.slane %v2131, 1
    %2140 = vrot.lane.b32.xlu0 %v2136, 32
    %v2141 = vpop.permute.xlu0 %2140
    %2142 = vrot.lane.b32.xlu0 %v2137, 32
    %v2143 = vpop.permute.xlu0 %2142
    %2144 = vrot.lane.b32.xlu0 %v2138, 32
    %v2145 = vpop.permute.xlu0 %2144
    %2146 = vrot.lane.b32.xlu0 %v2139, 32
    %v2147 = vpop.permute.xlu0 %2146
    %v2148 = vsel %vm2071, %v2141, %v2143
    %v2149 = vsel %vm2071, %v2143, %v2145
    %v2150 = vsel %vm2071, %v2145, %v2147
    %v2153 = vrot.slane %v2128, 2
    %v2154 = vrot.slane %v2129, 2
    %v2155 = vrot.slane %v2130, 2
    %v2156 = vrot.slane %v2131, 2
    %2157 = vrot.lane.b32.xlu0 %v2153, 64
    %v2158 = vpop.permute.xlu0 %2157
    %2159 = vrot.lane.b32.xlu0 %v2154, 64
    %v2160 = vpop.permute.xlu0 %2159
    %2161 = vrot.lane.b32.xlu0 %v2155, 64
    %v2162 = vpop.permute.xlu0 %2161
    %2163 = vrot.lane.b32.xlu0 %v2156, 64
    %v2164 = vpop.permute.xlu0 %2163
    %v2165 = vsel %vm806, %v2158, %v2160
    %v2166 = vsel %vm806, %v2160, %v2162
    %v2167 = vsel %vm806, %v2162, %v2164
    %v2170 = vrot.slane %v2128, 3
    %v2171 = vrot.slane %v2129, 3
    %v2172 = vrot.slane %v2130, 3
    %v2173 = vrot.slane %v2131, 3
    %2174 = vrot.lane.b32.xlu0 %v2170, 96
    %v2175 = vpop.permute.xlu0 %2174
    %2176 = vrot.lane.b32.xlu0 %v2171, 96
    %v2177 = vpop.permute.xlu0 %2176
    %2178 = vrot.lane.b32.xlu0 %v2172, 96
    %v2179 = vpop.permute.xlu0 %2178
    %2180 = vrot.lane.b32.xlu0 %v2173, 96
    %v2181 = vpop.permute.xlu0 %2180
    %v2182 = vsel %vm74, %v2175, %v2177
    %v2183 = vsel %vm74, %v2177, %v2179
    %v2184 = vsel %vm74, %v2179, %v2181
    %v2186 = vrot.slane %v2128, 4
    %v2187 = vrot.slane %v2129, 4
    %v2188 = vrot.slane %v2130, 4
    %v2189 = vrot.slane %v2131, 4
    %v2190 = vsel %vm2071, %v2131, %v2141
    %v2191 = vsel %vm806, %v2150, %v2158
    %v2192 = vsel %vm74, %v2167, %v2175
    %v2193 = vld [vmem:[#allocation4 + $0x40] sm:$0x3f]
    %v2194 = vld [vmem:[#allocation4 + $0x48] sm:$0x3f]
    %v2195 = vld [vmem:[#allocation4 + $0x50] sm:$0x3f]
    %v2196 = vld [vmem:[#allocation4 + $0x58] sm:$0x3f]
    %v2201 = vrot.slane %v2193, 1
    %v2202 = vrot.slane %v2194, 1
    %v2203 = vrot.slane %v2195, 1
    %v2204 = vrot.slane %v2196, 1
    %2205 = vrot.lane.b32.xlu0 %v2201, 32
    %v2206 = vpop.permute.xlu0 %2205
    %2207 = vrot.lane.b32.xlu0 %v2202, 32
    %v2208 = vpop.permute.xlu0 %2207
    %2209 = vrot.lane.b32.xlu0 %v2203, 32
    %v2210 = vpop.permute.xlu0 %2209
    %2211 = vrot.lane.b32.xlu0 %v2204, 32
    %v2212 = vpop.permute.xlu0 %2211
    %v2213 = vsel %vm2071, %v2206, %v2208
    %v2214 = vsel %vm2071, %v2208, %v2210
    %v2215 = vsel %vm2071, %v2210, %v2212
    %v2218 = vrot.slane %v2193, 2
    %v2219 = vrot.slane %v2194, 2
    %v2220 = vrot.slane %v2195, 2
    %v2221 = vrot.slane %v2196, 2
    %2222 = vrot.lane.b32.xlu0 %v2218, 64
    %v2223 = vpop.permute.xlu0 %2222
    %2224 = vrot.lane.b32.xlu0 %v2219, 64
    %v2225 = vpop.permute.xlu0 %2224
    %2226 = vrot.lane.b32.xlu0 %v2220, 64
    %v2227 = vpop.permute.xlu0 %2226
    %2228 = vrot.lane.b32.xlu0 %v2221, 64
    %v2229 = vpop.permute.xlu0 %2228
    %v2230 = vsel %vm806, %v2223, %v2225
    %v2231 = vsel %vm806, %v2225, %v2227
    %v2232 = vsel %vm806, %v2227, %v2229
    %v2235 = vrot.slane %v2193, 3
    %v2236 = vrot.slane %v2194, 3
    %v2237 = vrot.slane %v2195, 3
    %v2238 = vrot.slane %v2196, 3
    %2239 = vrot.lane.b32.xlu0 %v2235, 96
    %v2240 = vpop.permute.xlu0 %2239
    %2241 = vrot.lane.b32.xlu0 %v2236, 96
    %v2242 = vpop.permute.xlu0 %2241
    %2243 = vrot.lane.b32.xlu0 %v2237, 96
    %v2244 = vpop.permute.xlu0 %2243
    %2245 = vrot.lane.b32.xlu0 %v2238, 96
    %v2246 = vpop.permute.xlu0 %2245
    %v2247 = vsel %vm74, %v2240, %v2242
    %v2248 = vsel %vm74, %v2242, %v2244
    %v2249 = vsel %vm74, %v2244, %v2246
    %v2251 = vrot.slane %v2193, 4
    %v2252 = vrot.slane %v2194, 4
    %v2253 = vrot.slane %v2195, 4
    %v2254 = vrot.slane %v2196, 4
    %v2255 = vsel %vm2071, %v2196, %v2206
    %v2256 = vsel %vm806, %v2215, %v2223
    %v2257 = vsel %vm74, %v2232, %v2240
    %v2258 = vld [vmem:[#allocation4 + $0x60] sm:$0x3f]
    %v2259 = vld [vmem:[#allocation4 + $0x68] sm:$0x3f]
    %v2260 = vld [vmem:[#allocation4 + $0x70] sm:$0x3f]
    %v2261 = vld [vmem:[#allocation4 + $0x78] sm:$0x3f]
    %v2266 = vrot.slane %v2258, 1
    %v2267 = vrot.slane %v2259, 1
    %v2268 = vrot.slane %v2260, 1
    %v2269 = vrot.slane %v2261, 1
    %2270 = vrot.lane.b32.xlu0 %v2266, 32
    %v2271 = vpop.permute.xlu0 %2270
    %2272 = vrot.lane.b32.xlu0 %v2267, 32
    %v2273 = vpop.permute.xlu0 %2272
    %2274 = vrot.lane.b32.xlu0 %v2268, 32
    %v2275 = vpop.permute.xlu0 %2274
    %2276 = vrot.lane.b32.xlu0 %v2269, 32
    %v2277 = vpop.permute.xlu0 %2276
    %v2278 = vsel %vm2071, %v2271, %v2273
    %v2279 = vsel %vm2071, %v2273, %v2275
    %v2280 = vsel %vm2071, %v2275, %v2277
    %v2283 = vrot.slane %v2258, 2
    %v2284 = vrot.slane %v2259, 2
    %v2285 = vrot.slane %v2260, 2
    %v2286 = vrot.slane %v2261, 2
    %2287 = vrot.lane.b32.xlu0 %v2283, 64
    %v2288 = vpop.permute.xlu0 %2287
    %2289 = vrot.lane.b32.xlu0 %v2284, 64
    %v2290 = vpop.permute.xlu0 %2289
    %2291 = vrot.lane.b32.xlu0 %v2285, 64
    %v2292 = vpop.permute.xlu0 %2291
    %2293 = vrot.lane.b32.xlu0 %v2286, 64
    %v2294 = vpop.permute.xlu0 %2293
    %v2295 = vsel %vm806, %v2288, %v2290
    %v2296 = vsel %vm806, %v2290, %v2292
    %v2297 = vsel %vm806, %v2292, %v2294
    %v2300 = vrot.slane %v2258, 3
    %v2301 = vrot.slane %v2259, 3
    %v2302 = vrot.slane %v2260, 3
    %v2303 = vrot.slane %v2261, 3
    %2304 = vrot.lane.b32.xlu0 %v2300, 96
    %v2305 = vpop.permute.xlu0 %2304
    %2306 = vrot.lane.b32.xlu0 %v2301, 96
    %v2307 = vpop.permute.xlu0 %2306
    %2308 = vrot.lane.b32.xlu0 %v2302, 96
    %v2309 = vpop.permute.xlu0 %2308
    %2310 = vrot.lane.b32.xlu0 %v2303, 96
    %v2311 = vpop.permute.xlu0 %2310
    %v2312 = vsel %vm74, %v2305, %v2307
    %v2313 = vsel %vm74, %v2307, %v2309
    %v2314 = vsel %vm74, %v2309, %v2311
    %v2316 = vrot.slane %v2258, 4
    %v2317 = vrot.slane %v2259, 4
    %v2318 = vrot.slane %v2260, 4
    %v2319 = vrot.slane %v2261, 4
    %v2320 = vsel %vm2071, %v2261, %v2271
    %v2321 = vsel %vm806, %v2280, %v2288
    %v2322 = vsel %vm74, %v2297, %v2305
    %v2326 = vrot.slane %v2128, 6
    %v2327 = vrot.slane %v2129, 6
    %v2328 = vrot.slane %v2130, 6
    %v2329 = vrot.slane %v2190, 6
    %v2330 = vrot.slane %v2148, 6
    %v2331 = vrot.slane %v2149, 6
    %v2332 = vrot.slane %v2191, 6
    %v2333 = vrot.slane %v2165, 6
    %v2334 = vrot.slane %v2166, 6
    %v2335 = vrot.slane %v2192, 6
    %v2336 = vrot.slane %v2182, 6
    %v2337 = vrot.slane %v2183, 6
    %v2338 = vrot.slane %v2184, 6
    %v2339 = vrot.slane %v2186, 6
    %v2340 = vrot.slane %v2187, 6
    %v2341 = vrot.slane %v2188, 6
    %v2342 = vrot.slane %v2189, 6
    %v2363 = vrot.slane %v2255, 4
    %v2364 = vrot.slane %v2213, 4
    %v2365 = vrot.slane %v2214, 4
    %v2366 = vrot.slane %v2256, 4
    %v2367 = vrot.slane %v2230, 4
    %v2368 = vrot.slane %v2231, 4
    %v2369 = vrot.slane %v2257, 4
    %v2370 = vrot.slane %v2247, 4
    %v2371 = vrot.slane %v2248, 4
    %v2372 = vrot.slane %v2249, 4
    %v2373 = vrot.slane %v2251, 4
    %v2374 = vrot.slane %v2252, 4
    %v2375 = vrot.slane %v2253, 4
    %v2376 = vrot.slane %v2254, 4
    %v2397 = vrot.slane %v2320, 2
    %v2398 = vrot.slane %v2278, 2
    %v2399 = vrot.slane %v2279, 2
    %v2400 = vrot.slane %v2321, 2
    %v2401 = vrot.slane %v2295, 2
    %v2402 = vrot.slane %v2296, 2
    %v2403 = vrot.slane %v2322, 2
    %v2404 = vrot.slane %v2312, 2
    %v2405 = vrot.slane %v2313, 2
    %v2406 = vrot.slane %v2314, 2
    %v2407 = vrot.slane %v2316, 2
    %v2408 = vrot.slane %v2317, 2
    %v2409 = vrot.slane %v2318, 2
    %v2410 = vrot.slane %v2319, 2
    %v2428 = vsel %vm969, %v2051, %v2326
    %v2429 = vsel %vm969, %v2052, %v2327
    %v2430 = vsel %vm969, %v2053, %v2328
    %v2431 = vsel %vm969, %v2125, %v2329
    %v2432 = vsel %vm969, %v2072, %v2330
    %v2433 = vsel %vm969, %v2073, %v2331
    %v2434 = vsel %vm969, %v2126, %v2332
    %v2435 = vsel %vm969, %v2091, %v2333
    %v2436 = vsel %vm969, %v2092, %v2334
    %v2437 = vsel %vm969, %v2127, %v2335
    %v2438 = vsel %vm969, %v2110, %v2336
    %v2439 = vsel %vm969, %v2111, %v2337
    %v2440 = vsel %vm969, %v2112, %v2338
    %v2441 = vsel %vm969, %v2117, %v2339
    %v2442 = vsel %vm969, %v2118, %v2340
    %v2443 = vsel %vm969, %v2119, %v2341
    %v2444 = vsel %vm969, %v2120, %v2342
    %v2445 = vsel %vm979, %v2428, %v2251
    %v2446 = vsel %vm979, %v2429, %v2252
    %v2447 = vsel %vm979, %v2430, %v2253
    %v2448 = vsel %vm979, %v2431, %v2363
    %v2449 = vsel %vm979, %v2432, %v2364
    %v2450 = vsel %vm979, %v2433, %v2365
    %v2451 = vsel %vm979, %v2434, %v2366
    %v2452 = vsel %vm979, %v2435, %v2367
    %v2453 = vsel %vm979, %v2436, %v2368
    %v2454 = vsel %vm979, %v2437, %v2369
    %v2455 = vsel %vm979, %v2438, %v2370
    %v2456 = vsel %vm979, %v2439, %v2371
    %v2457 = vsel %vm979, %v2440, %v2372
    %v2458 = vsel %vm979, %v2441, %v2373
    %v2459 = vsel %vm979, %v2442, %v2374
    %v2460 = vsel %vm979, %v2443, %v2375
    %v2461 = vsel %vm979, %v2444, %v2376
    %v2462 = vsel %vm989, %v2445, %v2283
    %v2463 = vsel %vm989, %v2446, %v2284
    %v2464 = vsel %vm989, %v2447, %v2285
    %v2465 = vsel %vm989, %v2448, %v2397
    %v2466 = vsel %vm989, %v2449, %v2398
    %v2467 = vsel %vm989, %v2450, %v2399
    %v2468 = vsel %vm989, %v2451, %v2400
    %v2469 = vsel %vm989, %v2452, %v2401
    %v2470 = vsel %vm989, %v2453, %v2402
    %v2471 = vsel %vm989, %v2454, %v2403
    %v2472 = vsel %vm989, %v2455, %v2404
    %v2473 = vsel %vm989, %v2456, %v2405
    %v2474 = vsel %vm989, %v2457, %v2406
    %v2475 = vsel %vm989, %v2458, %v2407
    %v2476 = vsel %vm989, %v2459, %v2408
    %v2477 = vsel %vm989, %v2460, %v2409
    %v2478 = vsel %vm989, %v2461, %v2410
    %v2479 = vpack.c.bf16 %v2462, %v2462
    %v2480 = vpack.c.bf16 %v2463, %v2463
    %v2481 = vpack.c.bf16 %v2464, %v2464
    %v2482 = vpack.c.bf16 %v2465, %v2465
    %v2483 = vpack.c.bf16 %v2466, %v2466
    %v2484 = vpack.c.bf16 %v2467, %v2467
    %v2485 = vpack.c.bf16 %v2468, %v2468
    %v2486 = vpack.c.bf16 %v2469, %v2469
    %v2487 = vpack.c.bf16 %v2470, %v2470
    %v2488 = vpack.c.bf16 %v2471, %v2471
    %v2489 = vpack.c.bf16 %v2472, %v2472
    %v2490 = vpack.c.bf16 %v2473, %v2473
    %v2491 = vpack.c.bf16 %v2474, %v2474
    %v2492 = vpack.c.bf16 %v2475, %v2475
    %v2493 = vpack.c.bf16 %v2476, %v2476
    %v2494 = vpack.c.bf16 %v2477, %v2477
    %v2495 = vpack.c.bf16 %v2478, %v2478
    %2496 = vst [vmem:[#allocation5] sm:$0xf] %v2479
    %2497 = vst [vmem:[#allocation5 + $0x8] sm:$0xf] %v2480
    %2498 = vst [vmem:[#allocation5 + $0x10] sm:$0xf] %v2481
    %2499 = vst [vmem:[#allocation5 + $0x18] sm:$0xf] %v2482
    %2500 = vst [vmem:[#allocation5 + $0x20] sm:$0xf] %v2483
    %2501 = vst [vmem:[#allocation5 + $0x28] sm:$0xf] %v2484
    %2502 = vst [vmem:[#allocation5 + $0x30] sm:$0xf] %v2485
    %2503 = vst [vmem:[#allocation5 + $0x38] sm:$0xf] %v2486
    %2504 = vst [vmem:[#allocation5 + $0x40] sm:$0xf] %v2487
    %2505 = vst [vmem:[#allocation5 + $0x48] sm:$0xf] %v2488
    %2506 = vst [vmem:[#allocation5 + $0x50] sm:$0xf] %v2489
    %2507 = vst [vmem:[#allocation5 + $0x58] sm:$0xf] %v2490
    %2508 = vst [vmem:[#allocation5 + $0x60] sm:$0xf] %v2491
    %2509 = vst [vmem:[#allocation5 + $0x68] sm:$0xf] %v2492
    %2510 = vst [vmem:[#allocation5 + $0x70] sm:$0xf] %v2493
    %2511 = vst [vmem:[#allocation5 + $0x78] sm:$0xf] %v2494
    %vm2512 = vcmask 257024
    %2513 = vst.msk [vmem:[#allocation5 + $0x80] sm:$0xf] %vm2512, %v2495
    %v2514 = vld [vmem:[#allocation4 + $0x80] sm:$0x3f]
    %v2515 = vld [vmem:[#allocation4 + $0x88] sm:$0x3f]
    %v2516 = vld [vmem:[#allocation4 + $0x90] sm:$0x3f]
    %v2517 = vld [vmem:[#allocation4 + $0x98] sm:$0x3f]
    %v2522 = vrot.slane %v2514, 1
    %v2523 = vrot.slane %v2515, 1
    %v2524 = vrot.slane %v2516, 1
    %v2525 = vrot.slane %v2517, 1
    %2526 = vrot.lane.b32.xlu0 %v2522, 32
    %v2527 = vpop.permute.xlu0 %2526
    %2528 = vrot.lane.b32.xlu0 %v2523, 32
    %v2529 = vpop.permute.xlu0 %2528
    %2530 = vrot.lane.b32.xlu0 %v2524, 32
    %v2531 = vpop.permute.xlu0 %2530
    %2532 = vrot.lane.b32.xlu0 %v2525, 32
    %v2533 = vpop.permute.xlu0 %2532
    %v2534 = vsel %vm2071, %v2527, %v2529
    %v2535 = vsel %vm2071, %v2529, %v2531
    %v2536 = vsel %vm2071, %v2531, %v2533
    %v2541 = vrot.slane %v2514, 2
    %v2542 = vrot.slane %v2515, 2
    %v2543 = vrot.slane %v2516, 2
    %v2544 = vrot.slane %v2517, 2
    %2545 = vrot.lane.b32.xlu0 %v2541, 64
    %v2546 = vpop.permute.xlu0 %2545
    %2547 = vrot.lane.b32.xlu0 %v2542, 64
    %v2548 = vpop.permute.xlu0 %2547
    %2549 = vrot.lane.b32.xlu0 %v2543, 64
    %v2550 = vpop.permute.xlu0 %2549
    %2551 = vrot.lane.b32.xlu0 %v2544, 64
    %v2552 = vpop.permute.xlu0 %2551
    %v2553 = vsel %vm806, %v2546, %v2548
    %v2554 = vsel %vm806, %v2548, %v2550
    %v2555 = vsel %vm806, %v2550, %v2552
    %v2560 = vrot.slane %v2514, 3
    %v2561 = vrot.slane %v2515, 3
    %v2562 = vrot.slane %v2516, 3
    %v2563 = vrot.slane %v2517, 3
    %2564 = vrot.lane.b32.xlu0 %v2560, 96
    %v2565 = vpop.permute.xlu0 %2564
    %2566 = vrot.lane.b32.xlu0 %v2561, 96
    %v2567 = vpop.permute.xlu0 %2566
    %2568 = vrot.lane.b32.xlu0 %v2562, 96
    %v2569 = vpop.permute.xlu0 %2568
    %2570 = vrot.lane.b32.xlu0 %v2563, 96
    %v2571 = vpop.permute.xlu0 %2570
    %v2572 = vsel %vm74, %v2565, %v2567
    %v2573 = vsel %vm74, %v2567, %v2569
    %v2574 = vsel %vm74, %v2569, %v2571
    %v2579 = vrot.slane %v2514, 4
    %v2580 = vrot.slane %v2515, 4
    %v2581 = vrot.slane %v2516, 4
    %v2582 = vrot.slane %v2517, 4
    %v2587 = vsel %vm2071, %v2517, %v2527
    %v2588 = vsel %vm806, %v2536, %v2546
    %v2589 = vsel %vm74, %v2555, %v2565
    %v2590 = vld [vmem:[#allocation4 + $0xa0] sm:$0x3f]
    %v2591 = vld [vmem:[#allocation4 + $0xa8] sm:$0x3f]
    %v2592 = vld [vmem:[#allocation4 + $0xb0] sm:$0x3f]
    %v2593 = vld [vmem:[#allocation4 + $0xb8] sm:$0x3f]
    %v2598 = vrot.slane %v2590, 1
    %v2599 = vrot.slane %v2591, 1
    %v2600 = vrot.slane %v2592, 1
    %v2601 = vrot.slane %v2593, 1
    %2602 = vrot.lane.b32.xlu0 %v2598, 32
    %v2603 = vpop.permute.xlu0 %2602
    %2604 = vrot.lane.b32.xlu0 %v2599, 32
    %v2605 = vpop.permute.xlu0 %2604
    %2606 = vrot.lane.b32.xlu0 %v2600, 32
    %v2607 = vpop.permute.xlu0 %2606
    %2608 = vrot.lane.b32.xlu0 %v2601, 32
    %v2609 = vpop.permute.xlu0 %2608
    %v2610 = vsel %vm2071, %v2603, %v2605
    %v2611 = vsel %vm2071, %v2605, %v2607
    %v2612 = vsel %vm2071, %v2607, %v2609
    %v2615 = vrot.slane %v2590, 2
    %v2616 = vrot.slane %v2591, 2
    %v2617 = vrot.slane %v2592, 2
    %v2618 = vrot.slane %v2593, 2
    %2619 = vrot.lane.b32.xlu0 %v2615, 64
    %v2620 = vpop.permute.xlu0 %2619
    %2621 = vrot.lane.b32.xlu0 %v2616, 64
    %v2622 = vpop.permute.xlu0 %2621
    %2623 = vrot.lane.b32.xlu0 %v2617, 64
    %v2624 = vpop.permute.xlu0 %2623
    %2625 = vrot.lane.b32.xlu0 %v2618, 64
    %v2626 = vpop.permute.xlu0 %2625
    %v2627 = vsel %vm806, %v2620, %v2622
    %v2628 = vsel %vm806, %v2622, %v2624
    %v2629 = vsel %vm806, %v2624, %v2626
    %v2632 = vrot.slane %v2590, 3
    %v2633 = vrot.slane %v2591, 3
    %v2634 = vrot.slane %v2592, 3
    %v2635 = vrot.slane %v2593, 3
    %2636 = vrot.lane.b32.xlu0 %v2632, 96
    %v2637 = vpop.permute.xlu0 %2636
    %2638 = vrot.lane.b32.xlu0 %v2633, 96
    %v2639 = vpop.permute.xlu0 %2638
    %2640 = vrot.lane.b32.xlu0 %v2634, 96
    %v2641 = vpop.permute.xlu0 %2640
    %2642 = vrot.lane.b32.xlu0 %v2635, 96
    %v2643 = vpop.permute.xlu0 %2642
    %v2644 = vsel %vm74, %v2637, %v2639
    %v2645 = vsel %vm74, %v2639, %v2641
    %v2646 = vsel %vm74, %v2641, %v2643
    %v2648 = vrot.slane %v2590, 4
    %v2649 = vrot.slane %v2591, 4
    %v2650 = vrot.slane %v2592, 4
    %v2651 = vrot.slane %v2593, 4
    %v2652 = vsel %vm2071, %v2593, %v2603
    %v2653 = vsel %vm806, %v2612, %v2620
    %v2654 = vsel %vm74, %v2629, %v2637
    %v2655 = vld [vmem:[#allocation4 + $0xc0] sm:$0x3f]
    %v2656 = vld [vmem:[#allocation4 + $0xc8] sm:$0x3f]
    %v2657 = vld [vmem:[#allocation4 + $0xd0] sm:$0x3f]
    %v2658 = vld [vmem:[#allocation4 + $0xd8] sm:$0x3f]
    %v2663 = vrot.slane %v2655, 1
    %v2664 = vrot.slane %v2656, 1
    %v2665 = vrot.slane %v2657, 1
    %v2666 = vrot.slane %v2658, 1
    %2667 = vrot.lane.b32.xlu0 %v2663, 32
    %v2668 = vpop.permute.xlu0 %2667
    %2669 = vrot.lane.b32.xlu0 %v2664, 32
    %v2670 = vpop.permute.xlu0 %2669
    %2671 = vrot.lane.b32.xlu0 %v2665, 32
    %v2672 = vpop.permute.xlu0 %2671
    %2673 = vrot.lane.b32.xlu0 %v2666, 32
    %v2674 = vpop.permute.xlu0 %2673
    %v2675 = vsel %vm2071, %v2668, %v2670
    %v2676 = vsel %vm2071, %v2670, %v2672
    %v2677 = vsel %vm2071, %v2672, %v2674
    %v2680 = vrot.slane %v2655, 2
    %v2681 = vrot.slane %v2656, 2
    %v2682 = vrot.slane %v2657, 2
    %v2683 = vrot.slane %v2658, 2
    %2684 = vrot.lane.b32.xlu0 %v2680, 64
    %v2685 = vpop.permute.xlu0 %2684
    %2686 = vrot.lane.b32.xlu0 %v2681, 64
    %v2687 = vpop.permute.xlu0 %2686
    %2688 = vrot.lane.b32.xlu0 %v2682, 64
    %v2689 = vpop.permute.xlu0 %2688
    %2690 = vrot.lane.b32.xlu0 %v2683, 64
    %v2691 = vpop.permute.xlu0 %2690
    %v2692 = vsel %vm806, %v2685, %v2687
    %v2693 = vsel %vm806, %v2687, %v2689
    %v2694 = vsel %vm806, %v2689, %v2691
    %v2697 = vrot.slane %v2655, 3
    %v2698 = vrot.slane %v2656, 3
    %v2699 = vrot.slane %v2657, 3
    %v2700 = vrot.slane %v2658, 3
    %2701 = vrot.lane.b32.xlu0 %v2697, 96
    %v2702 = vpop.permute.xlu0 %2701
    %2703 = vrot.lane.b32.xlu0 %v2698, 96
    %v2704 = vpop.permute.xlu0 %2703
    %2705 = vrot.lane.b32.xlu0 %v2699, 96
    %v2706 = vpop.permute.xlu0 %2705
    %2707 = vrot.lane.b32.xlu0 %v2700, 96
    %v2708 = vpop.permute.xlu0 %2707
    %v2709 = vsel %vm74, %v2702, %v2704
    %v2710 = vsel %vm74, %v2704, %v2706
    %v2711 = vsel %vm74, %v2706, %v2708
    %v2713 = vrot.slane %v2655, 4
    %v2714 = vrot.slane %v2656, 4
    %v2715 = vrot.slane %v2657, 4
    %v2716 = vrot.slane %v2658, 4
    %v2717 = vsel %vm2071, %v2658, %v2668
    %v2718 = vsel %vm806, %v2677, %v2685
    %v2719 = vsel %vm74, %v2694, %v2702
    %v2720 = vld [vmem:[#allocation4 + $0xe0] sm:$0x3f]
    %v2721 = vld [vmem:[#allocation4 + $0xe8] sm:$0x3f]
    %v2722 = vld [vmem:[#allocation4 + $0xf0] sm:$0x3f]
    %v2723 = vld [vmem:[#allocation4 + $0xf8] sm:$0x3f]
    %v2728 = vrot.slane %v2720, 1
    %v2729 = vrot.slane %v2721, 1
    %v2730 = vrot.slane %v2722, 1
    %v2731 = vrot.slane %v2723, 1
    %2732 = vrot.lane.b32.xlu0 %v2728, 32
    %v2733 = vpop.permute.xlu0 %2732
    %2734 = vrot.lane.b32.xlu0 %v2729, 32
    %v2735 = vpop.permute.xlu0 %2734
    %2736 = vrot.lane.b32.xlu0 %v2730, 32
    %v2737 = vpop.permute.xlu0 %2736
    %2738 = vrot.lane.b32.xlu0 %v2731, 32
    %v2739 = vpop.permute.xlu0 %2738
    %v2740 = vsel %vm2071, %v2733, %v2735
    %v2741 = vsel %vm2071, %v2735, %v2737
    %v2742 = vsel %vm2071, %v2737, %v2739
    %v2745 = vrot.slane %v2720, 2
    %v2746 = vrot.slane %v2721, 2
    %v2747 = vrot.slane %v2722, 2
    %v2748 = vrot.slane %v2723, 2
    %2749 = vrot.lane.b32.xlu0 %v2745, 64
    %v2750 = vpop.permute.xlu0 %2749
    %2751 = vrot.lane.b32.xlu0 %v2746, 64
    %v2752 = vpop.permute.xlu0 %2751
    %2753 = vrot.lane.b32.xlu0 %v2747, 64
    %v2754 = vpop.permute.xlu0 %2753
    %2755 = vrot.lane.b32.xlu0 %v2748, 64
    %v2756 = vpop.permute.xlu0 %2755
    %v2757 = vsel %vm806, %v2750, %v2752
    %v2758 = vsel %vm806, %v2752, %v2754
    %v2759 = vsel %vm806, %v2754, %v2756
    %v2762 = vrot.slane %v2720, 3
    %v2763 = vrot.slane %v2721, 3
    %v2764 = vrot.slane %v2722, 3
    %v2765 = vrot.slane %v2723, 3
    %2766 = vrot.lane.b32.xlu0 %v2762, 96
    %v2767 = vpop.permute.xlu0 %2766
    %2768 = vrot.lane.b32.xlu0 %v2763, 96
    %v2769 = vpop.permute.xlu0 %2768
    %2770 = vrot.lane.b32.xlu0 %v2764, 96
    %v2771 = vpop.permute.xlu0 %2770
    %2772 = vrot.lane.b32.xlu0 %v2765, 96
    %v2773 = vpop.permute.xlu0 %2772
    %v2774 = vsel %vm74, %v2767, %v2769
    %v2775 = vsel %vm74, %v2769, %v2771
    %v2776 = vsel %vm74, %v2771, %v2773
    %v2778 = vrot.slane %v2720, 4
    %v2779 = vrot.slane %v2721, 4
    %v2780 = vrot.slane %v2722, 4
    %v2781 = vrot.slane %v2723, 4
    %v2782 = vsel %vm2071, %v2723, %v2733
    %v2783 = vsel %vm806, %v2742, %v2750
    %v2784 = vsel %vm74, %v2759, %v2767
    %v2788 = vrot.slane %v2590, 6
    %v2789 = vrot.slane %v2591, 6
    %v2790 = vrot.slane %v2592, 6
    %v2791 = vrot.slane %v2652, 6
    %v2792 = vrot.slane %v2610, 6
    %v2793 = vrot.slane %v2611, 6
    %v2794 = vrot.slane %v2653, 6
    %v2795 = vrot.slane %v2627, 6
    %v2796 = vrot.slane %v2628, 6
    %v2797 = vrot.slane %v2654, 6
    %v2798 = vrot.slane %v2644, 6
    %v2799 = vrot.slane %v2645, 6
    %v2800 = vrot.slane %v2646, 6
    %v2801 = vrot.slane %v2648, 6
    %v2802 = vrot.slane %v2649, 6
    %v2803 = vrot.slane %v2650, 6
    %v2804 = vrot.slane %v2651, 6
    %v2825 = vrot.slane %v2717, 4
    %v2826 = vrot.slane %v2675, 4
    %v2827 = vrot.slane %v2676, 4
    %v2828 = vrot.slane %v2718, 4
    %v2829 = vrot.slane %v2692, 4
    %v2830 = vrot.slane %v2693, 4
    %v2831 = vrot.slane %v2719, 4
    %v2832 = vrot.slane %v2709, 4
    %v2833 = vrot.slane %v2710, 4
    %v2834 = vrot.slane %v2711, 4
    %v2835 = vrot.slane %v2713, 4
    %v2836 = vrot.slane %v2714, 4
    %v2837 = vrot.slane %v2715, 4
    %v2838 = vrot.slane %v2716, 4
    %v2859 = vrot.slane %v2782, 2
    %v2860 = vrot.slane %v2740, 2
    %v2861 = vrot.slane %v2741, 2
    %v2862 = vrot.slane %v2783, 2
    %v2863 = vrot.slane %v2757, 2
    %v2864 = vrot.slane %v2758, 2
    %v2865 = vrot.slane %v2784, 2
    %v2866 = vrot.slane %v2774, 2
    %v2867 = vrot.slane %v2775, 2
    %v2868 = vrot.slane %v2776, 2
    %v2869 = vrot.slane %v2778, 2
    %v2870 = vrot.slane %v2779, 2
    %v2871 = vrot.slane %v2780, 2
    %v2872 = vrot.slane %v2781, 2
    %v2890 = vsel %vm969, %v2514, %v2788
    %v2891 = vsel %vm969, %v2515, %v2789
    %v2892 = vsel %vm969, %v2516, %v2790
    %v2893 = vsel %vm969, %v2587, %v2791
    %v2894 = vsel %vm969, %v2534, %v2792
    %v2895 = vsel %vm969, %v2535, %v2793
    %v2896 = vsel %vm969, %v2588, %v2794
    %v2897 = vsel %vm969, %v2553, %v2795
    %v2898 = vsel %vm969, %v2554, %v2796
    %v2899 = vsel %vm969, %v2589, %v2797
    %v2900 = vsel %vm969, %v2572, %v2798
    %v2901 = vsel %vm969, %v2573, %v2799
    %v2902 = vsel %vm969, %v2574, %v2800
    %v2903 = vsel %vm969, %v2579, %v2801
    %v2904 = vsel %vm969, %v2580, %v2802
    %v2905 = vsel %vm969, %v2581, %v2803
    %v2906 = vsel %vm969, %v2582, %v2804
    %v2907 = vsel %vm979, %v2890, %v2713
    %v2908 = vsel %vm979, %v2891, %v2714
    %v2909 = vsel %vm979, %v2892, %v2715
    %v2910 = vsel %vm979, %v2893, %v2825
    %v2911 = vsel %vm979, %v2894, %v2826
    %v2912 = vsel %vm979, %v2895, %v2827
    %v2913 = vsel %vm979, %v2896, %v2828
    %v2914 = vsel %vm979, %v2897, %v2829
    %v2915 = vsel %vm979, %v2898, %v2830
    %v2916 = vsel %vm979, %v2899, %v2831
    %v2917 = vsel %vm979, %v2900, %v2832
    %v2918 = vsel %vm979, %v2901, %v2833
    %v2919 = vsel %vm979, %v2902, %v2834
    %v2920 = vsel %vm979, %v2903, %v2835
    %v2921 = vsel %vm979, %v2904, %v2836
    %v2922 = vsel %vm979, %v2905, %v2837
    %v2923 = vsel %vm979, %v2906, %v2838
    %v2924 = vsel %vm989, %v2907, %v2745
    %v2925 = vsel %vm989, %v2908, %v2746
    %v2926 = vsel %vm989, %v2909, %v2747
    %v2927 = vsel %vm989, %v2910, %v2859
    %v2928 = vsel %vm989, %v2911, %v2860
    %v2929 = vsel %vm989, %v2912, %v2861
    %v2930 = vsel %vm989, %v2913, %v2862
    %v2931 = vsel %vm989, %v2914, %v2863
    %v2932 = vsel %vm989, %v2915, %v2864
    %v2933 = vsel %vm989, %v2916, %v2865
    %v2934 = vsel %vm989, %v2917, %v2866
    %v2935 = vsel %vm989, %v2918, %v2867
    %v2936 = vsel %vm989, %v2919, %v2868
    %v2937 = vsel %vm989, %v2920, %v2869
    %v2938 = vsel %vm989, %v2921, %v2870
    %v2939 = vsel %vm989, %v2922, %v2871
    %v2940 = vsel %vm989, %v2923, %v2872
    %v2941 = vpack.c.bf16 %v2924, %v2924
    %v2942 = vpack.c.bf16 %v2925, %v2925
    %v2943 = vpack.c.bf16 %v2926, %v2926
    %v2944 = vpack.c.bf16 %v2927, %v2927
    %v2945 = vpack.c.bf16 %v2928, %v2928
    %v2946 = vpack.c.bf16 %v2929, %v2929
    %v2947 = vpack.c.bf16 %v2930, %v2930
    %v2948 = vpack.c.bf16 %v2931, %v2931
    %v2949 = vpack.c.bf16 %v2932, %v2932
    %v2950 = vpack.c.bf16 %v2933, %v2933
    %v2951 = vpack.c.bf16 %v2934, %v2934
    %v2952 = vpack.c.bf16 %v2935, %v2935
    %v2953 = vpack.c.bf16 %v2936, %v2936
    %v2954 = vpack.c.bf16 %v2937, %v2937
    %v2955 = vpack.c.bf16 %v2938, %v2938
    %v2956 = vpack.c.bf16 %v2939, %v2939
    %v2957 = vpack.c.bf16 %v2940, %v2940
    %v2975 = vrot.slane %v2941, 4
    %v2976 = vrot.slane %v2942, 4
    %v2977 = vrot.slane %v2943, 4
    %v2978 = vrot.slane %v2944, 4
    %v2979 = vrot.slane %v2945, 4
    %v2980 = vrot.slane %v2946, 4
    %v2981 = vrot.slane %v2947, 4
    %v2982 = vrot.slane %v2948, 4
    %v2983 = vrot.slane %v2949, 4
    %v2984 = vrot.slane %v2950, 4
    %v2985 = vrot.slane %v2951, 4
    %v2986 = vrot.slane %v2952, 4
    %v2987 = vrot.slane %v2953, 4
    %v2988 = vrot.slane %v2954, 4
    %v2989 = vrot.slane %v2955, 4
    %v2990 = vrot.slane %v2956, 4
    %v2991 = vrot.slane %v2957, 4
    %3009 = vst [vmem:[#allocation5] sm:$0xf0] %v2975
    %3010 = vst [vmem:[#allocation5 + $0x8] sm:$0xf0] %v2976
    %3011 = vst [vmem:[#allocation5 + $0x10] sm:$0xf0] %v2977
    %3012 = vst [vmem:[#allocation5 + $0x18] sm:$0xf0] %v2978
    %3013 = vst [vmem:[#allocation5 + $0x20] sm:$0xf0] %v2979
    %3014 = vst [vmem:[#allocation5 + $0x28] sm:$0xf0] %v2980
    %3015 = vst [vmem:[#allocation5 + $0x30] sm:$0xf0] %v2981
    %3016 = vst [vmem:[#allocation5 + $0x38] sm:$0xf0] %v2982
    %3017 = vst [vmem:[#allocation5 + $0x40] sm:$0xf0] %v2983
    %3018 = vst [vmem:[#allocation5 + $0x48] sm:$0xf0] %v2984
    %3019 = vst [vmem:[#allocation5 + $0x50] sm:$0xf0] %v2985
    %3020 = vst [vmem:[#allocation5 + $0x58] sm:$0xf0] %v2986
    %3021 = vst [vmem:[#allocation5 + $0x60] sm:$0xf0] %v2987
    %3022 = vst [vmem:[#allocation5 + $0x68] sm:$0xf0] %v2988
    %3023 = vst [vmem:[#allocation5 + $0x70] sm:$0xf0] %v2989
    %3024 = vst [vmem:[#allocation5 + $0x78] sm:$0xf0] %v2990
    %vm3025 = vcmask 261124
    %3026 = vst.msk [vmem:[#allocation5 + $0x80] sm:$0xf0] %vm3025, %v2991
    %v3027 = vld [vmem:[#allocation5] sm:$0xff]
    %v3028 = vld [vmem:[#allocation5 + $0x8] sm:$0xff]
    %v3029 = vld [vmem:[#allocation5 + $0x10] sm:$0xff]
    %v3030 = vld [vmem:[#allocation5 + $0x18] sm:$0xff]
    %v3031 = vld [vmem:[#allocation5 + $0x20] sm:$0xff]
    %v3032 = vld [vmem:[#allocation5 + $0x28] sm:$0xff]
    %v3033 = vld [vmem:[#allocation5 + $0x30] sm:$0xff]
    %v3034 = vld [vmem:[#allocation5 + $0x38] sm:$0xff]
    %v3035 = vld [vmem:[#allocation5 + $0x40] sm:$0xff]
    %v3036 = vld [vmem:[#allocation5 + $0x48] sm:$0xff]
    %v3037 = vld [vmem:[#allocation5 + $0x50] sm:$0xff]
    %v3038 = vld [vmem:[#allocation5 + $0x58] sm:$0xff]
    %v3039 = vld [vmem:[#allocation5 + $0x60] sm:$0xff]
    %v3040 = vld [vmem:[#allocation5 + $0x68] sm:$0xff]
    %v3041 = vld [vmem:[#allocation5 + $0x70] sm:$0xff]
    %v3042 = vld [vmem:[#allocation5 + $0x78] sm:$0xff]
    %v3043 = vld [vmem:[#allocation5 + $0x80] sm:$0xff]
    %v3044 = vld [vmem:[#allocation7] sm:$0xf]
    %v3045 = vld [vmem:[#allocation7 + $0x4] sm:$0xf]
    %v3046 = vld [vmem:[#allocation7 + $0x8] sm:$0xf]
    %v3047 = vld [vmem:[#allocation7 + $0xc] sm:$0xf]
    %v3048 = vld [vmem:[#allocation7 + $0x10] sm:$0xf]
    %v3049 = vld [vmem:[#allocation7 + $0x14] sm:$0xf]
    %v3050 = vld [vmem:[#allocation7 + $0x18] sm:$0xf]
    %v3051 = vld [vmem:[#allocation7 + $0x1c] sm:$0xf]
    %v3052 = vld [vmem:[#allocation7 + $0x20] sm:$0xf]
    %v3053 = vld [vmem:[#allocation7 + $0x24] sm:$0xf]
    %v3054 = vld [vmem:[#allocation7 + $0x28] sm:$0xf]
    %v3055 = vld [vmem:[#allocation7 + $0x2c] sm:$0xf]
    %v3056 = vld [vmem:[#allocation7 + $0x30] sm:$0xf]
    %v3057 = vld [vmem:[#allocation7 + $0x34] sm:$0xf]
    %v3058 = vld [vmem:[#allocation7 + $0x38] sm:$0xf]
    %v3059 = vld [vmem:[#allocation7 + $0x3c] sm:$0xf]
    %v3060 = vld [vmem:[#allocation7 + $0x40] sm:$0xf]
    %v3061 = vld [vmem:[#allocation7 + $0x44] sm:$0xf]
    %v3062 = vld [vmem:[#allocation7 + $0x48] sm:$0xf]
    %v3063 = vld [vmem:[#allocation7 + $0x4c] sm:$0xf]
    %v3064 = vld [vmem:[#allocation7 + $0x50] sm:$0xf]
    %v3065 = vld [vmem:[#allocation7 + $0x54] sm:$0xf]
    %v3066 = vld [vmem:[#allocation7 + $0x58] sm:$0xf]
    %v3067 = vld [vmem:[#allocation7 + $0x5c] sm:$0xf]
    %v3068 = vld [vmem:[#allocation7 + $0x60] sm:$0xf]
    %v3069 = vld [vmem:[#allocation7 + $0x64] sm:$0xf]
    %v3070 = vld [vmem:[#allocation7 + $0x68] sm:$0xf]
    %v3071 = vld [vmem:[#allocation7 + $0x6c] sm:$0xf]
    %v3072 = vld [vmem:[#allocation7 + $0x70] sm:$0xf]
    %v3073 = vld [vmem:[#allocation7 + $0x74] sm:$0xf]
    %v3074 = vld [vmem:[#allocation7 + $0x78] sm:$0xf]
    %v3075 = vld [vmem:[#allocation7 + $0x7c] sm:$0xf]
    %v3076 = vld [vmem:[#allocation7 + $0x80] sm:$0xf]
    %v3077 = vld [vmem:[#allocation7 + $0x84] sm:$0xf]
    %v3078 = vld [vmem:[#allocation7 + $0x88] sm:$0xf]
    %v3079 = vld [vmem:[#allocation7 + $0x8c] sm:$0xf]
    %v3080 = vld [vmem:[#allocation7 + $0x90] sm:$0xf]
    %v3081 = vld [vmem:[#allocation7 + $0x94] sm:$0xf]
    %v3082 = vld [vmem:[#allocation7 + $0x98] sm:$0xf]
    %v3083 = vld [vmem:[#allocation7 + $0x9c] sm:$0xf]
    %v3084 = vld [vmem:[#allocation7 + $0xa0] sm:$0xf]
    %v3085 = vld [vmem:[#allocation7 + $0xa4] sm:$0xf]
    %v3086 = vld [vmem:[#allocation7 + $0xa8] sm:$0xf]
    %v3087 = vld [vmem:[#allocation7 + $0xac] sm:$0xf]
    %v3088 = vld [vmem:[#allocation7 + $0xb0] sm:$0xf]
    %v3089 = vld [vmem:[#allocation7 + $0xb4] sm:$0xf]
    %v3090 = vld [vmem:[#allocation7 + $0xb8] sm:$0xf]
    %v3091 = vld [vmem:[#allocation7 + $0xbc] sm:$0xf]
    %v3092 = vld [vmem:[#allocation7 + $0xc0] sm:$0xf]
    %v3093 = vld [vmem:[#allocation7 + $0xc4] sm:$0xf]
    %v3094 = vld [vmem:[#allocation7 + $0xc8] sm:$0xf]
    %v3095 = vld [vmem:[#allocation7 + $0xcc] sm:$0xf]
    %v3096 = vld [vmem:[#allocation7 + $0xd0] sm:$0xf]
    %v3097 = vld [vmem:[#allocation7 + $0xd4] sm:$0xf]
    %v3098 = vld [vmem:[#allocation7 + $0xd8] sm:$0xf]
    %v3099 = vld [vmem:[#allocation7 + $0xdc] sm:$0xf]
    %v3100 = vld [vmem:[#allocation7 + $0xe0] sm:$0xf]
    %v3101 = vld [vmem:[#allocation7 + $0xe4] sm:$0xf]
    %v3102 = vld [vmem:[#allocation7 + $0xe8] sm:$0xf]
    %v3103 = vld [vmem:[#allocation7 + $0xec] sm:$0xf]
    %v3104 = vld [vmem:[#allocation7 + $0xf0] sm:$0xf]
    %v3105 = vld [vmem:[#allocation7 + $0xf4] sm:$0xf]
    %v3106 = vld [vmem:[#allocation7 + $0xf8] sm:$0xf]
    %v3107 = vld [vmem:[#allocation7 + $0xfc] sm:$0xf]
    %v3108 = vld [vmem:[#allocation7 + $0x100] sm:$0xf]
    %v3109 = vld [vmem:[#allocation7 + $0x104] sm:$0xf]
    %v3110 = vld [vmem:[#allocation7 + $0x108] sm:$0xf]
    %v3111 = vld [vmem:[#allocation7 + $0x10c] sm:$0xf]
    %v3112 = vld [vmem:[#allocation7 + $0x110] sm:$0xf]
    %v3113 = vld [vmem:[#allocation7 + $0x114] sm:$0xf]
    %v3114 = vld [vmem:[#allocation7 + $0x118] sm:$0xf]
    %v3115 = vld [vmem:[#allocation7 + $0x11c] sm:$0xf]
    %v3116 = vld [vmem:[#allocation7 + $0x120] sm:$0xf]
    %v3117 = vld [vmem:[#allocation7 + $0x124] sm:$0xf]
    %v3118 = vld [vmem:[#allocation7 + $0x128] sm:$0xf]
    %v3119 = vld [vmem:[#allocation7 + $0x12c] sm:$0xf]
    %v3120 = vld [vmem:[#allocation7 + $0x130] sm:$0xf]
    %v3121 = vld [vmem:[#allocation7 + $0x134] sm:$0xf]
    %v3122 = vld [vmem:[#allocation7 + $0x138] sm:$0xf]
    %v3123 = vld [vmem:[#allocation7 + $0x13c] sm:$0xf]
    %v3124 = vld [vmem:[#allocation7 + $0x140] sm:$0xf]
    %v3125 = vld [vmem:[#allocation7 + $0x144] sm:$0xf]
    %v3126 = vld [vmem:[#allocation7 + $0x148] sm:$0xf]
    %v3127 = vld [vmem:[#allocation7 + $0x14c] sm:$0xf]
    %v3128 = vld [vmem:[#allocation7 + $0x150] sm:$0xf]
    %v3129 = vld [vmem:[#allocation7 + $0x154] sm:$0xf]
    %v3130 = vld [vmem:[#allocation7 + $0x158] sm:$0xf]
    %v3131 = vld [vmem:[#allocation7 + $0x15c] sm:$0xf]
    %v3132 = vld [vmem:[#allocation7 + $0x160] sm:$0xf]
    %v3133 = vld [vmem:[#allocation7 + $0x164] sm:$0xf]
    %v3134 = vld [vmem:[#allocation7 + $0x168] sm:$0xf]
    %v3135 = vld [vmem:[#allocation7 + $0x16c] sm:$0xf]
    %v3136 = vld [vmem:[#allocation7 + $0x170] sm:$0xf]
    %v3137 = vld [vmem:[#allocation7 + $0x174] sm:$0xf]
    %v3138 = vld [vmem:[#allocation7 + $0x178] sm:$0xf]
    %v3139 = vld [vmem:[#allocation7 + $0x17c] sm:$0xf]
    %v3140 = vld [vmem:[#allocation7 + $0x180] sm:$0xf]
    %v3141 = vld [vmem:[#allocation7 + $0x184] sm:$0xf]
    %v3142 = vld [vmem:[#allocation7 + $0x188] sm:$0xf]
    %v3143 = vld [vmem:[#allocation7 + $0x18c] sm:$0xf]
    %v3144 = vld [vmem:[#allocation7 + $0x190] sm:$0xf]
    %v3145 = vld [vmem:[#allocation7 + $0x194] sm:$0xf]
    %v3146 = vld [vmem:[#allocation7 + $0x198] sm:$0xf]
    %v3147 = vld [vmem:[#allocation7 + $0x19c] sm:$0xf]
    %v3148 = vld [vmem:[#allocation7 + $0x1a0] sm:$0xf]
    %v3149 = vld [vmem:[#allocation7 + $0x1a4] sm:$0xf]
    %v3150 = vld [vmem:[#allocation7 + $0x1a8] sm:$0xf]
    %v3151 = vld [vmem:[#allocation7 + $0x1ac] sm:$0xf]
    %v3152 = vld [vmem:[#allocation7 + $0x1b0] sm:$0xf]
    %v3153 = vld [vmem:[#allocation7 + $0x1b4] sm:$0xf]
    %v3154 = vld [vmem:[#allocation7 + $0x1b8] sm:$0xf]
    %v3155 = vld [vmem:[#allocation7 + $0x1bc] sm:$0xf]
    %v3156 = vld [vmem:[#allocation7 + $0x1c0] sm:$0xf]
    %v3157 = vld [vmem:[#allocation7 + $0x1c4] sm:$0xf]
    %v3158 = vld [vmem:[#allocation7 + $0x1c8] sm:$0xf]
    %v3159 = vld [vmem:[#allocation7 + $0x1cc] sm:$0xf]
    %v3160 = vld [vmem:[#allocation7 + $0x1d0] sm:$0xf]
    %v3161 = vld [vmem:[#allocation7 + $0x1d4] sm:$0xf]
    %v3162 = vld [vmem:[#allocation7 + $0x1d8] sm:$0xf]
    %v3163 = vld [vmem:[#allocation7 + $0x1dc] sm:$0xf]
    %v3164 = vld [vmem:[#allocation7 + $0x1e0] sm:$0xf]
    %v3165 = vld [vmem:[#allocation7 + $0x1e4] sm:$0xf]
    %v3166 = vld [vmem:[#allocation7 + $0x1e8] sm:$0xf]
    %v3167 = vld [vmem:[#allocation7 + $0x1ec] sm:$0xf]
    %v3168 = vld [vmem:[#allocation7 + $0x1f0] sm:$0xf]
    %v3169 = vld [vmem:[#allocation7 + $0x1f4] sm:$0xf]
    %v3170 = vld [vmem:[#allocation7 + $0x1f8] sm:$0xf]
    %v3171 = vld [vmem:[#allocation7 + $0x1fc] sm:$0xf]
    %v3172 = vld [vmem:[#allocation7 + $0x200] sm:$0xf]
    %v3173 = vld [vmem:[#allocation7 + $0x204] sm:$0xf]
    %v3174 = vld [vmem:[#allocation7 + $0x208] sm:$0xf]
    %v3175 = vld [vmem:[#allocation7 + $0x20c] sm:$0xf]
    %v3176 = vld [vmem:[#allocation7 + $0x210] sm:$0xf]
    %v3177 = vld [vmem:[#allocation7 + $0x214] sm:$0xf]
    %v3178 = vld [vmem:[#allocation7 + $0x218] sm:$0xf]
    %v3179 = vld [vmem:[#allocation7 + $0x21c] sm:$0xf]
    %v3180 = vld [vmem:[#allocation7 + $0x220] sm:$0xf]
    %v3181 = vld [vmem:[#allocation7 + $0x224] sm:$0xf]
    %v3182 = vld [vmem:[#allocation7 + $0x228] sm:$0xf]
    %v3183 = vld [vmem:[#allocation7 + $0x22c] sm:$0xf]
    %v3184 = vld [vmem:[#allocation7 + $0x230] sm:$0xf]
    %v3185 = vld [vmem:[#allocation7 + $0x234] sm:$0xf]
    %v3186 = vld [vmem:[#allocation7 + $0x238] sm:$0xf]
    %v3187 = vld [vmem:[#allocation7 + $0x23c] sm:$0xf]
    %v3188 = vld [vmem:[#allocation7 + $0x240] sm:$0xf]
    %v3189 = vld [vmem:[#allocation7 + $0x244] sm:$0xf]
    %v3190 = vld [vmem:[#allocation7 + $0x248] sm:$0xf]
    %v3191 = vld [vmem:[#allocation7 + $0x24c] sm:$0xf]
    %v3192 = vld [vmem:[#allocation7 + $0x250] sm:$0xf]
    %v3193 = vld [vmem:[#allocation7 + $0x254] sm:$0xf]
    %v3194 = vld [vmem:[#allocation7 + $0x258] sm:$0xf]
    %v3195 = vld [vmem:[#allocation7 + $0x25c] sm:$0xf]
    %v3196 = vld [vmem:[#allocation7 + $0x260] sm:$0xf]
    %v3197 = vld [vmem:[#allocation7 + $0x264] sm:$0xf]
    %v3198 = vld [vmem:[#allocation7 + $0x268] sm:$0xf]
    %v3199 = vld [vmem:[#allocation7 + $0x26c] sm:$0xf]
    %v3200 = vld [vmem:[#allocation7 + $0x270] sm:$0xf]
    %v3201 = vld [vmem:[#allocation7 + $0x274] sm:$0xf]
    %v3202 = vld [vmem:[#allocation7 + $0x278] sm:$0xf]
    %v3203 = vld [vmem:[#allocation7 + $0x27c] sm:$0xf]
    %v3204 = vld [vmem:[#allocation7 + $0x280] sm:$0xf]
    %v3205 = vld [vmem:[#allocation7 + $0x284] sm:$0xf]
    %v3206 = vld [vmem:[#allocation7 + $0x288] sm:$0xf]
    %v3207 = vld [vmem:[#allocation7 + $0x28c] sm:$0xf]
    %v3208 = vld [vmem:[#allocation7 + $0x290] sm:$0xf]
    %v3209 = vld [vmem:[#allocation7 + $0x294] sm:$0xf]
    %v3210 = vld [vmem:[#allocation7 + $0x298] sm:$0xf]
    %v3211 = vld [vmem:[#allocation7 + $0x29c] sm:$0xf]
    %v3212 = vld [vmem:[#allocation7 + $0x2a0] sm:$0xf]
    %v3213 = vld [vmem:[#allocation7 + $0x2a4] sm:$0xf]
    %v3214 = vld [vmem:[#allocation7 + $0x2a8] sm:$0xf]
    %v3215 = vld [vmem:[#allocation7 + $0x2ac] sm:$0xf]
    %v3216 = vld [vmem:[#allocation7 + $0x2b0] sm:$0xf]
    %v3217 = vld [vmem:[#allocation7 + $0x2b4] sm:$0xf]
    %v3218 = vld [vmem:[#allocation7 + $0x2b8] sm:$0xf]
    %v3219 = vld [vmem:[#allocation7 + $0x2bc] sm:$0xf]
    %v3220 = vld [vmem:[#allocation7 + $0x2c0] sm:$0xf]
    %v3221 = vld [vmem:[#allocation7 + $0x2c4] sm:$0xf]
    %v3222 = vld [vmem:[#allocation7 + $0x2c8] sm:$0xf]
    %v3223 = vld [vmem:[#allocation7 + $0x2cc] sm:$0xf]
    %v3224 = vld [vmem:[#allocation7 + $0x2d0] sm:$0xf]
    %v3225 = vld [vmem:[#allocation7 + $0x2d4] sm:$0xf]
    %v3226 = vld [vmem:[#allocation7 + $0x2d8] sm:$0xf]
    %v3227 = vld [vmem:[#allocation7 + $0x2dc] sm:$0xf]
    %v3228 = vld [vmem:[#allocation7 + $0x2e0] sm:$0xf]
    %v3229 = vld [vmem:[#allocation7 + $0x2e4] sm:$0xf]
    %v3230 = vld [vmem:[#allocation7 + $0x2e8] sm:$0xf]
    %v3231 = vld [vmem:[#allocation7 + $0x2ec] sm:$0xf]
    %v3232 = vld [vmem:[#allocation7 + $0x2f0] sm:$0xf]
    %v3233 = vld [vmem:[#allocation7 + $0x2f4] sm:$0xf]
    %v3234 = vld [vmem:[#allocation7 + $0x2f8] sm:$0xf]
    %v3235 = vld [vmem:[#allocation7 + $0x2fc] sm:$0xf]
    %v3236 = vld [vmem:[#allocation7 + $0x300] sm:$0xf]
    %v3237 = vld [vmem:[#allocation7 + $0x304] sm:$0xf]
    %v3238 = vld [vmem:[#allocation7 + $0x308] sm:$0xf]
    %v3239 = vld [vmem:[#allocation7 + $0x30c] sm:$0xf]
    %v3240 = vld [vmem:[#allocation7 + $0x310] sm:$0xf]
    %v3241 = vld [vmem:[#allocation7 + $0x314] sm:$0xf]
    %v3242 = vld [vmem:[#allocation7 + $0x318] sm:$0xf]
    %v3243 = vld [vmem:[#allocation7 + $0x31c] sm:$0xf]
    %v3244 = vld [vmem:[#allocation7 + $0x320] sm:$0xf]
    %v3245 = vld [vmem:[#allocation7 + $0x324] sm:$0xf]
    %v3246 = vld [vmem:[#allocation7 + $0x328] sm:$0xf]
    %v3247 = vld [vmem:[#allocation7 + $0x32c] sm:$0xf]
    %v3248 = vld [vmem:[#allocation7 + $0x330] sm:$0xf]
    %v3249 = vld [vmem:[#allocation7 + $0x334] sm:$0xf]
    %v3250 = vld [vmem:[#allocation7 + $0x338] sm:$0xf]
    %v3251 = vld [vmem:[#allocation7 + $0x33c] sm:$0xf]
    %v3252 = vld [vmem:[#allocation7 + $0x340] sm:$0xf]
    %v3253 = vld [vmem:[#allocation7 + $0x344] sm:$0xf]
    %v3254 = vld [vmem:[#allocation7 + $0x348] sm:$0xf]
    %v3255 = vld [vmem:[#allocation7 + $0x34c] sm:$0xf]
    %v3256 = vld [vmem:[#allocation7 + $0x350] sm:$0xf]
    %v3257 = vld [vmem:[#allocation7 + $0x354] sm:$0xf]
    %v3258 = vld [vmem:[#allocation7 + $0x358] sm:$0xf]
    %v3259 = vld [vmem:[#allocation7 + $0x35c] sm:$0xf]
    %v3260 = vld [vmem:[#allocation7 + $0x360] sm:$0xf]
    %v3261 = vld [vmem:[#allocation7 + $0x364] sm:$0xf]
    %v3262 = vld [vmem:[#allocation7 + $0x368] sm:$0xf]
    %v3263 = vld [vmem:[#allocation7 + $0x36c] sm:$0xf]
    %v3264 = vld [vmem:[#allocation7 + $0x370] sm:$0xf]
    %v3265 = vld [vmem:[#allocation7 + $0x374] sm:$0xf]
    %v3266 = vld [vmem:[#allocation7 + $0x378] sm:$0xf]
    %v3267 = vld [vmem:[#allocation7 + $0x37c] sm:$0xf]
    %v3268 = vld [vmem:[#allocation7 + $0x380] sm:$0xf]
    %v3269 = vld [vmem:[#allocation7 + $0x384] sm:$0xf]
    %v3270 = vld [vmem:[#allocation7 + $0x388] sm:$0xf]
    %v3271 = vld [vmem:[#allocation7 + $0x38c] sm:$0xf]
    %v3272 = vld [vmem:[#allocation7 + $0x390] sm:$0xf]
    %v3273 = vld [vmem:[#allocation7 + $0x394] sm:$0xf]
    %v3274 = vld [vmem:[#allocation7 + $0x398] sm:$0xf]
    %v3275 = vld [vmem:[#allocation7 + $0x39c] sm:$0xf]
    %v3276 = vld [vmem:[#allocation7 + $0x3a0] sm:$0xf]
    %v3277 = vld [vmem:[#allocation7 + $0x3a4] sm:$0xf]
    %v3278 = vld [vmem:[#allocation7 + $0x3a8] sm:$0xf]
    %v3279 = vld [vmem:[#allocation7 + $0x3ac] sm:$0xf]
    %v3280 = vld [vmem:[#allocation7 + $0x3b0] sm:$0xf]
    %v3281 = vld [vmem:[#allocation7 + $0x3b4] sm:$0xf]
    %v3282 = vld [vmem:[#allocation7 + $0x3b8] sm:$0xf]
    %v3283 = vld [vmem:[#allocation7 + $0x3bc] sm:$0xf]
    %v3284 = vld [vmem:[#allocation7 + $0x3c0] sm:$0xf]
    %v3285 = vld [vmem:[#allocation7 + $0x3c4] sm:$0xf]
    %v3286 = vld [vmem:[#allocation7 + $0x3c8] sm:$0xf]
    %v3287 = vld [vmem:[#allocation7 + $0x3cc] sm:$0xf]
    %v3288 = vld [vmem:[#allocation7 + $0x3d0] sm:$0xf]
    %v3289 = vld [vmem:[#allocation7 + $0x3d4] sm:$0xf]
    %v3290 = vld [vmem:[#allocation7 + $0x3d8] sm:$0xf]
    %v3291 = vld [vmem:[#allocation7 + $0x3dc] sm:$0xf]
    %v3292 = vld [vmem:[#allocation7 + $0x3e0] sm:$0xf]
    %v3293 = vld [vmem:[#allocation7 + $0x3e4] sm:$0xf]
    %v3294 = vld [vmem:[#allocation7 + $0x3e8] sm:$0xf]
    %v3295 = vld [vmem:[#allocation7 + $0x3ec] sm:$0xf]
    %v3296 = vld [vmem:[#allocation7 + $0x3f0] sm:$0xf]
    %v3297 = vld [vmem:[#allocation7 + $0x3f4] sm:$0xf]
    %v3298 = vld [vmem:[#allocation7 + $0x3f8] sm:$0xf]
    %v3299 = vld [vmem:[#allocation7 + $0x3fc] sm:$0xf]
    %v3300 = vld [vmem:[#allocation7 + $0x400] sm:$0xf]
    %v3301 = vld [vmem:[#allocation7 + $0x404] sm:$0xf]
    %v3302 = vld [vmem:[#allocation7 + $0x408] sm:$0xf]
    %v3303 = vld [vmem:[#allocation7 + $0x40c] sm:$0xf]
    %v3304 = vld [vmem:[%s4] sm:$0x1]
    %v3306 = vlaneseq
    %v3307 = vshrl.u32 %v3306, 7
    %v3308 = vsub.s32 0, %v3307
    %v3309 = vrot.slane %v3304, %v3308
    %v3571 = vunpack.c.l.b16 %v3044
    %v3572 = vunpack.c.l.b16 %v3045
    %v3573 = vunpack.c.l.b16 %v3046
    %v3574 = vunpack.c.l.b16 %v3047
    %v3575 = vunpack.c.l.b16 %v3048
    %v3576 = vunpack.c.l.b16 %v3049
    %v3577 = vunpack.c.l.b16 %v3050
    %v3578 = vunpack.c.l.b16 %v3051
    %v3579 = vunpack.c.l.b16 %v3052
    %v3580 = vunpack.c.l.b16 %v3053
    %v3581 = vunpack.c.l.b16 %v3054
    %v3582 = vunpack.c.l.b16 %v3055
    %v3583 = vunpack.c.l.b16 %v3056
    %v3584 = vunpack.c.l.b16 %v3057
    %v3585 = vunpack.c.l.b16 %v3058
    %v3586 = vunpack.c.l.b16 %v3059
    %v3587 = vunpack.c.l.b16 %v3060
    %v3588 = vunpack.c.l.b16 %v3061
    %v3589 = vunpack.c.l.b16 %v3062
    %v3590 = vunpack.c.l.b16 %v3063
    %v3591 = vunpack.c.l.b16 %v3064
    %v3592 = vunpack.c.l.b16 %v3065
    %v3593 = vunpack.c.l.b16 %v3066
    %v3594 = vunpack.c.l.b16 %v3067
    %v3595 = vunpack.c.l.b16 %v3068
    %v3596 = vunpack.c.l.b16 %v3069
    %v3597 = vunpack.c.l.b16 %v3070
    %v3598 = vunpack.c.l.b16 %v3071
    %v3599 = vunpack.c.l.b16 %v3072
    %v3600 = vunpack.c.l.b16 %v3073
    %v3601 = vunpack.c.l.b16 %v3074
    %v3602 = vunpack.c.l.b16 %v3075
    %v3603 = vunpack.c.l.b16 %v3076
    %v3604 = vunpack.c.l.b16 %v3077
    %v3605 = vunpack.c.l.b16 %v3078
    %v3606 = vunpack.c.l.b16 %v3079
    %v3607 = vunpack.c.l.b16 %v3080
    %v3608 = vunpack.c.l.b16 %v3081
    %v3609 = vunpack.c.l.b16 %v3082
    %v3610 = vunpack.c.l.b16 %v3083
    %v3611 = vunpack.c.l.b16 %v3084
    %v3612 = vunpack.c.l.b16 %v3085
    %v3613 = vunpack.c.l.b16 %v3086
    %v3614 = vunpack.c.l.b16 %v3087
    %v3615 = vunpack.c.l.b16 %v3088
    %v3616 = vunpack.c.l.b16 %v3089
    %v3617 = vunpack.c.l.b16 %v3090
    %v3618 = vunpack.c.l.b16 %v3091
    %v3619 = vunpack.c.l.b16 %v3092
    %v3620 = vunpack.c.l.b16 %v3093
    %v3621 = vunpack.c.l.b16 %v3094
    %v3622 = vunpack.c.l.b16 %v3095
    %v3623 = vunpack.c.l.b16 %v3096
    %v3624 = vunpack.c.l.b16 %v3097
    %v3625 = vunpack.c.l.b16 %v3098
    %v3626 = vunpack.c.l.b16 %v3099
    %v3627 = vunpack.c.l.b16 %v3100
    %v3628 = vunpack.c.l.b16 %v3101
    %v3629 = vunpack.c.l.b16 %v3102
    %v3630 = vunpack.c.l.b16 %v3103
    %v3631 = vunpack.c.l.b16 %v3104
    %v3632 = vunpack.c.l.b16 %v3105
    %v3633 = vunpack.c.l.b16 %v3106
    %v3634 = vunpack.c.l.b16 %v3107
    %v3635 = vunpack.c.l.b16 %v3108
    %v3636 = vunpack.c.l.b16 %v3109
    %v3637 = vunpack.c.l.b16 %v3110
    %v3638 = vunpack.c.l.b16 %v3111
    %v3639 = vunpack.c.l.b16 %v3112
    %v3640 = vunpack.c.l.b16 %v3113
    %v3641 = vunpack.c.l.b16 %v3114
    %v3642 = vunpack.c.l.b16 %v3115
    %v3643 = vunpack.c.l.b16 %v3116
    %v3644 = vunpack.c.l.b16 %v3117
    %v3645 = vunpack.c.l.b16 %v3118
    %v3646 = vunpack.c.l.b16 %v3119
    %v3647 = vunpack.c.l.b16 %v3120
    %v3648 = vunpack.c.l.b16 %v3121
    %v3649 = vunpack.c.l.b16 %v3122
    %v3650 = vunpack.c.l.b16 %v3123
    %v3651 = vunpack.c.l.b16 %v3124
    %v3652 = vunpack.c.l.b16 %v3125
    %v3653 = vunpack.c.l.b16 %v3126
    %v3654 = vunpack.c.l.b16 %v3127
    %v3655 = vunpack.c.l.b16 %v3128
    %v3656 = vunpack.c.l.b16 %v3129
    %v3657 = vunpack.c.l.b16 %v3130
    %v3658 = vunpack.c.l.b16 %v3131
    %v3659 = vunpack.c.l.b16 %v3132
    %v3660 = vunpack.c.l.b16 %v3133
    %v3661 = vunpack.c.l.b16 %v3134
    %v3662 = vunpack.c.l.b16 %v3135
    %v3663 = vunpack.c.l.b16 %v3136
    %v3664 = vunpack.c.l.b16 %v3137
    %v3665 = vunpack.c.l.b16 %v3138
    %v3666 = vunpack.c.l.b16 %v3139
    %v3667 = vunpack.c.l.b16 %v3140
    %v3668 = vunpack.c.l.b16 %v3141
    %v3669 = vunpack.c.l.b16 %v3142
    %v3670 = vunpack.c.l.b16 %v3143
    %v3671 = vunpack.c.l.b16 %v3144
    %v3672 = vunpack.c.l.b16 %v3145
    %v3673 = vunpack.c.l.b16 %v3146
    %v3674 = vunpack.c.l.b16 %v3147
    %v3675 = vunpack.c.l.b16 %v3148
    %v3676 = vunpack.c.l.b16 %v3149
    %v3677 = vunpack.c.l.b16 %v3150
    %v3678 = vunpack.c.l.b16 %v3151
    %v3679 = vunpack.c.l.b16 %v3152
    %v3680 = vunpack.c.l.b16 %v3153
    %v3681 = vunpack.c.l.b16 %v3154
    %v3682 = vunpack.c.l.b16 %v3155
    %v3683 = vunpack.c.l.b16 %v3156
    %v3684 = vunpack.c.l.b16 %v3157
    %v3685 = vunpack.c.l.b16 %v3158
    %v3686 = vunpack.c.l.b16 %v3159
    %v3687 = vunpack.c.l.b16 %v3160
    %v3688 = vunpack.c.l.b16 %v3161
    %v3689 = vunpack.c.l.b16 %v3162
    %v3690 = vunpack.c.l.b16 %v3163
    %v3691 = vunpack.c.l.b16 %v3164
    %v3692 = vunpack.c.l.b16 %v3165
    %v3693 = vunpack.c.l.b16 %v3166
    %v3694 = vunpack.c.l.b16 %v3167
    %v3695 = vunpack.c.l.b16 %v3168
    %v3696 = vunpack.c.l.b16 %v3169
    %v3697 = vunpack.c.l.b16 %v3170
    %v3698 = vunpack.c.l.b16 %v3171
    %v3699 = vunpack.c.l.b16 %v3172
    %v3700 = vunpack.c.l.b16 %v3173
    %v3701 = vunpack.c.l.b16 %v3174
    %v3702 = vunpack.c.l.b16 %v3175
    %v3703 = vunpack.c.l.b16 %v3176
    %v3704 = vunpack.c.l.b16 %v3177
    %v3705 = vunpack.c.l.b16 %v3178
    %v3706 = vunpack.c.l.b16 %v3179
    %v3707 = vunpack.c.l.b16 %v3180
    %v3708 = vunpack.c.l.b16 %v3181
    %v3709 = vunpack.c.l.b16 %v3182
    %v3710 = vunpack.c.l.b16 %v3183
    %v3711 = vunpack.c.l.b16 %v3184
    %v3712 = vunpack.c.l.b16 %v3185
    %v3713 = vunpack.c.l.b16 %v3186
    %v3714 = vunpack.c.l.b16 %v3187
    %v3715 = vunpack.c.l.b16 %v3188
    %v3716 = vunpack.c.l.b16 %v3189
    %v3717 = vunpack.c.l.b16 %v3190
    %v3718 = vunpack.c.l.b16 %v3191
    %v3719 = vunpack.c.l.b16 %v3192
    %v3720 = vunpack.c.l.b16 %v3193
    %v3721 = vunpack.c.l.b16 %v3194
    %v3722 = vunpack.c.l.b16 %v3195
    %v3723 = vunpack.c.l.b16 %v3196
    %v3724 = vunpack.c.l.b16 %v3197
    %v3725 = vunpack.c.l.b16 %v3198
    %v3726 = vunpack.c.l.b16 %v3199
    %v3727 = vunpack.c.l.b16 %v3200
    %v3728 = vunpack.c.l.b16 %v3201
    %v3729 = vunpack.c.l.b16 %v3202
    %v3730 = vunpack.c.l.b16 %v3203
    %v3731 = vunpack.c.l.b16 %v3204
    %v3732 = vunpack.c.l.b16 %v3205
    %v3733 = vunpack.c.l.b16 %v3206
    %v3734 = vunpack.c.l.b16 %v3207
    %v3735 = vunpack.c.l.b16 %v3208
    %v3736 = vunpack.c.l.b16 %v3209
    %v3737 = vunpack.c.l.b16 %v3210
    %v3738 = vunpack.c.l.b16 %v3211
    %v3739 = vunpack.c.l.b16 %v3212
    %v3740 = vunpack.c.l.b16 %v3213
    %v3741 = vunpack.c.l.b16 %v3214
    %v3742 = vunpack.c.l.b16 %v3215
    %v3743 = vunpack.c.l.b16 %v3216
    %v3744 = vunpack.c.l.b16 %v3217
    %v3745 = vunpack.c.l.b16 %v3218
    %v3746 = vunpack.c.l.b16 %v3219
    %v3747 = vunpack.c.l.b16 %v3220
    %v3748 = vunpack.c.l.b16 %v3221
    %v3749 = vunpack.c.l.b16 %v3222
    %v3750 = vunpack.c.l.b16 %v3223
    %v3751 = vunpack.c.l.b16 %v3224
    %v3752 = vunpack.c.l.b16 %v3225
    %v3753 = vunpack.c.l.b16 %v3226
    %v3754 = vunpack.c.l.b16 %v3227
    %v3755 = vunpack.c.l.b16 %v3228
    %v3756 = vunpack.c.l.b16 %v3229
    %v3757 = vunpack.c.l.b16 %v3230
    %v3758 = vunpack.c.l.b16 %v3231
    %v3759 = vunpack.c.l.b16 %v3232
    %v3760 = vunpack.c.l.b16 %v3233
    %v3761 = vunpack.c.l.b16 %v3234
    %v3762 = vunpack.c.l.b16 %v3235
    %v3763 = vunpack.c.l.b16 %v3236
    %v3764 = vunpack.c.l.b16 %v3237
    %v3765 = vunpack.c.l.b16 %v3238
    %v3766 = vunpack.c.l.b16 %v3239
    %v3767 = vunpack.c.l.b16 %v3240
    %v3768 = vunpack.c.l.b16 %v3241
    %v3769 = vunpack.c.l.b16 %v3242
    %v3770 = vunpack.c.l.b16 %v3243
    %v3771 = vunpack.c.l.b16 %v3244
    %v3772 = vunpack.c.l.b16 %v3245
    %v3773 = vunpack.c.l.b16 %v3246
    %v3774 = vunpack.c.l.b16 %v3247
    %v3775 = vunpack.c.l.b16 %v3248
    %v3776 = vunpack.c.l.b16 %v3249
    %v3777 = vunpack.c.l.b16 %v3250
    %v3778 = vunpack.c.l.b16 %v3251
    %v3779 = vunpack.c.l.b16 %v3252
    %v3780 = vunpack.c.l.b16 %v3253
    %v3781 = vunpack.c.l.b16 %v3254
    %v3782 = vunpack.c.l.b16 %v3255
    %v3783 = vunpack.c.l.b16 %v3256
    %v3784 = vunpack.c.l.b16 %v3257
    %v3785 = vunpack.c.l.b16 %v3258
    %v3786 = vunpack.c.l.b16 %v3259
    %v3787 = vunpack.c.l.b16 %v3260
    %v3788 = vunpack.c.l.b16 %v3261
    %v3789 = vunpack.c.l.b16 %v3262
    %v3790 = vunpack.c.l.b16 %v3263
    %v3791 = vunpack.c.l.b16 %v3264
    %v3792 = vunpack.c.l.b16 %v3265
    %v3793 = vunpack.c.l.b16 %v3266
    %v3794 = vunpack.c.l.b16 %v3267
    %v3795 = vunpack.c.l.b16 %v3268
    %v3796 = vunpack.c.l.b16 %v3269
    %v3797 = vunpack.c.l.b16 %v3270
    %v3798 = vunpack.c.l.b16 %v3271
    %v3799 = vunpack.c.l.b16 %v3272
    %v3800 = vunpack.c.l.b16 %v3273
    %v3801 = vunpack.c.l.b16 %v3274
    %v3802 = vunpack.c.l.b16 %v3275
    %v3803 = vunpack.c.l.b16 %v3276
    %v3804 = vunpack.c.l.b16 %v3277
    %v3805 = vunpack.c.l.b16 %v3278
    %v3806 = vunpack.c.l.b16 %v3279
    %v3807 = vunpack.c.l.b16 %v3280
    %v3808 = vunpack.c.l.b16 %v3281
    %v3809 = vunpack.c.l.b16 %v3282
    %v3810 = vunpack.c.l.b16 %v3283
    %v3811 = vunpack.c.l.b16 %v3284
    %v3812 = vunpack.c.l.b16 %v3285
    %v3813 = vunpack.c.l.b16 %v3286
    %v3814 = vunpack.c.l.b16 %v3287
    %v3815 = vunpack.c.l.b16 %v3288
    %v3816 = vunpack.c.l.b16 %v3289
    %v3817 = vunpack.c.l.b16 %v3290
    %v3818 = vunpack.c.l.b16 %v3291
    %v3819 = vunpack.c.l.b16 %v3292
    %v3820 = vunpack.c.l.b16 %v3293
    %v3821 = vunpack.c.l.b16 %v3294
    %v3822 = vunpack.c.l.b16 %v3295
    %v3823 = vunpack.c.l.b16 %v3296
    %v3824 = vunpack.c.l.b16 %v3297
    %v3825 = vunpack.c.l.b16 %v3298
    %v3826 = vunpack.c.l.b16 %v3299
    %v3827 = vunpack.c.l.b16 %v3300
    %v3828 = vunpack.c.l.b16 %v3301
    %v3829 = vunpack.c.l.b16 %v3302
    %v3830 = vunpack.c.l.b16 %v3303
    %v3831 = vpack.c.b16 %v3572, %v3571
    %v3832 = vpack.c.b16 %v3574, %v3573
    %v3833 = vpack.c.b16 %v3576, %v3575
    %v3834 = vpack.c.b16 %v3578, %v3577
    %v3835 = vpack.c.b16 %v3580, %v3579
    %v3836 = vpack.c.b16 %v3582, %v3581
    %v3837 = vpack.c.b16 %v3584, %v3583
    %v3838 = vpack.c.b16 %v3586, %v3585
    %v3839 = vpack.c.b16 %v3588, %v3587
    %v3840 = vpack.c.b16 %v3590, %v3589
    %v3841 = vpack.c.b16 %v3592, %v3591
    %v3842 = vpack.c.b16 %v3594, %v3593
    %v3843 = vpack.c.b16 %v3596, %v3595
    %v3844 = vpack.c.b16 %v3598, %v3597
    %v3845 = vpack.c.b16 %v3600, %v3599
    %v3846 = vpack.c.b16 %v3602, %v3601
    %v3847 = vpack.c.b16 %v3604, %v3603
    %v3848 = vpack.c.b16 %v3606, %v3605
    %v3849 = vpack.c.b16 %v3608, %v3607
    %v3850 = vpack.c.b16 %v3610, %v3609
    %v3851 = vpack.c.b16 %v3612, %v3611
    %v3852 = vpack.c.b16 %v3614, %v3613
    %v3853 = vpack.c.b16 %v3616, %v3615
    %v3854 = vpack.c.b16 %v3618, %v3617
    %v3855 = vpack.c.b16 %v3620, %v3619
    %v3856 = vpack.c.b16 %v3622, %v3621
    %v3857 = vpack.c.b16 %v3624, %v3623
    %v3858 = vpack.c.b16 %v3626, %v3625
    %v3859 = vpack.c.b16 %v3628, %v3627
    %v3860 = vpack.c.b16 %v3630, %v3629
    %v3861 = vpack.c.b16 %v3632, %v3631
    %v3862 = vpack.c.b16 %v3634, %v3633
    %v3863 = vpack.c.b16 %v3636, %v3635
    %v3864 = vpack.c.b16 %v3638, %v3637
    %v3865 = vpack.c.b16 %v3640, %v3639
    %v3866 = vpack.c.b16 %v3642, %v3641
    %v3867 = vpack.c.b16 %v3644, %v3643
    %v3868 = vpack.c.b16 %v3646, %v3645
    %v3869 = vpack.c.b16 %v3648, %v3647
    %v3870 = vpack.c.b16 %v3650, %v3649
    %v3871 = vpack.c.b16 %v3652, %v3651
    %v3872 = vpack.c.b16 %v3654, %v3653
    %v3873 = vpack.c.b16 %v3656, %v3655
    %v3874 = vpack.c.b16 %v3658, %v3657
    %v3875 = vpack.c.b16 %v3660, %v3659
    %v3876 = vpack.c.b16 %v3662, %v3661
    %v3877 = vpack.c.b16 %v3664, %v3663
    %v3878 = vpack.c.b16 %v3666, %v3665
    %v3879 = vpack.c.b16 %v3668, %v3667
    %v3880 = vpack.c.b16 %v3670, %v3669
    %v3881 = vpack.c.b16 %v3672, %v3671
    %v3882 = vpack.c.b16 %v3674, %v3673
    %v3883 = vpack.c.b16 %v3676, %v3675
    %v3884 = vpack.c.b16 %v3678, %v3677
    %v3885 = vpack.c.b16 %v3680, %v3679
    %v3886 = vpack.c.b16 %v3682, %v3681
    %v3887 = vpack.c.b16 %v3684, %v3683
    %v3888 = vpack.c.b16 %v3686, %v3685
    %v3889 = vpack.c.b16 %v3688, %v3687
    %v3890 = vpack.c.b16 %v3690, %v3689
    %v3891 = vpack.c.b16 %v3692, %v3691
    %v3892 = vpack.c.b16 %v3694, %v3693
    %v3893 = vpack.c.b16 %v3696, %v3695
    %v3894 = vpack.c.b16 %v3698, %v3697
    %v3895 = vpack.c.b16 %v3700, %v3699
    %v3896 = vpack.c.b16 %v3702, %v3701
    %v3897 = vpack.c.b16 %v3704, %v3703
    %v3898 = vpack.c.b16 %v3706, %v3705
    %v3899 = vpack.c.b16 %v3708, %v3707
    %v3900 = vpack.c.b16 %v3710, %v3709
    %v3901 = vpack.c.b16 %v3712, %v3711
    %v3902 = vpack.c.b16 %v3714, %v3713
    %v3903 = vpack.c.b16 %v3716, %v3715
    %v3904 = vpack.c.b16 %v3718, %v3717
    %v3905 = vpack.c.b16 %v3720, %v3719
    %v3906 = vpack.c.b16 %v3722, %v3721
    %v3907 = vpack.c.b16 %v3724, %v3723
    %v3908 = vpack.c.b16 %v3726, %v3725
    %v3909 = vpack.c.b16 %v3728, %v3727
    %v3910 = vpack.c.b16 %v3730, %v3729
    %v3911 = vpack.c.b16 %v3732, %v3731
    %v3912 = vpack.c.b16 %v3734, %v3733
    %v3913 = vpack.c.b16 %v3736, %v3735
    %v3914 = vpack.c.b16 %v3738, %v3737
    %v3915 = vpack.c.b16 %v3740, %v3739
    %v3916 = vpack.c.b16 %v3742, %v3741
    %v3917 = vpack.c.b16 %v3744, %v3743
    %v3918 = vpack.c.b16 %v3746, %v3745
    %v3919 = vpack.c.b16 %v3748, %v3747
    %v3920 = vpack.c.b16 %v3750, %v3749
    %v3921 = vpack.c.b16 %v3752, %v3751
    %v3922 = vpack.c.b16 %v3754, %v3753
    %v3923 = vpack.c.b16 %v3756, %v3755
    %v3924 = vpack.c.b16 %v3758, %v3757
    %v3925 = vpack.c.b16 %v3760, %v3759
    %v3926 = vpack.c.b16 %v3762, %v3761
    %v3927 = vpack.c.b16 %v3764, %v3763
    %v3928 = vpack.c.b16 %v3766, %v3765
    %v3929 = vpack.c.b16 %v3768, %v3767
    %v3930 = vpack.c.b16 %v3770, %v3769
    %v3931 = vpack.c.b16 %v3772, %v3771
    %v3932 = vpack.c.b16 %v3774, %v3773
    %v3933 = vpack.c.b16 %v3776, %v3775
    %v3934 = vpack.c.b16 %v3778, %v3777
    %v3935 = vpack.c.b16 %v3780, %v3779
    %v3936 = vpack.c.b16 %v3782, %v3781
    %v3937 = vpack.c.b16 %v3784, %v3783
    %v3938 = vpack.c.b16 %v3786, %v3785
    %v3939 = vpack.c.b16 %v3788, %v3787
    %v3940 = vpack.c.b16 %v3790, %v3789
    %v3941 = vpack.c.b16 %v3792, %v3791
    %v3942 = vpack.c.b16 %v3794, %v3793
    %v3943 = vpack.c.b16 %v3796, %v3795
    %v3944 = vpack.c.b16 %v3798, %v3797
    %v3945 = vpack.c.b16 %v3800, %v3799
    %v3946 = vpack.c.b16 %v3802, %v3801
    %v3947 = vpack.c.b16 %v3804, %v3803
    %v3948 = vpack.c.b16 %v3806, %v3805
    %v3949 = vpack.c.b16 %v3808, %v3807
    %v3950 = vpack.c.b16 %v3810, %v3809
    %v3951 = vpack.c.b16 %v3812, %v3811
    %v3952 = vpack.c.b16 %v3814, %v3813
    %v3953 = vpack.c.b16 %v3816, %v3815
    %v3954 = vpack.c.b16 %v3818, %v3817
    %v3955 = vpack.c.b16 %v3820, %v3819
    %v3956 = vpack.c.b16 %v3822, %v3821
    %v3957 = vpack.c.b16 %v3824, %v3823
    %v3958 = vpack.c.b16 %v3826, %v3825
    %v3959 = vpack.c.b16 %v3828, %v3827
    %v3960 = vpack.c.b16 %v3830, %v3829
    %v4092 = vsel %vm2071, %v3043, 0
    %4094 = vmatprep.subr.bf16.mxu0 0
    %4095 = vmatpush1.bf16.msra.mxu0 %v3831
    %4096 = vmatprep.subr.bf16.mxu0 0
    %4097 = vmatpush1.bf16.msra.mxu0 %v3832
    %4098 = vmatprep.subr.bf16.mxu0 0
    %4099 = vmatpush1.bf16.msra.mxu0 %v3833
    %4100 = vmatprep.subr.bf16.mxu0 0
    %4101 = vmatpush1.bf16.msra.mxu0 %v3834
    %4102 = vmatprep.subr.bf16.mxu0 0
    %4103 = vmatpush1.bf16.msra.mxu0 %v3835
    %4104 = vmatprep.subr.bf16.mxu0 0
    %4105 = vmatpush1.bf16.msra.mxu0 %v3836
    %4106 = vmatprep.subr.bf16.mxu0 0
    %4107 = vmatpush1.bf16.msra.mxu0 %v3837
    %4108 = vmatprep.subr.bf16.mxu0 0
    %4109 = vmatpush1.bf16.msra.mxu0 %v3838
    %4110 = vmatprep.subr.bf16.mxu0 0
    %4111 = vmatpush1.bf16.msra.mxu0 %v3839
    %4112 = vmatprep.subr.bf16.mxu0 0
    %4113 = vmatpush1.bf16.msra.mxu0 %v3840
    %4114 = vmatprep.subr.bf16.mxu0 0
    %4115 = vmatpush1.bf16.msra.mxu0 %v3841
    %4116 = vmatprep.subr.bf16.mxu0 0
    %4117 = vmatpush1.bf16.msra.mxu0 %v3842
    %4118 = vmatprep.subr.bf16.mxu0 0
    %4119 = vmatpush1.bf16.msra.mxu0 %v3843
    %4120 = vmatprep.subr.bf16.mxu0 0
    %4121 = vmatpush1.bf16.msra.mxu0 %v3844
    %4122 = vmatprep.subr.bf16.mxu0 0
    %4123 = vmatpush1.bf16.msra.mxu0 %v3845
    %4124 = vmatprep.subr.bf16.mxu0 0
    %4125 = vmatpush1.bf16.msra.mxu0 %v3846
    %4126 = vmatprep.mubr.bf16.mxu0 %v3028
    %4127 = vmatmul.mubr.bf16.gmra.mrb[0].mxu0 %v3027
    %v4128 = vpop.f32.mrb[0].mxu0
    %v4129 = vadd.f32 %v3309, %v4128
    %v4130 = vpop.f32.mrb[0].mxu0
    %v4131 = vpop.f32.mrb[0].mxu0
    %v4132 = vadd.f32 %v3309, %v4131
    %v4133 = vpop.f32.mrb[0].mxu0
    %4134 = vdwg.mxu0
    %4135 = vmatprep.subr.bf16.mxu0 0
    %4136 = vmatpush1.bf16.msra.mxu0 %v3847
    %4137 = vmatprep.subr.bf16.mxu0 0
    %4138 = vmatpush1.bf16.msra.mxu0 %v3848
    %4139 = vmatprep.subr.bf16.mxu0 0
    %4140 = vmatpush1.bf16.msra.mxu0 %v3849
    %4141 = vmatprep.subr.bf16.mxu0 0
    %4142 = vmatpush1.bf16.msra.mxu0 %v3850
    %4143 = vmatprep.subr.bf16.mxu0 0
    %4144 = vmatpush1.bf16.msra.mxu0 %v3851
    %4145 = vmatprep.subr.bf16.mxu0 0
    %4146 = vmatpush1.bf16.msra.mxu0 %v3852
    %4147 = vmatprep.subr.bf16.mxu0 0
    %4148 = vmatpush1.bf16.msra.mxu0 %v3853
    %4149 = vmatprep.subr.bf16.mxu0 0
    %4150 = vmatpush1.bf16.msra.mxu0 %v3854
    %4151 = vmatprep.subr.bf16.mxu0 0
    %4152 = vmatpush1.bf16.msra.mxu0 %v3855
    %4153 = vmatprep.subr.bf16.mxu0 0
    %4154 = vmatpush1.bf16.msra.mxu0 %v3856
    %4155 = vmatprep.subr.bf16.mxu0 0
    %4156 = vmatpush1.bf16.msra.mxu0 %v3857
    %4157 = vmatprep.subr.bf16.mxu0 0
    %4158 = vmatpush1.bf16.msra.mxu0 %v3858
    %4159 = vmatprep.subr.bf16.mxu0 0
    %4160 = vmatpush1.bf16.msra.mxu0 %v3859
    %4161 = vmatprep.subr.bf16.mxu0 0
    %4162 = vmatpush1.bf16.msra.mxu0 %v3860
    %4163 = vmatprep.subr.bf16.mxu0 0
    %4164 = vmatpush1.bf16.msra.mxu0 %v3861
    %4165 = vmatprep.subr.bf16.mxu0 0
    %4166 = vmatpush1.bf16.msra.mxu0 %v3862
    %4167 = vmatprep.mubr.bf16.mxu0 %v3030
    %4168 = vmatmul.mubr.bf16.gmra.mrb[0].mxu0 %v3029
    %v4169 = vpop.f32.mrb[0].mxu0
    %v4170 = vadd.f32 %v4129, %v4169
    %v4171 = vpop.f32.mrb[0].mxu0
    %v4172 = vpop.f32.mrb[0].mxu0
    %v4173 = vadd.f32 %v4132, %v4172
    %v4174 = vpop.f32.mrb[0].mxu0
    %4175 = vdwg.mxu0
    %4176 = vmatprep.subr.bf16.mxu0 0
    %4177 = vmatpush1.bf16.msra.mxu0 %v3863
    %4178 = vmatprep.subr.bf16.mxu0 0
    %4179 = vmatpush1.bf16.msra.mxu0 %v3864
    %4180 = vmatprep.subr.bf16.mxu0 0
    %4181 = vmatpush1.bf16.msra.mxu0 %v3865
    %4182 = vmatprep.subr.bf16.mxu0 0
    %4183 = vmatpush1.bf16.msra.mxu0 %v3866
    %4184 = vmatprep.subr.bf16.mxu0 0
    %4185 = vmatpush1.bf16.msra.mxu0 %v3867
    %4186 = vmatprep.subr.bf16.mxu0 0
    %4187 = vmatpush1.bf16.msra.mxu0 %v3868
    %4188 = vmatprep.subr.bf16.mxu0 0
    %4189 = vmatpush1.bf16.msra.mxu0 %v3869
    %4190 = vmatprep.subr.bf16.mxu0 0
    %4191 = vmatpush1.bf16.msra.mxu0 %v3870
    %4192 = vmatprep.subr.bf16.mxu0 0
    %4193 = vmatpush1.bf16.msra.mxu0 %v3871
    %4194 = vmatprep.subr.bf16.mxu0 0
    %4195 = vmatpush1.bf16.msra.mxu0 %v3872
    %4196 = vmatprep.subr.bf16.mxu0 0
    %4197 = vmatpush1.bf16.msra.mxu0 %v3873
    %4198 = vmatprep.subr.bf16.mxu0 0
    %4199 = vmatpush1.bf16.msra.mxu0 %v3874
    %4200 = vmatprep.subr.bf16.mxu0 0
    %4201 = vmatpush1.bf16.msra.mxu0 %v3875
    %4202 = vmatprep.subr.bf16.mxu0 0
    %4203 = vmatpush1.bf16.msra.mxu0 %v3876
    %4204 = vmatprep.subr.bf16.mxu0 0
    %4205 = vmatpush1.bf16.msra.mxu0 %v3877
    %4206 = vmatprep.subr.bf16.mxu0 0
    %4207 = vmatpush1.bf16.msra.mxu0 %v3878
    %4208 = vmatprep.mubr.bf16.mxu0 %v3032
    %4209 = vmatmul.mubr.bf16.gmra.mrb[0].mxu0 %v3031
    %v4210 = vpop.f32.mrb[0].mxu0
    %v4211 = vadd.f32 %v4170, %v4210
    %v4212 = vpop.f32.mrb[0].mxu0
    %v4213 = vpop.f32.mrb[0].mxu0
    %v4214 = vadd.f32 %v4173, %v4213
    %v4215 = vpop.f32.mrb[0].mxu0
    %4216 = vdwg.mxu0
    %4217 = vmatprep.subr.bf16.mxu0 0
    %4218 = vmatpush1.bf16.msra.mxu0 %v3879
    %4219 = vmatprep.subr.bf16.mxu0 0
    %4220 = vmatpush1.bf16.msra.mxu0 %v3880
    %4221 = vmatprep.subr.bf16.mxu0 0
    %4222 = vmatpush1.bf16.msra.mxu0 %v3881
    %4223 = vmatprep.subr.bf16.mxu0 0
    %4224 = vmatpush1.bf16.msra.mxu0 %v3882
    %4225 = vmatprep.subr.bf16.mxu0 0
    %4226 = vmatpush1.bf16.msra.mxu0 %v3883
    %4227 = vmatprep.subr.bf16.mxu0 0
    %4228 = vmatpush1.bf16.msra.mxu0 %v3884
    %4229 = vmatprep.subr.bf16.mxu0 0
    %4230 = vmatpush1.bf16.msra.mxu0 %v3885
    %4231 = vmatprep.subr.bf16.mxu0 0
    %4232 = vmatpush1.bf16.msra.mxu0 %v3886
    %4233 = vmatprep.subr.bf16.mxu0 0
    %4234 = vmatpush1.bf16.msra.mxu0 %v3887
    %4235 = vmatprep.subr.bf16.mxu0 0
    %4236 = vmatpush1.bf16.msra.mxu0 %v3888
    %4237 = vmatprep.subr.bf16.mxu0 0
    %4238 = vmatpush1.bf16.msra.mxu0 %v3889
    %4239 = vmatprep.subr.bf16.mxu0 0
    %4240 = vmatpush1.bf16.msra.mxu0 %v3890
    %4241 = vmatprep.subr.bf16.mxu0 0
    %4242 = vmatpush1.bf16.msra.mxu0 %v3891
    %4243 = vmatprep.subr.bf16.mxu0 0
    %4244 = vmatpush1.bf16.msra.mxu0 %v3892
    %4245 = vmatprep.subr.bf16.mxu0 0
    %4246 = vmatpush1.bf16.msra.mxu0 %v3893
    %4247 = vmatprep.subr.bf16.mxu0 0
    %4248 = vmatpush1.bf16.msra.mxu0 %v3894
    %4249 = vmatprep.mubr.bf16.mxu0 %v3034
    %4250 = vmatmul.mubr.bf16.gmra.mrb[0].mxu0 %v3033
    %v4251 = vpop.f32.mrb[0].mxu0
    %v4252 = vadd.f32 %v4211, %v4251
    %v4253 = vpop.f32.mrb[0].mxu0
    %v4254 = vpop.f32.mrb[0].mxu0
    %v4255 = vadd.f32 %v4214, %v4254
    %v4256 = vpop.f32.mrb[0].mxu0
    %4257 = vdwg.mxu0
    %4258 = vmatprep.subr.bf16.mxu0 0
    %4259 = vmatpush1.bf16.msra.mxu0 %v3895
    %4260 = vmatprep.subr.bf16.mxu0 0
    %4261 = vmatpush1.bf16.msra.mxu0 %v3896
    %4262 = vmatprep.subr.bf16.mxu0 0
    %4263 = vmatpush1.bf16.msra.mxu0 %v3897
    %4264 = vmatprep.subr.bf16.mxu0 0
    %4265 = vmatpush1.bf16.msra.mxu0 %v3898
    %4266 = vmatprep.subr.bf16.mxu0 0
    %4267 = vmatpush1.bf16.msra.mxu0 %v3899
    %4268 = vmatprep.subr.bf16.mxu0 0
    %4269 = vmatpush1.bf16.msra.mxu0 %v3900
    %4270 = vmatprep.subr.bf16.mxu0 0
    %4271 = vmatpush1.bf16.msra.mxu0 %v3901
    %4272 = vmatprep.subr.bf16.mxu0 0
    %4273 = vmatpush1.bf16.msra.mxu0 %v3902
    %4274 = vmatprep.subr.bf16.mxu0 0
    %4275 = vmatpush1.bf16.msra.mxu0 %v3903
    %4276 = vmatprep.subr.bf16.mxu0 0
    %4277 = vmatpush1.bf16.msra.mxu0 %v3904
    %4278 = vmatprep.subr.bf16.mxu0 0
    %4279 = vmatpush1.bf16.msra.mxu0 %v3905
    %4280 = vmatprep.subr.bf16.mxu0 0
    %4281 = vmatpush1.bf16.msra.mxu0 %v3906
    %4282 = vmatprep.subr.bf16.mxu0 0
    %4283 = vmatpush1.bf16.msra.mxu0 %v3907
    %4284 = vmatprep.subr.bf16.mxu0 0
    %4285 = vmatpush1.bf16.msra.mxu0 %v3908
    %4286 = vmatprep.subr.bf16.mxu0 0
    %4287 = vmatpush1.bf16.msra.mxu0 %v3909
    %4288 = vmatprep.subr.bf16.mxu0 0
    %4289 = vmatpush1.bf16.msra.mxu0 %v3910
    %4290 = vmatprep.mubr.bf16.mxu0 %v3036
    %4291 = vmatmul.mubr.bf16.gmra.mrb[0].mxu0 %v3035
    %v4292 = vpop.f32.mrb[0].mxu0
    %v4293 = vadd.f32 %v4252, %v4292
    %v4294 = vpop.f32.mrb[0].mxu0
    %v4295 = vpop.f32.mrb[0].mxu0
    %v4296 = vadd.f32 %v4255, %v4295
    %v4297 = vpop.f32.mrb[0].mxu0
    %4298 = vdwg.mxu0
    %4299 = vmatprep.subr.bf16.mxu0 0
    %4300 = vmatpush1.bf16.msra.mxu0 %v3911
    %4301 = vmatprep.subr.bf16.mxu0 0
    %4302 = vmatpush1.bf16.msra.mxu0 %v3912
    %4303 = vmatprep.subr.bf16.mxu0 0
    %4304 = vmatpush1.bf16.msra.mxu0 %v3913
    %4305 = vmatprep.subr.bf16.mxu0 0
    %4306 = vmatpush1.bf16.msra.mxu0 %v3914
    %4307 = vmatprep.subr.bf16.mxu0 0
    %4308 = vmatpush1.bf16.msra.mxu0 %v3915
    %4309 = vmatprep.subr.bf16.mxu0 0
    %4310 = vmatpush1.bf16.msra.mxu0 %v3916
    %4311 = vmatprep.subr.bf16.mxu0 0
    %4312 = vmatpush1.bf16.msra.mxu0 %v3917
    %4313 = vmatprep.subr.bf16.mxu0 0
    %4314 = vmatpush1.bf16.msra.mxu0 %v3918
    %4315 = vmatprep.subr.bf16.mxu0 0
    %4316 = vmatpush1.bf16.msra.mxu0 %v3919
    %4317 = vmatprep.subr.bf16.mxu0 0
    %4318 = vmatpush1.bf16.msra.mxu0 %v3920
    %4319 = vmatprep.subr.bf16.mxu0 0
    %4320 = vmatpush1.bf16.msra.mxu0 %v3921
    %4321 = vmatprep.subr.bf16.mxu0 0
    %4322 = vmatpush1.bf16.msra.mxu0 %v3922
    %4323 = vmatprep.subr.bf16.mxu0 0
    %4324 = vmatpush1.bf16.msra.mxu0 %v3923
    %4325 = vmatprep.subr.bf16.mxu0 0
    %4326 = vmatpush1.bf16.msra.mxu0 %v3924
    %4327 = vmatprep.subr.bf16.mxu0 0
    %4328 = vmatpush1.bf16.msra.mxu0 %v3925
    %4329 = vmatprep.subr.bf16.mxu0 0
    %4330 = vmatpush1.bf16.msra.mxu0 %v3926
    %4331 = vmatprep.mubr.bf16.mxu0 %v3038
    %4332 = vmatmul.mubr.bf16.gmra.mrb[0].mxu0 %v3037
    %v4333 = vpop.f32.mrb[0].mxu0
    %v4334 = vadd.f32 %v4293, %v4333
    %v4335 = vpop.f32.mrb[0].mxu0
    %v4336 = vpop.f32.mrb[0].mxu0
    %v4337 = vadd.f32 %v4296, %v4336
    %v4338 = vpop.f32.mrb[0].mxu0
    %4339 = vdwg.mxu0
    %4340 = vmatprep.subr.bf16.mxu0 0
    %4341 = vmatpush1.bf16.msra.mxu0 %v3927
    %4342 = vmatprep.subr.bf16.mxu0 0
    %4343 = vmatpush1.bf16.msra.mxu0 %v3928
    %4344 = vmatprep.subr.bf16.mxu0 0
    %4345 = vmatpush1.bf16.msra.mxu0 %v3929
    %4346 = vmatprep.subr.bf16.mxu0 0
    %4347 = vmatpush1.bf16.msra.mxu0 %v3930
    %4348 = vmatprep.subr.bf16.mxu0 0
    %4349 = vmatpush1.bf16.msra.mxu0 %v3931
    %4350 = vmatprep.subr.bf16.mxu0 0
    %4351 = vmatpush1.bf16.msra.mxu0 %v3932
    %4352 = vmatprep.subr.bf16.mxu0 0
    %4353 = vmatpush1.bf16.msra.mxu0 %v3933
    %4354 = vmatprep.subr.bf16.mxu0 0
    %4355 = vmatpush1.bf16.msra.mxu0 %v3934
    %4356 = vmatprep.subr.bf16.mxu0 0
    %4357 = vmatpush1.bf16.msra.mxu0 %v3935
    %4358 = vmatprep.subr.bf16.mxu0 0
    %4359 = vmatpush1.bf16.msra.mxu0 %v3936
    %4360 = vmatprep.subr.bf16.mxu0 0
    %4361 = vmatpush1.bf16.msra.mxu0 %v3937
    %4362 = vmatprep.subr.bf16.mxu0 0
    %4363 = vmatpush1.bf16.msra.mxu0 %v3938
    %4364 = vmatprep.subr.bf16.mxu0 0
    %4365 = vmatpush1.bf16.msra.mxu0 %v3939
    %4366 = vmatprep.subr.bf16.mxu0 0
    %4367 = vmatpush1.bf16.msra.mxu0 %v3940
    %4368 = vmatprep.subr.bf16.mxu0 0
    %4369 = vmatpush1.bf16.msra.mxu0 %v3941
    %4370 = vmatprep.subr.bf16.mxu0 0
    %4371 = vmatpush1.bf16.msra.mxu0 %v3942
    %4372 = vmatprep.mubr.bf16.mxu0 %v3040
    %4373 = vmatmul.mubr.bf16.gmra.mrb[0].mxu0 %v3039
    %v4374 = vpop.f32.mrb[0].mxu0
    %v4375 = vadd.f32 %v4334, %v4374
    %v4376 = vpop.f32.mrb[0].mxu0
    %v4377 = vpop.f32.mrb[0].mxu0
    %v4378 = vadd.f32 %v4337, %v4377
    %v4379 = vpop.f32.mrb[0].mxu0
    %4380 = vdwg.mxu0
    %4381 = vmatprep.subr.bf16.mxu0 0
    %4382 = vmatpush1.bf16.msra.mxu0 %v3943
    %4383 = vmatprep.subr.bf16.mxu0 0
    %4384 = vmatpush1.bf16.msra.mxu0 %v3944
    %4385 = vmatprep.subr.bf16.mxu0 0
    %4386 = vmatpush1.bf16.msra.mxu0 %v3945
    %4387 = vmatprep.subr.bf16.mxu0 0
    %4388 = vmatpush1.bf16.msra.mxu0 %v3946
    %4389 = vmatprep.subr.bf16.mxu0 0
    %4390 = vmatpush1.bf16.msra.mxu0 %v3947
    %4391 = vmatprep.subr.bf16.mxu0 0
    %4392 = vmatpush1.bf16.msra.mxu0 %v3948
    %4393 = vmatprep.subr.bf16.mxu0 0
    %4394 = vmatpush1.bf16.msra.mxu0 %v3949
    %4395 = vmatprep.subr.bf16.mxu0 0
    %4396 = vmatpush1.bf16.msra.mxu0 %v3950
    %4397 = vmatprep.subr.bf16.mxu0 0
    %4398 = vmatpush1.bf16.msra.mxu0 %v3951
    %4399 = vmatprep.subr.bf16.mxu0 0
    %4400 = vmatpush1.bf16.msra.mxu0 %v3952
    %4401 = vmatprep.subr.bf16.mxu0 0
    %4402 = vmatpush1.bf16.msra.mxu0 %v3953
    %4403 = vmatprep.subr.bf16.mxu0 0
    %4404 = vmatpush1.bf16.msra.mxu0 %v3954
    %4405 = vmatprep.subr.bf16.mxu0 0
    %4406 = vmatpush1.bf16.msra.mxu0 %v3955
    %4407 = vmatprep.subr.bf16.mxu0 0
    %4408 = vmatpush1.bf16.msra.mxu0 %v3956
    %4409 = vmatprep.subr.bf16.mxu0 0
    %4410 = vmatpush1.bf16.msra.mxu0 %v3957
    %4411 = vmatprep.subr.bf16.mxu0 0
    %4412 = vmatpush1.bf16.msra.mxu0 %v3958
    %4413 = vmatprep.mubr.bf16.mxu0 %v3042
    %4414 = vmatmul.mubr.bf16.gmra.mrb[0].mxu0 %v3041
    %v4415 = vpop.f32.mrb[0].mxu0
    %v4416 = vadd.f32 %v4375, %v4415
    %v4417 = vpop.f32.mrb[0].mxu0
    %v4418 = vpop.f32.mrb[0].mxu0
    %v4419 = vadd.f32 %v4378, %v4418
    %v4420 = vpop.f32.mrb[0].mxu0
    %4421 = vdwg.mxu0
    %4422 = vmatprep.subr.bf16.mxu0 0
    %4423 = vmatpush1.bf16.msra.mxu0 %v3959
    %4424 = vmatprep.subr.bf16.mxu0 0
    %4425 = vmatpush1.bf16.msra.mxu0 %v3960
    %4426 = vmatprep.subr.bf16.mxu0 0
    %4427 = vmatpush1.bf16.msra.mxu0 0
    %4428 = vmatprep.subr.bf16.mxu0 0
    %4429 = vmatpush1.bf16.msra.mxu0 0
    %4430 = vmatprep.subr.bf16.mxu0 0
    %4431 = vmatpush1.bf16.msra.mxu0 0
    %4432 = vmatprep.subr.bf16.mxu0 0
    %4433 = vmatpush1.bf16.msra.mxu0 0
    %4434 = vmatprep.subr.bf16.mxu0 0
    %4435 = vmatpush1.bf16.msra.mxu0 0
    %4436 = vmatprep.subr.bf16.mxu0 0
    %4437 = vmatpush1.bf16.msra.mxu0 0
    %4438 = vmatprep.subr.bf16.mxu0 0
    %4439 = vmatpush1.bf16.msra.mxu0 0
    %4440 = vmatprep.subr.bf16.mxu0 0
    %4441 = vmatpush1.bf16.msra.mxu0 0
    %4442 = vmatprep.subr.bf16.mxu0 0
    %4443 = vmatpush1.bf16.msra.mxu0 0
    %4444 = vmatprep.subr.bf16.mxu0 0
    %4445 = vmatpush1.bf16.msra.mxu0 0
    %4446 = vmatprep.subr.bf16.mxu0 0
    %4447 = vmatpush1.bf16.msra.mxu0 0
    %4448 = vmatprep.subr.bf16.mxu0 0
    %4449 = vmatpush1.bf16.msra.mxu0 0
    %4450 = vmatprep.subr.bf16.mxu0 0
    %4451 = vmatpush1.bf16.msra.mxu0 0
    %4452 = vmatprep.subr.bf16.mxu0 0
    %4453 = vmatpush1.bf16.msra.mxu0 0
    %4454 = vmatprep.mubr.bf16.mxu0 0
    %4455 = vmatmul.mubr.bf16.gmra.mrb[0].mxu0 %v4092
    %v4456 = vpop.f32.mrb[0].mxu0
    %v4457 = vadd.f32 %v4416, %v4456
    %v4458 = vpop.f32.mrb[0].mxu0
    %v4459 = vpop.f32.mrb[0].mxu0
    %v4460 = vadd.f32 %v4419, %v4459
    %v4461 = vpop.f32.mrb[0].mxu0
    %4462 = vdwg.mxu0
    %4465 = vrot.lane.b32.xlu0 %v4457, 64
    %v4466 = vpop.permute.xlu0 %4465
    %4467 = vrot.lane.b32.xlu0 %v4460, 64
    %v4468 = vpop.permute.xlu0 %4467
    %v4471 = vmax.f32 %v4457, %v4466
    %v4472 = vmax.f32 %v4460, %v4468
    %vm4473 = vcmask 517120
    %v4474 = vsel %vm4473, %v4471, -inf
    %v4475 = vrot.slane %v4474, 4
    %v4476 = vmax.f32 %v4474, %v4475
    %v4477 = vrot.slane %v4476, 2
    %v4478 = vmax.f32 %v4476, %v4477
    %v4479 = vrot.slane %v4478, 1
    %v4480 = vmax.f32 %v4478, %v4479
    %vm4481 = vcmask 519170
    %v4482 = vsel %vm4481, %v4471, -inf
    %v4483 = vrot.slane %v4482, 4
    %v4484 = vmax.f32 %v4482, %v4483
    %v4485 = vrot.slane %v4484, 2
    %v4486 = vmax.f32 %v4484, %v4485
    %v4487 = vrot.slane %v4486, 1
    %v4488 = vmax.f32 %v4486, %v4487
    %vm4489 = vcmask 521220
    %v4490 = vsel %vm4489, %v4471, -inf
    %v4491 = vrot.slane %v4490, 4
    %v4492 = vmax.f32 %v4490, %v4491
    %v4493 = vrot.slane %v4492, 2
    %v4494 = vmax.f32 %v4492, %v4493
    %v4495 = vrot.slane %v4494, 1
    %v4496 = vmax.f32 %v4494, %v4495
    %vm4497 = vcmask 523270
    %v4498 = vsel %vm4497, %v4471, -inf
    %v4499 = vrot.slane %v4498, 4
    %v4500 = vmax.f32 %v4498, %v4499
    %v4501 = vrot.slane %v4500, 2
    %v4502 = vmax.f32 %v4500, %v4501
    %v4503 = vrot.slane %v4502, 1
    %v4504 = vmax.f32 %v4502, %v4503
    %v4505 = vsel %vm4473, %v4472, -inf
    %v4506 = vrot.slane %v4505, 4
    %v4507 = vmax.f32 %v4505, %v4506
    %v4508 = vrot.slane %v4507, 2
    %v4509 = vmax.f32 %v4507, %v4508
    %v4510 = vrot.slane %v4509, 1
    %v4511 = vmax.f32 %v4509, %v4510
    %v4512 = vsel %vm4481, %v4472, -inf
    %v4513 = vrot.slane %v4512, 4
    %v4514 = vmax.f32 %v4512, %v4513
    %v4515 = vrot.slane %v4514, 2
    %v4516 = vmax.f32 %v4514, %v4515
    %v4517 = vrot.slane %v4516, 1
    %v4518 = vmax.f32 %v4516, %v4517
    %v4519 = vsel %vm4489, %v4472, -inf
    %v4520 = vrot.slane %v4519, 4
    %v4521 = vmax.f32 %v4519, %v4520
    %v4522 = vrot.slane %v4521, 2
    %v4523 = vmax.f32 %v4521, %v4522
    %v4524 = vrot.slane %v4523, 1
    %v4525 = vmax.f32 %v4523, %v4524
    %v4526 = vsel %vm4497, %v4472, -inf
    %v4527 = vrot.slane %v4526, 4
    %v4528 = vmax.f32 %v4526, %v4527
    %v4529 = vrot.slane %v4528, 2
    %v4530 = vmax.f32 %v4528, %v4529
    %v4531 = vrot.slane %v4530, 1
    %v4532 = vmax.f32 %v4530, %v4531
    %v4533 = vsel %vm964, %v4480, %v4488
    %v4534 = vsel %vm969, %v4533, %v4496
    %v4535 = vsel %vm974, %v4534, %v4504
    %v4536 = vsel %vm979, %v4535, %v4511
    %v4537 = vsel %vm984, %v4536, %v4518
    %v4538 = vsel %vm989, %v4537, %v4525
    %vm4539 = vcmask 1046528
    %v4540 = vsel %vm4539, %v4538, %v4532
    %v4541 = vpack.c.bf16 %v4540, %v4540
    %v4542 = vld [vmem:[%s5] sm:$0xf]
    %v4543 = vld [vmem:[%s5 + $0x4] sm:$0xf]
    %v4544 = vld [vmem:[%s5 + $0x8] sm:$0xf]
    %v4545 = vld [vmem:[%s5 + $0xc] sm:$0xf]
    %v4546 = vld [vmem:[%s5 + $0x10] sm:$0xf]
    %v4547 = vld [vmem:[%s5 + $0x14] sm:$0xf]
    %v4548 = vld [vmem:[%s5 + $0x18] sm:$0xf]
    %v4549 = vld [vmem:[%s5 + $0x1c] sm:$0xf]
    %v4550 = vld [vmem:[%s6] sm:$0x1]
    %v4552 = vlaneseq
    %v4553 = vshrl.u32 %v4552, 7
    %v4554 = vsub.s32 0, %v4553
    %v4555 = vrot.slane %v4550, %v4554
    %v4565 = vunpack.c.l.b16 %v4542
    %v4566 = vunpack.c.l.b16 %v4543
    %v4567 = vunpack.c.l.b16 %v4544
    %v4568 = vunpack.c.l.b16 %v4545
    %v4569 = vunpack.c.l.b16 %v4546
    %v4570 = vunpack.c.l.b16 %v4547
    %v4571 = vunpack.c.l.b16 %v4548
    %v4572 = vunpack.c.l.b16 %v4549
    %v4573 = vpack.c.b16 %v4566, %v4565
    %v4574 = vpack.c.b16 %v4568, %v4567
    %v4575 = vpack.c.b16 %v4570, %v4569
    %v4576 = vpack.c.b16 %v4572, %v4571
    %v4582 = vsel %vm806, %v4541, 0
    %4584 = vmatprep.subr.bf16.mxu0 0
    %4585 = vmatpush1.bf16.msra.mxu0 %v4573
    %4586 = vmatprep.subr.bf16.mxu0 0
    %4587 = vmatpush1.bf16.msra.mxu0 %v4574
    %4588 = vmatprep.subr.bf16.mxu0 0
    %4589 = vmatpush1.bf16.msra.mxu0 %v4575
    %4590 = vmatprep.subr.bf16.mxu0 0
    %4591 = vmatpush1.bf16.msra.mxu0 %v4576
    %4592 = vmatprep.subr.bf16.mxu0 0
    %4593 = vmatpush1.bf16.msra.mxu0 0
    %4594 = vmatprep.subr.bf16.mxu0 0
    %4595 = vmatpush1.bf16.msra.mxu0 0
    %4596 = vmatprep.subr.bf16.mxu0 0
    %4597 = vmatpush1.bf16.msra.mxu0 0
    %4598 = vmatprep.subr.bf16.mxu0 0
    %4599 = vmatpush1.bf16.msra.mxu0 0
    %4600 = vmatprep.subr.bf16.mxu0 0
    %4601 = vmatpush1.bf16.msra.mxu0 0
    %4602 = vmatprep.subr.bf16.mxu0 0
    %4603 = vmatpush1.bf16.msra.mxu0 0
    %4604 = vmatprep.subr.bf16.mxu0 0
    %4605 = vmatpush1.bf16.msra.mxu0 0
    %4606 = vmatprep.subr.bf16.mxu0 0
    %4607 = vmatpush1.bf16.msra.mxu0 0
    %4608 = vmatprep.subr.bf16.mxu0 0
    %4609 = vmatpush1.bf16.msra.mxu0 0
    %4610 = vmatprep.subr.bf16.mxu0 0
    %4611 = vmatpush1.bf16.msra.mxu0 0
    %4612 = vmatprep.subr.bf16.mxu0 0
    %4613 = vmatpush1.bf16.msra.mxu0 0
    %4614 = vmatprep.subr.bf16.mxu0 0
    %4615 = vmatpush1.bf16.msra.mxu0 0
    %4616 = vmatprep.mubr.bf16.mxu0 0
    %4617 = vmatmul.mubr.bf16.gmra.mrb[0].mxu0 %v4582
    %v4618 = vpop.f32.mrb[0].mxu0
    %v4619 = vadd.f32 %v4555, %v4618
    %v4620 = vpop.f32.mrb[0].mxu0
    %v4621 = vpop.f32.mrb[0].mxu0
    %v4622 = vpop.f32.mrb[0].mxu0
    %4623 = vdwg.mxu0
    %v4624 = vmax.f32 %v4619, 0.0
    %v4625 = vpack.c.bf16 %v4624, %v4624
    %v4626 = vld [vmem:[%s7] sm:$0xf]
    %v4627 = vld [vmem:[%s7 + $0x4] sm:$0xf]
    %v4628 = vld [vmem:[%s7 + $0x8] sm:$0xf]
    %v4629 = vld [vmem:[%s7 + $0xc] sm:$0xf]
    %v4630 = vld [vmem:[#allocation6] sm:$0x1]
    %v4632 = vlaneseq
    %v4633 = vshrl.u32 %v4632, 7
    %v4634 = vsub.s32 0, %v4633
    %v4635 = vrot.slane %v4630, %v4634
    %v4641 = vunpack.c.l.b16 %v4626
    %v4642 = vunpack.c.l.b16 %v4627
    %v4643 = vunpack.c.l.b16 %v4628
    %v4644 = vunpack.c.l.b16 %v4629
    %v4645 = vpack.c.b16 %v4642, %v4641
    %v4646 = vpack.c.b16 %v4644, %v4643
    %v4650 = vsel %vm2071, %v4625, 0
    %4652 = vmatprep.subr.bf16.mxu0 0
    %4653 = vmatpush1.bf16.msra.mxu0 %v4645
    %4654 = vmatprep.subr.bf16.mxu0 0
    %4655 = vmatpush1.bf16.msra.mxu0 %v4646
    %4656 = vmatprep.subr.bf16.mxu0 0
    %4657 = vmatpush1.bf16.msra.mxu0 0
    %4658 = vmatprep.subr.bf16.mxu0 0
    %4659 = vmatpush1.bf16.msra.mxu0 0
    %4660 = vmatprep.subr.bf16.mxu0 0
    %4661 = vmatpush1.bf16.msra.mxu0 0
    %4662 = vmatprep.subr.bf16.mxu0 0
    %4663 = vmatpush1.bf16.msra.mxu0 0
    %4664 = vmatprep.subr.bf16.mxu0 0
    %4665 = vmatpush1.bf16.msra.mxu0 0
    %4666 = vmatprep.subr.bf16.mxu0 0
    %4667 = vmatpush1.bf16.msra.mxu0 0
    %4668 = vmatprep.subr.bf16.mxu0 0
    %4669 = vmatpush1.bf16.msra.mxu0 0
    %4670 = vmatprep.subr.bf16.mxu0 0
    %4671 = vmatpush1.bf16.msra.mxu0 0
    %4672 = vmatprep.subr.bf16.mxu0 0
    %4673 = vmatpush1.bf16.msra.mxu0 0
    %4674 = vmatprep.subr.bf16.mxu0 0
    %4675 = vmatpush1.bf16.msra.mxu0 0
    %4676 = vmatprep.subr.bf16.mxu0 0
    %4677 = vmatpush1.bf16.msra.mxu0 0
    %4678 = vmatprep.subr.bf16.mxu0 0
    %4679 = vmatpush1.bf16.msra.mxu0 0
    %4680 = vmatprep.subr.bf16.mxu0 0
    %4681 = vmatpush1.bf16.msra.mxu0 0
    %4682 = vmatprep.subr.bf16.mxu0 0
    %4683 = vmatpush1.bf16.msra.mxu0 0
    %4684 = vmatprep.mubr.bf16.mxu0 0
    %4685 = vmatmul.mubr.bf16.gmra.mrb[0].mxu0 %v4650
    %v4686 = vpop.f32.mrb[0].mxu0
    %v4687 = vadd.f32 %v4635, %v4686
    %v4688 = vpop.f32.mrb[0].mxu0
    %v4689 = vpop.f32.mrb[0].mxu0
    %v4690 = vpop.f32.mrb[0].mxu0
    %4691 = vdwg.mxu0
    %v4692 = vxor.u32 %v4687, 2147483648
    %v4693 = vmul.f32 %v4692, 1.442695
    %v4694 = vpow.pop %v4693
    %v4695 = vadd.f32 %v4694, 1.0
    %v4696 = vrcp.pop %v4695
    %v4697 = vmul.f32 1.0, %v4696
    %vm4698 = vcmask 7168
    %4699 = vst.msk [vmem:[%s9] sm:$0xff] %vm4698, %v4697
    // Predicated region
    $region42: #{tpu_custom_call.1} parent=1 // pred_check
      _
    $region43: #{tpu_custom_call.1} parent=1 // pred_check_branch
      %4701 = sbr.rel (0) target = $region45
    $region44: #{tpu_custom_call.1} parent=1 // pred_region
      _
    $region45: #{tpu_custom_call.1} parent=1 // pred_fallthru
      _
    // Predicated region
    $region46: #{tpu_custom_call.1} parent=1 // pred_check
      _
    $region47: #{tpu_custom_call.1} parent=1 // pred_check_branch
      %4703 = sbr.rel (0) target = $region49
    $region48: #{tpu_custom_call.1} parent=1 // pred_region
      _
    $region49: #{tpu_custom_call.1} parent=1 // pred_fallthru
      _
    %4704 = vsyncpa [#allocation8], 1

</llo_original>
